<compile_context>
chip_gen: v7x
topology: tpu7x:2x2x1
jax: 0.10.0
libtpu: 0.0.40
codegen_flags: <defaults>
</compile_context>

<pallas_src>
import numpy as np
import jax
import jax.numpy as jnp
from jax.experimental import pallas as pl
from jax.experimental.pallas import tpu as pltpu


C = 256          # transposed-conv channel width
H_PITCH = 128    # final conv kernel height (pitch axis)
W_OUT = 16       # final spatial width

# Static lane offsets inside the packed bias operand (all 128-aligned).
_B1_OFF = 0                      # (1, 1024)  fc1 bias
_C1_OFF = 1024                   # (1, 1024)  conv1 bias tiled x4
_B2_OFF = 2048                   # (1, 512)   fc2 bias
_C2_OFF = 2560                   # (1, 512)   conv2 bias tiled x2
_C3_OFF = 3072                   # (1, 512)   conv3 bias tiled x2
_B3_OFF = 3584                   # (1, 2)     fc3 bias (padded slot of 128)
_C4_OFF = 3712                   # (1, 128)   conv4 scalar bias broadcast
_BIAS_LANES = 3840


def generator_kernel(x_ref, w1_ref, w2_ref, w3_ref, m1_ref,
                     k2_ref, k3_ref, k4_ref, bias_ref, out_ref):
    f32 = jnp.float32
    B = x_ref.shape[0]

    def relu(v):
        return jnp.maximum(v, 0.0)

    def mm(a, b):
        # Cast the activation to the weight dtype (bf16 for the big weights)
        # and accumulate in f32 on the MXU.
        return jnp.dot(a.astype(b.dtype), b, preferred_element_type=f32)

    # Packed biases (static lane slices, all f32).
    b1 = bias_ref[:, _B1_OFF:_B1_OFF + 1024]
    c1 = bias_ref[:, _C1_OFF:_C1_OFF + 1024]
    b2 = bias_ref[:, _B2_OFF:_B2_OFF + 512]
    c2 = bias_ref[:, _C2_OFF:_C2_OFF + 512]
    c3 = bias_ref[:, _C3_OFF:_C3_OFF + 512]
    b3 = bias_ref[:, _B3_OFF:_B3_OFF + 2]
    c4 = bias_ref[:, _C4_OFF:_C4_OFF + 128]

    # ---------------- fc_net (3 matmuls) ----------------
    h = relu(mm(x_ref[...], w1_ref[...]) + b1)                 # (B, 1024)
    h = relu(mm(h, w2_ref[...]) + b2)                          # (B, 512)
    h3 = relu(mm(h, w3_ref[...]) + b3)                         # (B, 2) == (B,1,1,2)

    # ---- ConvTranspose2d(1,256,(1,2),s=2) folded into ONE matmul ----
    # m1 (2, 4*256): lane-block j=2w+k holds K1[k] in row w, zeros elsewhere,
    # so y1[:, j*C:(j+1)*C] = h3[:, w]*K1[k] for the 4 output spatial columns.
    y1 = relu(mm(h3, m1_ref[...]) + c1)                        # (B, 4*256)

    # Stack the 4 spatial columns on the sublane axis: slab row = j1*B + b.
    slab = jnp.concatenate([y1[:, j * C:(j + 1) * C] for j in range(4)],
                           axis=0)                             # (4B, 256)

    # ---- ConvTranspose2d(256,256,(1,2),s=2) x2: one matmul per layer ----
    # kcat: (256, 512) = [W_{k=0} | W_{k=1}]; bias pre-tiled to (1, 512).
    def tconv_1x2(s, kcat_ref, bias2):
        y = relu(mm(s, kcat_ref[...]) + bias2)                 # (M, 512)
        # column count doubles; k=0 half first, then k=1 half (order is a pure
        # row permutation of the output — undone in the wrapper).
        return jnp.concatenate([y[:, :C], y[:, C:]], axis=0)   # (2M, 256)

    slab = tconv_1x2(slab, k2_ref, c2)                         # (8B, 256)
    slab = tconv_1x2(slab, k3_ref, c3)                         # (16B, 256)

    # ---- ConvTranspose2d(256,1,(128,1)) + ReLU + Monophonic one-hot ----
    p = relu(mm(slab, k4_ref[...]) + c4)                       # (16B, 128)
    m = jnp.max(p, axis=1, keepdims=True)
    iota = jax.lax.broadcasted_iota(jnp.int32, p.shape, 1)
    # first index attaining the max (matches torch.max first-max tie behavior).
    # NOTE: non-finite p would give an all-zero column (p == m false everywhere).
    first = jnp.min(jnp.where(p == m, iota, H_PITCH), axis=1, keepdims=True)
    # single unmasked lane-dense store: (16B, 128) f32 = 4 vregs at B=2
    out_ref[...] = (iota == first).astype(out_ref.dtype)


def prepare_params(params):
    """One-time conversion from PyTorch-layout params to kernel operands:
    fold conv1 into a block matmul, pack all biases into one lane-concatenated
    vector, and cast the large weights to bf16 (weights dominate HBM traffic)."""
    (w1, b1, w2, b2, w3, b3, k1, c1, k2, c2, k3, c3, k4, c4) = params
    bf16 = jnp.bfloat16

    # Fold ConvTranspose2d(1,256,(1,2)) into a (2, 4*256) matmul operand:
    # kron(I2, [K1[0] | K1[1]]).
    m1 = jnp.kron(jnp.eye(2, dtype=k1.dtype), k1.reshape(1, 2 * C))   # (2, 1024)

    bias_pack = jnp.concatenate([
        b1,                                              # [   0:1024]
        jnp.tile(c1, (1, 4)),                            # [1024:2048]
        b2,                                              # [2048:2560]
        jnp.tile(c2, (1, 2)),                            # [2560:3072]
        jnp.tile(c3, (1, 2)),                            # [3072:3584]
        jnp.pad(b3, ((0, 0), (0, 126))),                 # [3584:3712] (2 valid)
        jnp.broadcast_to(c4.reshape(1, 1), (1, 128)),    # [3712:3840]
    ], axis=1).astype(jnp.float32)
    assert bias_pack.shape == (1, _BIAS_LANES)

    return (w1.astype(bf16),      # (input_size, 1024)
            w2.astype(bf16),      # (1024, 512)
            w3,                   # (512, 2) — tiny, kept f32
            m1.astype(bf16),      # (2, 1024)
            k2.astype(bf16),      # (256, 512)
            k3.astype(bf16),      # (256, 512)
            k4.astype(bf16),      # (256, 128)
            bias_pack)            # (1, 3840)


@jax.jit
def generator_forward(x, kparams):
    (w1, w2, w3, m1, k2, k3, k4, bias_pack) = kparams
    B = x.shape[0]

    vmem = pl.BlockSpec(memory_space=pltpu.MemorySpace.VMEM)

    out = pl.pallas_call(
        generator_kernel,
        out_shape=jax.ShapeDtypeStruct((W_OUT * B, H_PITCH), jnp.float32),
        in_specs=[vmem] * 9,
        out_specs=vmem,
        compiler_params=pltpu.CompilerParams(vmem_limit_bytes=16 * 1024 * 1024),
    )(x, w1, w2, w3, m1, k2, k3, k4, bias_pack)

    # Kernel rows are ordered by (k3, k2, j1, b) in mixed radix (2,2,4,B);
    # the true width index is w = 4*j1 + 2*k2 + k3.  Unscramble + NCHW here.
    out = out.reshape(2, 2, 4, B, H_PITCH)            # (k3, k2, j1, b, pitch)
    out = jnp.transpose(out, (3, 4, 2, 1, 0))         # (b, pitch, j1, k2, k3)
    out = out.reshape(B, H_PITCH, W_OUT)              # (B, 128, 16)
    return out[:, None, :, :]                         # PyTorch NCHW (B, 1, 128, 16)


def init_params(key, input_size):
    """Deterministic parameter init (shapes pre-arranged for the kernel)."""
    keys = jax.random.split(key, 14)

    def u(k, shape, fan_in):
        b = 1.0 / np.sqrt(fan_in)
        return jax.random.uniform(k, shape, jnp.float32, -b, b)

    # Linear weights stored as (in, out) (== torch weight.T); biases as (1, out).
    w1 = u(keys[0], (input_size, 1024), input_size)
    b1 = u(keys[1], (1, 1024), input_size)
    w2 = u(keys[2], (1024, 512), 1024)
    b2 = u(keys[3], (1, 512), 1024)
    w3 = u(keys[4], (512, 2), 512)
    b3 = u(keys[5], (1, 2), 512)
    # ConvTranspose2d(1,256,(1,2)): K1[k, c_out] = torch_w[0, c_out, 0, k]
    k1 = u(keys[6], (2, C), 2)
    c1 = u(keys[7], (1, C), 2)
    # ConvTranspose2d(256,256,(1,2)): Kcat[:, :256]=W_{k=0}, [:, 256:]=W_{k=1},
    # where W_k[c_in, c_out] = torch_w[c_in, c_out, 0, k]
    k2 = u(keys[8], (C, 2 * C), 2 * C)
    c2 = u(keys[9], (1, C), 2 * C)
    k3 = u(keys[10], (C, 2 * C), 2 * C)
    c3 = u(keys[11], (1, C), 2 * C)
    # ConvTranspose2d(256,1,(128,1)): K4[c_in, h] = torch_w[c_in, 0, h, 0]
    k4 = u(keys[12], (C, H_PITCH), C)
    c4 = u(keys[13], (1, 1), C)
    return (w1, b1, w2, b2, w3, b3, k1, c1, k2, c2, k3, c3, k4, c4)


@jax.jit
def reference_pitch_activations(x, params):
    """Pure-JAX float32 (HIGHEST precision) reference of the pre-monophonic
    pitch activations, shape (B, W_OUT, H_PITCH)."""
    (w1, b1, w2, b2, w3, b3, k1, c1, k2, c2, k3, c3, k4, c4) = params
    HIGH = jax.lax.Precision.HIGHEST
    relu = jax.nn.relu
    B = x.shape[0]
    h = relu(jnp.matmul(x, w1, precision=HIGH) + b1)
    h = relu(jnp.matmul(h, w2, precision=HIGH) + b2)
    y = relu(jnp.matmul(h, w3, precision=HIGH) + b3)                      # (B, 2)
    z = relu(jnp.einsum('bw,kc->bwkc', y, k1, precision=HIGH)
             .reshape(B, 4, C) + c1)                                      # (B, 4, 256)
    for kcat, c in ((k2, c2), (k3, c3)):
        K = jnp.stack([kcat[:, :C], kcat[:, C:]], axis=0)                 # (2, ci, co)
        z = relu(jnp.einsum('bwi,kio->bwko', z, K, precision=HIGH)
                 .reshape(B, 2 * z.shape[1], C) + c)
    p = relu(jnp.einsum('bwi,ih->bwh', z, k4, precision=HIGH) + c4)       # (B, 16, 128)
    return p


if __name__ == "__main__":
    key = jax.random.PRNGKey(0)
    kx, kp = jax.random.split(key)

    batch, input_size = 2, 32
    x = jax.random.normal(kx, (batch, input_size), jnp.float32)
    params = init_params(kp, input_size)
    kparams = jax.tree_util.tree_map(jax.block_until_ready, prepare_params(params))

    out = jax.block_until_ready(generator_forward(x, kparams))
    assert out.shape == (batch, 1, H_PITCH, W_OUT), out.shape
    out_np = np.asarray(out)

    # monophonic property: exactly one 1.0 per (batch, time) column on the pitch axis
    assert np.allclose(out_np.sum(axis=2), 1.0)
    assert np.all((out_np == 0.0) | (out_np == 1.0))

    # the pitch the kernel selected must be (numerically) the maximal pitch
    # activation of the float32 reference for every (batch, time) column
    # (tolerance covers the kernel's bf16-weight MXU rounding).
    p_ref = np.asarray(reference_pitch_activations(x, params))   # (B, 16, 128)
    chosen = out_np[:, 0].argmax(axis=1)                         # (B, 16)
    chosen_val = np.take_along_axis(p_ref, chosen[..., None], axis=-1)[..., 0]
    max_val = p_ref.max(axis=-1)
    tol = 5e-2 * (1.0 + np.abs(max_val))
    assert np.all(chosen_val >= max_val - tol), "kernel argmax deviates from reference"

    print("KERNEL_OK")
</pallas_src>

<mosaic_0001>
module attributes {stable_mosaic.version = 11 : i64} {
  func.func @generator_kernel(%arg0: memref<2x32xf32, #tpu.memory_space<vmem>>, %arg1: memref<32x1024xbf16, #tpu.memory_space<vmem>>, %arg2: memref<1024x512xbf16, #tpu.memory_space<vmem>>, %arg3: memref<512x2xf32, #tpu.memory_space<vmem>>, %arg4: memref<2x1024xbf16, #tpu.memory_space<vmem>>, %arg5: memref<256x512xbf16, #tpu.memory_space<vmem>>, %arg6: memref<256x512xbf16, #tpu.memory_space<vmem>>, %arg7: memref<256x128xbf16, #tpu.memory_space<vmem>>, %arg8: memref<1x3840xf32, #tpu.memory_space<vmem>>, %arg9: memref<32x128xf32, #tpu.memory_space<vmem>>) attributes {dimension_semantics = [], scalar_prefetch = 0 : i64, scratch_operands = 0 : i64, tpu.core_type = #tpu.core_type<tc>} {
    %c0 = arith.constant 0 : index
    %c0_0 = arith.constant 0 : index
    %0 = vector.load %arg8[%c0, %c0_0] : memref<1x3840xf32, #tpu.memory_space<vmem>>, vector<1x1024xf32>
    %c0_1 = arith.constant 0 : index
    %c1024 = arith.constant 1024 : index
    %1 = vector.load %arg8[%c0_1, %c1024] : memref<1x3840xf32, #tpu.memory_space<vmem>>, vector<1x1024xf32>
    %c0_2 = arith.constant 0 : index
    %c2048 = arith.constant 2048 : index
    %2 = vector.load %arg8[%c0_2, %c2048] : memref<1x3840xf32, #tpu.memory_space<vmem>>, vector<1x512xf32>
    %c0_3 = arith.constant 0 : index
    %c2560 = arith.constant 2560 : index
    %3 = vector.load %arg8[%c0_3, %c2560] : memref<1x3840xf32, #tpu.memory_space<vmem>>, vector<1x512xf32>
    %c0_4 = arith.constant 0 : index
    %c3072 = arith.constant 3072 : index
    %4 = vector.load %arg8[%c0_4, %c3072] : memref<1x3840xf32, #tpu.memory_space<vmem>>, vector<1x512xf32>
    %c0_5 = arith.constant 0 : index
    %c3584 = arith.constant 3584 : index
    %5 = vector.load %arg8[%c0_5, %c3584] : memref<1x3840xf32, #tpu.memory_space<vmem>>, vector<1x2xf32>
    %c0_6 = arith.constant 0 : index
    %c3712 = arith.constant 3712 : index
    %6 = vector.load %arg8[%c0_6, %c3712] : memref<1x3840xf32, #tpu.memory_space<vmem>>, vector<1x128xf32>
    %c0_7 = arith.constant 0 : index
    %c0_8 = arith.constant 0 : index
    %7 = vector.load %arg0[%c0_7, %c0_8] : memref<2x32xf32, #tpu.memory_space<vmem>>, vector<2x32xf32>
    %c0_9 = arith.constant 0 : index
    %c0_10 = arith.constant 0 : index
    %8 = vector.load %arg1[%c0_9, %c0_10] : memref<32x1024xbf16, #tpu.memory_space<vmem>>, vector<32x1024xbf16>
    %9 = arith.truncf %7 : vector<2x32xf32> to vector<2x32xbf16>
    %cst = arith.constant dense<0.000000e+00> : vector<2x1024xf32>
    %10 = tpu.matmul %9, %8, %cst {dimension_numbers = #tpu.dot_dimension_numbers<[1], [0], [0], [1], [0, 0, 1, 1], [], []>} : vector<2x32xbf16>, vector<32x1024xbf16>, vector<2x1024xf32> -> vector<2x1024xf32>
    %11 = vector.broadcast %0 : vector<1x1024xf32> to vector<2x1024xf32>
    %12 = arith.addf %10, %11 : vector<2x1024xf32>
    %cst_11 = arith.constant 0.000000e+00 : f32
    %13 = vector.broadcast %cst_11 : f32 to vector<2x1024xf32>
    %14 = arith.maximumf %12, %13 : vector<2x1024xf32>
    %c0_12 = arith.constant 0 : index
    %c0_13 = arith.constant 0 : index
    %15 = vector.load %arg2[%c0_12, %c0_13] : memref<1024x512xbf16, #tpu.memory_space<vmem>>, vector<1024x512xbf16>
    %16 = arith.truncf %14 : vector<2x1024xf32> to vector<2x1024xbf16>
    %cst_14 = arith.constant dense<0.000000e+00> : vector<2x512xf32>
    %17 = tpu.matmul %16, %15, %cst_14 {dimension_numbers = #tpu.dot_dimension_numbers<[1], [0], [0], [1], [0, 0, 1, 1], [], []>} : vector<2x1024xbf16>, vector<1024x512xbf16>, vector<2x512xf32> -> vector<2x512xf32>
    %18 = vector.broadcast %2 : vector<1x512xf32> to vector<2x512xf32>
    %19 = arith.addf %17, %18 : vector<2x512xf32>
    %cst_15 = arith.constant 0.000000e+00 : f32
    %20 = vector.broadcast %cst_15 : f32 to vector<2x512xf32>
    %21 = arith.maximumf %19, %20 : vector<2x512xf32>
    %c0_16 = arith.constant 0 : index
    %c0_17 = arith.constant 0 : index
    %22 = vector.load %arg3[%c0_16, %c0_17] : memref<512x2xf32, #tpu.memory_space<vmem>>, vector<512x2xf32>
    %cst_18 = arith.constant dense<0.000000e+00> : vector<2x2xf32>
    %23 = tpu.matmul %21, %22, %cst_18 {dimension_numbers = #tpu.dot_dimension_numbers<[1], [0], [0], [1], [0, 0, 1, 1], [], []>} : vector<2x512xf32>, vector<512x2xf32>, vector<2x2xf32> -> vector<2x2xf32>
    %24 = vector.broadcast %5 : vector<1x2xf32> to vector<2x2xf32>
    %25 = arith.addf %23, %24 : vector<2x2xf32>
    %cst_19 = arith.constant 0.000000e+00 : f32
    %26 = vector.broadcast %cst_19 : f32 to vector<2x2xf32>
    %27 = arith.maximumf %25, %26 : vector<2x2xf32>
    %c0_20 = arith.constant 0 : index
    %c0_21 = arith.constant 0 : index
    %28 = vector.load %arg4[%c0_20, %c0_21] : memref<2x1024xbf16, #tpu.memory_space<vmem>>, vector<2x1024xbf16>
    %29 = arith.truncf %27 : vector<2x2xf32> to vector<2x2xbf16>
    %cst_22 = arith.constant dense<0.000000e+00> : vector<2x1024xf32>
    %30 = tpu.matmul %29, %28, %cst_22 {dimension_numbers = #tpu.dot_dimension_numbers<[1], [0], [0], [1], [0, 0, 1, 1], [], []>} : vector<2x2xbf16>, vector<2x1024xbf16>, vector<2x1024xf32> -> vector<2x1024xf32>
    %31 = vector.broadcast %1 : vector<1x1024xf32> to vector<2x1024xf32>
    %32 = arith.addf %30, %31 : vector<2x1024xf32>
    %cst_23 = arith.constant 0.000000e+00 : f32
    %33 = vector.broadcast %cst_23 : f32 to vector<2x1024xf32>
    %34 = arith.maximumf %32, %33 : vector<2x1024xf32>
    %35 = vector.extract_strided_slice %34 {offsets = [0, 0], sizes = [2, 256], strides = [1, 1]} : vector<2x1024xf32> to vector<2x256xf32>
    %36 = vector.extract_strided_slice %34 {offsets = [0, 256], sizes = [2, 256], strides = [1, 1]} : vector<2x1024xf32> to vector<2x256xf32>
    %37 = vector.extract_strided_slice %34 {offsets = [0, 512], sizes = [2, 256], strides = [1, 1]} : vector<2x1024xf32> to vector<2x256xf32>
    %38 = vector.extract_strided_slice %34 {offsets = [0, 768], sizes = [2, 256], strides = [1, 1]} : vector<2x1024xf32> to vector<2x256xf32>
    %39 = tpu.concatenate %35, %36, %37, %38 in 0 : vector<2x256xf32>, vector<2x256xf32>, vector<2x256xf32>, vector<2x256xf32> -> vector<8x256xf32>
    %c0_24 = arith.constant 0 : index
    %c0_25 = arith.constant 0 : index
    %40 = vector.load %arg5[%c0_24, %c0_25] : memref<256x512xbf16, #tpu.memory_space<vmem>>, vector<256x512xbf16>
    %41 = arith.truncf %39 : vector<8x256xf32> to vector<8x256xbf16>
    %cst_26 = arith.constant dense<0.000000e+00> : vector<8x512xf32>
    %42 = tpu.matmul %41, %40, %cst_26 {dimension_numbers = #tpu.dot_dimension_numbers<[1], [0], [0], [1], [0, 0, 1, 1], [], []>} : vector<8x256xbf16>, vector<256x512xbf16>, vector<8x512xf32> -> vector<8x512xf32>
    %43 = vector.broadcast %3 : vector<1x512xf32> to vector<8x512xf32>
    %44 = arith.addf %42, %43 : vector<8x512xf32>
    %cst_27 = arith.constant 0.000000e+00 : f32
    %45 = vector.broadcast %cst_27 : f32 to vector<8x512xf32>
    %46 = arith.maximumf %44, %45 : vector<8x512xf32>
    %47 = vector.extract_strided_slice %46 {offsets = [0, 0], sizes = [8, 256], strides = [1, 1]} : vector<8x512xf32> to vector<8x256xf32>
    %48 = vector.extract_strided_slice %46 {offsets = [0, 256], sizes = [8, 256], strides = [1, 1]} : vector<8x512xf32> to vector<8x256xf32>
    %49 = tpu.concatenate %47, %48 in 0 : vector<8x256xf32>, vector<8x256xf32> -> vector<16x256xf32>
    %c0_28 = arith.constant 0 : index
    %c0_29 = arith.constant 0 : index
    %50 = vector.load %arg6[%c0_28, %c0_29] : memref<256x512xbf16, #tpu.memory_space<vmem>>, vector<256x512xbf16>
    %51 = arith.truncf %49 : vector<16x256xf32> to vector<16x256xbf16>
    %cst_30 = arith.constant dense<0.000000e+00> : vector<16x512xf32>
    %52 = tpu.matmul %51, %50, %cst_30 {dimension_numbers = #tpu.dot_dimension_numbers<[1], [0], [0], [1], [0, 0, 1, 1], [], []>} : vector<16x256xbf16>, vector<256x512xbf16>, vector<16x512xf32> -> vector<16x512xf32>
    %53 = vector.broadcast %4 : vector<1x512xf32> to vector<16x512xf32>
    %54 = arith.addf %52, %53 : vector<16x512xf32>
    %cst_31 = arith.constant 0.000000e+00 : f32
    %55 = vector.broadcast %cst_31 : f32 to vector<16x512xf32>
    %56 = arith.maximumf %54, %55 : vector<16x512xf32>
    %57 = vector.extract_strided_slice %56 {offsets = [0, 0], sizes = [16, 256], strides = [1, 1]} : vector<16x512xf32> to vector<16x256xf32>
    %58 = vector.extract_strided_slice %56 {offsets = [0, 256], sizes = [16, 256], strides = [1, 1]} : vector<16x512xf32> to vector<16x256xf32>
    %59 = tpu.concatenate %57, %58 in 0 : vector<16x256xf32>, vector<16x256xf32> -> vector<32x256xf32>
    %c0_32 = arith.constant 0 : index
    %c0_33 = arith.constant 0 : index
    %60 = vector.load %arg7[%c0_32, %c0_33] : memref<256x128xbf16, #tpu.memory_space<vmem>>, vector<256x128xbf16>
    %61 = arith.truncf %59 : vector<32x256xf32> to vector<32x256xbf16>
    %cst_34 = arith.constant dense<0.000000e+00> : vector<32x128xf32>
    %62 = tpu.matmul %61, %60, %cst_34 {dimension_numbers = #tpu.dot_dimension_numbers<[1], [0], [0], [1], [0, 0, 1, 1], [], []>} : vector<32x256xbf16>, vector<256x128xbf16>, vector<32x128xf32> -> vector<32x128xf32>
    %63 = vector.broadcast %6 : vector<1x128xf32> to vector<32x128xf32>
    %64 = arith.addf %62, %63 : vector<32x128xf32>
    %cst_35 = arith.constant 0.000000e+00 : f32
    %65 = vector.broadcast %cst_35 : f32 to vector<32x128xf32>
    %66 = arith.maximumf %64, %65 : vector<32x128xf32>
    %cst_36 = arith.constant dense<0xFF800000> : vector<32xf32>
    %67 = vector.multi_reduction <maximumf>, %66, %cst_36 [1] : vector<32x128xf32> to vector<32xf32>
    %68 = vector.shape_cast %67 : vector<32xf32> to vector<32x1xf32>
    %69 = tpu.iota {dimensions = array<i32: 1>} : vector<32x128xi32>
    %70 = vector.broadcast %68 : vector<32x1xf32> to vector<32x128xf32>
    %71 = arith.cmpf oeq, %66, %70 : vector<32x128xf32>
    %c128_i32 = arith.constant 128 : i32
    %72 = vector.broadcast %c128_i32 : i32 to vector<32x128xi32>
    %73 = arith.select %71, %69, %72 : vector<32x128xi1>, vector<32x128xi32>
    %cst_37 = arith.constant dense<2147483647> : vector<32xi32>
    %74 = vector.multi_reduction <minsi>, %73, %cst_37 [1] : vector<32x128xi32> to vector<32xi32>
    %75 = vector.shape_cast %74 : vector<32xi32> to vector<32x1xi32>
    %76 = vector.broadcast %75 : vector<32x1xi32> to vector<32x128xi32>
    %77 = arith.cmpi eq, %69, %76 : vector<32x128xi32>
    %78 = arith.extui %77 : vector<32x128xi1> to vector<32x128xi32>
    %79 = arith.sitofp %78 : vector<32x128xi32> to vector<32x128xf32>
    %c0_38 = arith.constant 0 : index
    %c0_39 = arith.constant 0 : index
    %80 = vector.load %arg9[%c0_38, %c0_39] : memref<32x128xf32, #tpu.memory_space<vmem>>, vector<32x128xf32>
    tpu.vector_store %arg9[%c0_38, %c0_39], %79 {strides = array<i32>} : memref<32x128xf32, #tpu.memory_space<vmem>>, vector<32x128xf32>,
    return
  }
}

</mosaic_0001>

<llo_original>
// kernel: generator_forward.1
$region0: #{generator_forward.1}
  #allocation0 [shape = 'u32[]', space=smem, size = 0x4, offset = 0x4, fixed_abs, tag = 'smem constant byte address 0x4 - core index']
  #allocation1 [shape = 'u32[144,128]{1,0:T(1,128)}', space=vmem, size = 0x12000, scoped, tag = 'internal scratch']
  %s0 = inlined_call_operand.hbm [shape: f32[2,32], index: 0, kind: input, shape index: {}]
  %s1 = inlined_call_operand.hbm [shape: bf16[32,1024], index: 1, kind: input, shape index: {}]
  %s2 = inlined_call_operand.hbm [shape: bf16[1024,512], index: 2, kind: input, shape index: {}]
  %s3 = inlined_call_operand.vmem [shape: f32[512,2], index: 3, kind: input, shape index: {}]
  %s4 = inlined_call_operand.hbm [shape: bf16[2,1024], index: 4, kind: input, shape index: {}]
  %s5 = inlined_call_operand.vmem [shape: bf16[256,512], index: 5, kind: input, shape index: {}]
  %s6 = inlined_call_operand.hbm [shape: bf16[256,512], index: 6, kind: input, shape index: {}]
  %s7 = inlined_call_operand.hbm [shape: bf16[256,128], index: 7, kind: input, shape index: {}]
  %s8 = inlined_call_operand.vmem [shape: f32[1,3840], index: 8, kind: input, shape index: {}]
  %s9 = inlined_call_operand.vmem [shape: f32[32,128], index: 9, kind: output, shape index: {}]
  %s10 = sld [smem:[#allocation0]]
  $region70: #{generator_forward.1} parent=0
    _
  %s12 = ssub.s32 1, %s10
  %s13 = scalar_select 0, %s12, %s10
  $region1: #{generator_forward.1} parent=0
    #allocation2 [shape = 'u8[1024]{0}', space=vmem, size = 0x400, scoped, tag = 'input window, operand 0, single buffered']
    #allocation3 [shape = 's32[1]{0}', space=sflag, size = 0x4, scoped, tag = 'scoped memory for generator_forward.1']
    #allocation4 [shape = 'u8[65536]{0}', space=vmem, size = 0x10000, scoped, tag = 'input window, operand 1, single buffered']
    #allocation5 [shape = 's32[1]{0}', space=sflag, size = 0x4, scoped, tag = 'scoped memory for generator_forward.1']
    #allocation6 [shape = 'u8[1048576]{0}', space=vmem, size = 0x100000, scoped, tag = 'input window, operand 2, single buffered']
    #allocation7 [shape = 'u8[4096]{0}', space=vmem, size = 0x1000, scoped, tag = 'input window, operand 4, single buffered']
    #allocation8 [shape = 's32[1]{0}', space=sflag, size = 0x4, scoped, tag = 'scoped memory for generator_forward.1']
    #allocation9 [shape = 'u8[262144]{0}', space=vmem, size = 0x40000, scoped, tag = 'input window, operand 6, single buffered']
    #allocation10 [shape = 'u8[65536]{0}', space=vmem, size = 0x10000, scoped, tag = 'input window, operand 7, single buffered']
    #allocation11 [shape = 's32[1]{0}', space=sflag, size = 0x4, scoped, tag = 'scoped memory for generator_forward.1']
    %14 = vsyncpa [#allocation3], 0
    %15 = vsyncpa [#allocation5], 0
    %16 = vsyncpa [#allocation8], 0
    %17 = vsyncpa [#allocation11], 0
    // Predicated region
    $region2: #{generator_forward.1} parent=1 // pred_check
      _
    $region3: #{generator_forward.1} parent=1 // pred_check_branch
      %19 = sbr.rel (0) target = $region5
    $region4: #{generator_forward.1} parent=1 // pred_region
      %s21 = ssub.s32 32, 32
      %22 = vsyncadd [#allocation3], %s21
      %s24 = sshll.u32 [#allocation2], 4
      %s25 = int_to_ptr.vmem [resolvable:$true] %s24
      %27 = dma.hbm_to_vmem [thread:$0]  %s0, 32, %s25, [#allocation3]
    $region5: #{generator_forward.1} parent=1 // pred_fallthru
      _
    // Predicated region
    $region6: #{generator_forward.1} parent=1 // pred_check
      _
    $region7: #{generator_forward.1} parent=1 // pred_check_branch
      %29 = sbr.rel (0) target = $region9
    $region8: #{generator_forward.1} parent=1 // pred_region
      %s31 = ssub.s32 2048, 2048
      %32 = vsyncadd [#allocation5], %s31
      %s33 = sshll.u32 [#allocation4], 4
      %s34 = int_to_ptr.vmem [resolvable:$true] %s33
      %39 = dma.hbm_to_vmem [thread:$0]  %s1, 2048, %s34, [#allocation5], 512, 512, 32
    $region9: #{generator_forward.1} parent=1 // pred_fallthru
      _
    // Predicated region
    $region10: #{generator_forward.1} parent=1 // pred_check
      _
    $region11: #{generator_forward.1} parent=1 // pred_check_branch
      %41 = sbr.rel (0) target = $region13
    $region12: #{generator_forward.1} parent=1 // pred_region
      %s43 = ssub.s32 32768, 32768
      %44 = vsyncadd [#allocation5], %s43
      %s45 = sshll.u32 [#allocation6], 4
      %s46 = int_to_ptr.vmem [resolvable:$true] %s45
      %51 = dma.hbm_to_vmem [thread:$0]  %s2, 32768, %s46, [#allocation5], 256, 256, 16
    $region13: #{generator_forward.1} parent=1 // pred_fallthru
      _
    // Predicated region
    $region14: #{generator_forward.1} parent=1 // pred_check
      _
    $region15: #{generator_forward.1} parent=1 // pred_check_branch
      %53 = sbr.rel (0) target = $region17
    $region16: #{generator_forward.1} parent=1 // pred_region
      _
    $region17: #{generator_forward.1} parent=1 // pred_fallthru
      _
    // Predicated region
    $region18: #{generator_forward.1} parent=1 // pred_check
      _
    $region19: #{generator_forward.1} parent=1 // pred_check_branch
      %55 = sbr.rel (0) target = $region21
    $region20: #{generator_forward.1} parent=1 // pred_region
      %s57 = ssub.s32 128, 128
      %58 = vsyncadd [#allocation8], %s57
      %s60 = sshll.u32 [#allocation7], 4
      %s61 = int_to_ptr.vmem [resolvable:$true] %s60
      %63 = dma.hbm_to_vmem [thread:$0]  %s4, 128, %s61, [#allocation8]
    $region21: #{generator_forward.1} parent=1 // pred_fallthru
      _
    // Predicated region
    $region22: #{generator_forward.1} parent=1 // pred_check
      _
    $region23: #{generator_forward.1} parent=1 // pred_check_branch
      %65 = sbr.rel (0) target = $region25
    $region24: #{generator_forward.1} parent=1 // pred_region
      _
    $region25: #{generator_forward.1} parent=1 // pred_fallthru
      _
    // Predicated region
    $region26: #{generator_forward.1} parent=1 // pred_check
      _
    $region27: #{generator_forward.1} parent=1 // pred_check_branch
      %67 = sbr.rel (0) target = $region29
    $region28: #{generator_forward.1} parent=1 // pred_region
      %s69 = ssub.s32 8192, 8192
      %70 = vsyncadd [#allocation8], %s69
      %s71 = sshll.u32 [#allocation9], 4
      %s72 = int_to_ptr.vmem [resolvable:$true] %s71
      %77 = dma.hbm_to_vmem [thread:$0]  %s6, 8192, %s72, [#allocation8], 256, 256, 16
    $region29: #{generator_forward.1} parent=1 // pred_fallthru
      _
    // Predicated region
    $region30: #{generator_forward.1} parent=1 // pred_check
      _
    $region31: #{generator_forward.1} parent=1 // pred_check_branch
      %79 = sbr.rel (0) target = $region33
    $region32: #{generator_forward.1} parent=1 // pred_region
      %s81 = ssub.s32 2048, 2048
      %82 = vsyncadd [#allocation11], %s81
      %s83 = sshll.u32 [#allocation10], 4
      %s84 = int_to_ptr.vmem [resolvable:$true] %s83
      %89 = dma.hbm_to_vmem [thread:$0]  %s7, 2048, %s84, [#allocation11], 64, 64, 4
    $region33: #{generator_forward.1} parent=1 // pred_fallthru
      _
    // Predicated region
    $region34: #{generator_forward.1} parent=1 // pred_check
      _
    $region35: #{generator_forward.1} parent=1 // pred_check_branch
      %91 = sbr.rel (0) target = $region37
    $region36: #{generator_forward.1} parent=1 // pred_region
      _
    $region37: #{generator_forward.1} parent=1 // pred_fallthru
      _
    // Predicated region
    $region38: #{generator_forward.1} parent=1 // pred_check
      _
    $region39: #{generator_forward.1} parent=1 // pred_check_branch
      %93 = sbr.rel (0) target = $region41
    $region40: #{generator_forward.1} parent=1 // pred_region
      %94 = dma.done [#allocation3], 32
    $region41: #{generator_forward.1} parent=1 // pred_fallthru
      _
    // Predicated region
    $region42: #{generator_forward.1} parent=1 // pred_check
      _
    $region43: #{generator_forward.1} parent=1 // pred_check_branch
      %96 = sbr.rel (0) target = $region45
    $region44: #{generator_forward.1} parent=1 // pred_region
      %97 = dma.done [#allocation5], 2048
    $region45: #{generator_forward.1} parent=1 // pred_fallthru
      _
    // Predicated region
    $region46: #{generator_forward.1} parent=1 // pred_check
      _
    $region47: #{generator_forward.1} parent=1 // pred_check_branch
      %99 = sbr.rel (0) target = $region49
    $region48: #{generator_forward.1} parent=1 // pred_region
      %100 = dma.done [#allocation5], 32768
    $region49: #{generator_forward.1} parent=1 // pred_fallthru
      _
    // Predicated region
    $region50: #{generator_forward.1} parent=1 // pred_check
      _
    $region51: #{generator_forward.1} parent=1 // pred_check_branch
      %102 = sbr.rel (0) target = $region53
    $region52: #{generator_forward.1} parent=1 // pred_region
      %103 = dma.done [#allocation8], 128
    $region53: #{generator_forward.1} parent=1 // pred_fallthru
      _
    // Predicated region
    $region54: #{generator_forward.1} parent=1 // pred_check
      _
    $region55: #{generator_forward.1} parent=1 // pred_check_branch
      %105 = sbr.rel (0) target = $region57
    $region56: #{generator_forward.1} parent=1 // pred_region
      %106 = dma.done [#allocation8], 8192
    $region57: #{generator_forward.1} parent=1 // pred_fallthru
      _
    // Predicated region
    $region58: #{generator_forward.1} parent=1 // pred_check
      _
    $region59: #{generator_forward.1} parent=1 // pred_check_branch
      %108 = sbr.rel (0) target = $region61
    $region60: #{generator_forward.1} parent=1 // pred_region
      %109 = dma.done [#allocation11], 2048
    $region61: #{generator_forward.1} parent=1 // pred_fallthru
      _
    %v111 = vld [vmem:[%s8] sm:$0xff]
    %v112 = vld [vmem:[%s8 + $0x8] sm:$0xff]
    %v113 = vld [vmem:[%s8 + $0x10] sm:$0xf]
    %v114 = vld [vmem:[%s8 + $0x14] sm:$0xf]
    %v115 = vld [vmem:[%s8 + $0x18] sm:$0xf]
    %v116 = vld [vmem:[%s8 + $0x1c] sm:$0x1]
    %v117 = vld [vmem:[%s8 + $0x1d] sm:$0x1]
    %v118 = vld [vmem:[#allocation2] sm:$0x3]
    %v119 = vld [vmem:[#allocation4] sm:$0xff]
    %v120 = vld [vmem:[#allocation4 + $0x8] sm:$0xff]
    %v121 = vld [vmem:[#allocation4 + $0x10] sm:$0xff]
    %v122 = vld [vmem:[#allocation4 + $0x18] sm:$0xff]
    %v123 = vld [vmem:[#allocation4 + $0x20] sm:$0xff]
    %v124 = vld [vmem:[#allocation4 + $0x28] sm:$0xff]
    %v125 = vld [vmem:[#allocation4 + $0x30] sm:$0xff]
    %v126 = vld [vmem:[#allocation4 + $0x38] sm:$0xff]
    %v127 = vld [vmem:[#allocation4 + $0x40] sm:$0xff]
    %v128 = vld [vmem:[#allocation4 + $0x48] sm:$0xff]
    %v129 = vld [vmem:[#allocation4 + $0x50] sm:$0xff]
    %v130 = vld [vmem:[#allocation4 + $0x58] sm:$0xff]
    %v131 = vld [vmem:[#allocation4 + $0x60] sm:$0xff]
    %v132 = vld [vmem:[#allocation4 + $0x68] sm:$0xff]
    %v133 = vld [vmem:[#allocation4 + $0x70] sm:$0xff]
    %v134 = vld [vmem:[#allocation4 + $0x78] sm:$0xff]
    %v135 = vpack.c.bf16 %v118, %v118
    %v137 = vlaneseq
    %v138 = vshrl.u32 %v137, 7
    %v139 = vsub.s32 0, %v138
    %v140 = vrot.slane %v111, %v139
    %v141 = vlaneseq
    %v142 = vshrl.u32 %v141, 7
    %v143 = vsub.s32 1, %v142
    %v144 = vrot.slane %v111, %v143
    %v145 = vlaneseq
    %v146 = vshrl.u32 %v145, 7
    %v147 = vsub.s32 2, %v146
    %v148 = vrot.slane %v111, %v147
    %v149 = vlaneseq
    %v150 = vshrl.u32 %v149, 7
    %v151 = vsub.s32 3, %v150
    %v152 = vrot.slane %v111, %v151
    %v153 = vlaneseq
    %v154 = vshrl.u32 %v153, 7
    %v155 = vsub.s32 4, %v154
    %v156 = vrot.slane %v111, %v155
    %v157 = vlaneseq
    %v158 = vshrl.u32 %v157, 7
    %v159 = vsub.s32 5, %v158
    %v160 = vrot.slane %v111, %v159
    %v161 = vlaneseq
    %v162 = vshrl.u32 %v161, 7
    %v163 = vsub.s32 6, %v162
    %v164 = vrot.slane %v111, %v163
    %v165 = vlaneseq
    %v166 = vshrl.u32 %v165, 7
    %v167 = vsub.s32 7, %v166
    %v168 = vrot.slane %v111, %v167
    %v193 = vunpack.c.l.b16 %v119
    %v194 = vunpack.c.h.b16 %v119
    %v195 = vunpack.c.l.b16 %v120
    %v196 = vunpack.c.h.b16 %v120
    %v197 = vunpack.c.l.b16 %v121
    %v198 = vunpack.c.h.b16 %v121
    %v199 = vunpack.c.l.b16 %v122
    %v200 = vunpack.c.h.b16 %v122
    %v201 = vunpack.c.l.b16 %v123
    %v202 = vunpack.c.h.b16 %v123
    %v203 = vunpack.c.l.b16 %v124
    %v204 = vunpack.c.h.b16 %v124
    %v205 = vunpack.c.l.b16 %v125
    %v206 = vunpack.c.h.b16 %v125
    %v207 = vunpack.c.l.b16 %v126
    %v208 = vunpack.c.h.b16 %v126
    %v209 = vunpack.c.l.b16 %v127
    %v210 = vunpack.c.h.b16 %v127
    %v211 = vunpack.c.l.b16 %v128
    %v212 = vunpack.c.h.b16 %v128
    %v213 = vunpack.c.l.b16 %v129
    %v214 = vunpack.c.h.b16 %v129
    %v215 = vunpack.c.l.b16 %v130
    %v216 = vunpack.c.h.b16 %v130
    %v217 = vunpack.c.l.b16 %v131
    %v218 = vunpack.c.h.b16 %v131
    %v219 = vunpack.c.l.b16 %v132
    %v220 = vunpack.c.h.b16 %v132
    %v221 = vunpack.c.l.b16 %v133
    %v222 = vunpack.c.h.b16 %v133
    %v223 = vunpack.c.l.b16 %v134
    %v224 = vunpack.c.h.b16 %v134
    %v225 = vpack.c.b16 %v201, %v193
    %v226 = vpack.c.b16 %v202, %v194
    %v227 = vpack.c.b16 %v203, %v195
    %v228 = vpack.c.b16 %v204, %v196
    %v229 = vpack.c.b16 %v205, %v197
    %v230 = vpack.c.b16 %v206, %v198
    %v231 = vpack.c.b16 %v207, %v199
    %v232 = vpack.c.b16 %v208, %v200
    %v233 = vpack.c.b16 %v217, %v209
    %v234 = vpack.c.b16 %v218, %v210
    %v235 = vpack.c.b16 %v219, %v211
    %v236 = vpack.c.b16 %v220, %v212
    %v237 = vpack.c.b16 %v221, %v213
    %v238 = vpack.c.b16 %v222, %v214
    %v239 = vpack.c.b16 %v223, %v215
    %v240 = vpack.c.b16 %v224, %v216
    %vm257 = vcmask 261120
    %v259 = vsel %vm257, %v135, 0
    %261 = vmatprep.subr.bf16.mxu0 %v226
    %262 = vmatpush1.bf16.msra.mxu0 %v225
    %263 = vmatprep.subr.bf16.mxu0 %v234
    %264 = vmatpush1.bf16.msra.mxu0 %v233
    %265 = vmatprep.subr.bf16.mxu0 0
    %266 = vmatpush1.bf16.msra.mxu0 0
    %267 = vmatprep.subr.bf16.mxu0 0
    %268 = vmatpush1.bf16.msra.mxu0 0
    %269 = vmatprep.subr.bf16.mxu0 0
    %270 = vmatpush1.bf16.msra.mxu0 0
    %271 = vmatprep.subr.bf16.mxu0 0
    %272 = vmatpush1.bf16.msra.mxu0 0
    %273 = vmatprep.subr.bf16.mxu0 0
    %274 = vmatpush1.bf16.msra.mxu0 0
    %275 = vmatprep.subr.bf16.mxu0 0
    %276 = vmatpush1.bf16.msra.mxu0 0
    %277 = vmatprep.subr.bf16.mxu0 0
    %278 = vmatpush1.bf16.msra.mxu0 0
    %279 = vmatprep.subr.bf16.mxu0 0
    %280 = vmatpush1.bf16.msra.mxu0 0
    %281 = vmatprep.subr.bf16.mxu0 0
    %282 = vmatpush1.bf16.msra.mxu0 0
    %283 = vmatprep.subr.bf16.mxu0 0
    %284 = vmatpush1.bf16.msra.mxu0 0
    %285 = vmatprep.subr.bf16.mxu0 0
    %286 = vmatpush1.bf16.msra.mxu0 0
    %287 = vmatprep.subr.bf16.mxu0 0
    %288 = vmatpush1.bf16.msra.mxu0 0
    %289 = vmatprep.subr.bf16.mxu0 0
    %290 = vmatpush1.bf16.msra.mxu0 0
    %291 = vmatprep.subr.bf16.mxu0 0
    %292 = vmatpush1.bf16.msra.mxu0 0
    %293 = vmatprep.mubr.bf16.mxu0 0
    %294 = vmatmul.mubr.bf16.gmra.mrb[0].mxu0 %v259
    %v295 = vpop.f32.mrb[0].mxu0
    %v296 = vadd.f32 %v140, %v295
    %v297 = vpop.f32.mrb[0].mxu0
    %v298 = vadd.f32 %v144, %v297
    %v299 = vpop.f32.mrb[0].mxu0
    %v300 = vpop.f32.mrb[0].mxu0
    %301 = vdwg.mxu0
    %302 = vmatprep.subr.bf16.mxu0 %v228
    %303 = vmatpush1.bf16.msra.mxu0 %v227
    %304 = vmatprep.subr.bf16.mxu0 %v236
    %305 = vmatpush1.bf16.msra.mxu0 %v235
    %306 = vmatprep.subr.bf16.mxu0 0
    %307 = vmatpush1.bf16.msra.mxu0 0
    %308 = vmatprep.subr.bf16.mxu0 0
    %309 = vmatpush1.bf16.msra.mxu0 0
    %310 = vmatprep.subr.bf16.mxu0 0
    %311 = vmatpush1.bf16.msra.mxu0 0
    %312 = vmatprep.subr.bf16.mxu0 0
    %313 = vmatpush1.bf16.msra.mxu0 0
    %314 = vmatprep.subr.bf16.mxu0 0
    %315 = vmatpush1.bf16.msra.mxu0 0
    %316 = vmatprep.subr.bf16.mxu0 0
    %317 = vmatpush1.bf16.msra.mxu0 0
    %318 = vmatprep.subr.bf16.mxu0 0
    %319 = vmatpush1.bf16.msra.mxu0 0
    %320 = vmatprep.subr.bf16.mxu0 0
    %321 = vmatpush1.bf16.msra.mxu0 0
    %322 = vmatprep.subr.bf16.mxu0 0
    %323 = vmatpush1.bf16.msra.mxu0 0
    %324 = vmatprep.subr.bf16.mxu0 0
    %325 = vmatpush1.bf16.msra.mxu0 0
    %326 = vmatprep.subr.bf16.mxu0 0
    %327 = vmatpush1.bf16.msra.mxu0 0
    %328 = vmatprep.subr.bf16.mxu0 0
    %329 = vmatpush1.bf16.msra.mxu0 0
    %330 = vmatprep.subr.bf16.mxu0 0
    %331 = vmatpush1.bf16.msra.mxu0 0
    %332 = vmatprep.subr.bf16.mxu0 0
    %333 = vmatpush1.bf16.msra.mxu0 0
    %334 = vmatprep.mubr.bf16.mxu0 0
    %335 = vmatmul.mubr.bf16.gmra.mrb[0].mxu0 %v259
    %v336 = vpop.f32.mrb[0].mxu0
    %v337 = vadd.f32 %v148, %v336
    %v338 = vpop.f32.mrb[0].mxu0
    %v339 = vadd.f32 %v152, %v338
    %v340 = vpop.f32.mrb[0].mxu0
    %v341 = vpop.f32.mrb[0].mxu0
    %342 = vdwg.mxu0
    %343 = vmatprep.subr.bf16.mxu0 %v230
    %344 = vmatpush1.bf16.msra.mxu0 %v229
    %345 = vmatprep.subr.bf16.mxu0 %v238
    %346 = vmatpush1.bf16.msra.mxu0 %v237
    %347 = vmatprep.subr.bf16.mxu0 0
    %348 = vmatpush1.bf16.msra.mxu0 0
    %349 = vmatprep.subr.bf16.mxu0 0
    %350 = vmatpush1.bf16.msra.mxu0 0
    %351 = vmatprep.subr.bf16.mxu0 0
    %352 = vmatpush1.bf16.msra.mxu0 0
    %353 = vmatprep.subr.bf16.mxu0 0
    %354 = vmatpush1.bf16.msra.mxu0 0
    %355 = vmatprep.subr.bf16.mxu0 0
    %356 = vmatpush1.bf16.msra.mxu0 0
    %357 = vmatprep.subr.bf16.mxu0 0
    %358 = vmatpush1.bf16.msra.mxu0 0
    %359 = vmatprep.subr.bf16.mxu0 0
    %360 = vmatpush1.bf16.msra.mxu0 0
    %361 = vmatprep.subr.bf16.mxu0 0
    %362 = vmatpush1.bf16.msra.mxu0 0
    %363 = vmatprep.subr.bf16.mxu0 0
    %364 = vmatpush1.bf16.msra.mxu0 0
    %365 = vmatprep.subr.bf16.mxu0 0
    %366 = vmatpush1.bf16.msra.mxu0 0
    %367 = vmatprep.subr.bf16.mxu0 0
    %368 = vmatpush1.bf16.msra.mxu0 0
    %369 = vmatprep.subr.bf16.mxu0 0
    %370 = vmatpush1.bf16.msra.mxu0 0
    %371 = vmatprep.subr.bf16.mxu0 0
    %372 = vmatpush1.bf16.msra.mxu0 0
    %373 = vmatprep.subr.bf16.mxu0 0
    %374 = vmatpush1.bf16.msra.mxu0 0
    %375 = vmatprep.mubr.bf16.mxu0 0
    %376 = vmatmul.mubr.bf16.gmra.mrb[0].mxu0 %v259
    %v377 = vpop.f32.mrb[0].mxu0
    %v378 = vadd.f32 %v156, %v377
    %v379 = vpop.f32.mrb[0].mxu0
    %v380 = vadd.f32 %v160, %v379
    %v381 = vpop.f32.mrb[0].mxu0
    %v382 = vpop.f32.mrb[0].mxu0
    %383 = vdwg.mxu0
    %384 = vmatprep.subr.bf16.mxu0 %v232
    %385 = vmatpush1.bf16.msra.mxu0 %v231
    %386 = vmatprep.subr.bf16.mxu0 %v240
    %387 = vmatpush1.bf16.msra.mxu0 %v239
    %388 = vmatprep.subr.bf16.mxu0 0
    %389 = vmatpush1.bf16.msra.mxu0 0
    %390 = vmatprep.subr.bf16.mxu0 0
    %391 = vmatpush1.bf16.msra.mxu0 0
    %392 = vmatprep.subr.bf16.mxu0 0
    %393 = vmatpush1.bf16.msra.mxu0 0
    %394 = vmatprep.subr.bf16.mxu0 0
    %395 = vmatpush1.bf16.msra.mxu0 0
    %396 = vmatprep.subr.bf16.mxu0 0
    %397 = vmatpush1.bf16.msra.mxu0 0
    %398 = vmatprep.subr.bf16.mxu0 0
    %399 = vmatpush1.bf16.msra.mxu0 0
    %400 = vmatprep.subr.bf16.mxu0 0
    %401 = vmatpush1.bf16.msra.mxu0 0
    %402 = vmatprep.subr.bf16.mxu0 0
    %403 = vmatpush1.bf16.msra.mxu0 0
    %404 = vmatprep.subr.bf16.mxu0 0
    %405 = vmatpush1.bf16.msra.mxu0 0
    %406 = vmatprep.subr.bf16.mxu0 0
    %407 = vmatpush1.bf16.msra.mxu0 0
    %408 = vmatprep.subr.bf16.mxu0 0
    %409 = vmatpush1.bf16.msra.mxu0 0
    %410 = vmatprep.subr.bf16.mxu0 0
    %411 = vmatpush1.bf16.msra.mxu0 0
    %412 = vmatprep.subr.bf16.mxu0 0
    %413 = vmatpush1.bf16.msra.mxu0 0
    %414 = vmatprep.subr.bf16.mxu0 0
    %415 = vmatpush1.bf16.msra.mxu0 0
    %416 = vmatprep.mubr.bf16.mxu0 0
    %417 = vmatmul.mubr.bf16.gmra.mrb[0].mxu0 %v259
    %v418 = vpop.f32.mrb[0].mxu0
    %v419 = vadd.f32 %v164, %v418
    %v420 = vpop.f32.mrb[0].mxu0
    %v421 = vadd.f32 %v168, %v420
    %v422 = vpop.f32.mrb[0].mxu0
    %v423 = vpop.f32.mrb[0].mxu0
    %424 = vdwg.mxu0
    %v425 = vmax.f32 %v296, 0.0
    %v426 = vmax.f32 %v298, 0.0
    %v427 = vmax.f32 %v337, 0.0
    %v428 = vmax.f32 %v339, 0.0
    %v429 = vmax.f32 %v378, 0.0
    %v430 = vmax.f32 %v380, 0.0
    %v431 = vmax.f32 %v419, 0.0
    %v432 = vmax.f32 %v421, 0.0
    %v433 = vld [vmem:[#allocation6] sm:$0xff]
    %v434 = vld [vmem:[#allocation6 + $0x8] sm:$0xff]
    %v435 = vld [vmem:[#allocation6 + $0x10] sm:$0xff]
    %v436 = vld [vmem:[#allocation6 + $0x18] sm:$0xff]
    %v437 = vld [vmem:[#allocation6 + $0x20] sm:$0xff]
    %v438 = vld [vmem:[#allocation6 + $0x28] sm:$0xff]
    %v439 = vld [vmem:[#allocation6 + $0x30] sm:$0xff]
    %v440 = vld [vmem:[#allocation6 + $0x38] sm:$0xff]
    %v441 = vld [vmem:[#allocation6 + $0x40] sm:$0xff]
    %v442 = vld [vmem:[#allocation6 + $0x48] sm:$0xff]
    %v443 = vld [vmem:[#allocation6 + $0x50] sm:$0xff]
    %v444 = vld [vmem:[#allocation6 + $0x58] sm:$0xff]
    %v445 = vld [vmem:[#allocation6 + $0x60] sm:$0xff]
    %v446 = vld [vmem:[#allocation6 + $0x68] sm:$0xff]
    %v447 = vld [vmem:[#allocation6 + $0x70] sm:$0xff]
    %v448 = vld [vmem:[#allocation6 + $0x78] sm:$0xff]
    %v449 = vld [vmem:[#allocation6 + $0x80] sm:$0xff]
    %v450 = vld [vmem:[#allocation6 + $0x88] sm:$0xff]
    %v451 = vld [vmem:[#allocation6 + $0x90] sm:$0xff]
    %v452 = vld [vmem:[#allocation6 + $0x98] sm:$0xff]
    %v453 = vld [vmem:[#allocation6 + $0xa0] sm:$0xff]
    %v454 = vld [vmem:[#allocation6 + $0xa8] sm:$0xff]
    %v455 = vld [vmem:[#allocation6 + $0xb0] sm:$0xff]
    %v456 = vld [vmem:[#allocation6 + $0xb8] sm:$0xff]
    %v457 = vld [vmem:[#allocation6 + $0xc0] sm:$0xff]
    %v458 = vld [vmem:[#allocation6 + $0xc8] sm:$0xff]
    %v459 = vld [vmem:[#allocation6 + $0xd0] sm:$0xff]
    %v460 = vld [vmem:[#allocation6 + $0xd8] sm:$0xff]
    %v461 = vld [vmem:[#allocation6 + $0xe0] sm:$0xff]
    %v462 = vld [vmem:[#allocation6 + $0xe8] sm:$0xff]
    %v463 = vld [vmem:[#allocation6 + $0xf0] sm:$0xff]
    %v464 = vld [vmem:[#allocation6 + $0xf8] sm:$0xff]
    %v465 = vld [vmem:[#allocation6 + $0x100] sm:$0xff]
    %v466 = vld [vmem:[#allocation6 + $0x108] sm:$0xff]
    %v467 = vld [vmem:[#allocation6 + $0x110] sm:$0xff]
    %v468 = vld [vmem:[#allocation6 + $0x118] sm:$0xff]
    %v469 = vld [vmem:[#allocation6 + $0x120] sm:$0xff]
    %v470 = vld [vmem:[#allocation6 + $0x128] sm:$0xff]
    %v471 = vld [vmem:[#allocation6 + $0x130] sm:$0xff]
    %v472 = vld [vmem:[#allocation6 + $0x138] sm:$0xff]
    %v473 = vld [vmem:[#allocation6 + $0x140] sm:$0xff]
    %v474 = vld [vmem:[#allocation6 + $0x148] sm:$0xff]
    %v475 = vld [vmem:[#allocation6 + $0x150] sm:$0xff]
    %v476 = vld [vmem:[#allocation6 + $0x158] sm:$0xff]
    %v477 = vld [vmem:[#allocation6 + $0x160] sm:$0xff]
    %v478 = vld [vmem:[#allocation6 + $0x168] sm:$0xff]
    %v479 = vld [vmem:[#allocation6 + $0x170] sm:$0xff]
    %v480 = vld [vmem:[#allocation6 + $0x178] sm:$0xff]
    %v481 = vld [vmem:[#allocation6 + $0x180] sm:$0xff]
    %v482 = vld [vmem:[#allocation6 + $0x188] sm:$0xff]
    %v483 = vld [vmem:[#allocation6 + $0x190] sm:$0xff]
    %v484 = vld [vmem:[#allocation6 + $0x198] sm:$0xff]
    %v485 = vld [vmem:[#allocation6 + $0x1a0] sm:$0xff]
    %v486 = vld [vmem:[#allocation6 + $0x1a8] sm:$0xff]
    %v487 = vld [vmem:[#allocation6 + $0x1b0] sm:$0xff]
    %v488 = vld [vmem:[#allocation6 + $0x1b8] sm:$0xff]
    %v489 = vld [vmem:[#allocation6 + $0x1c0] sm:$0xff]
    %v490 = vld [vmem:[#allocation6 + $0x1c8] sm:$0xff]
    %v491 = vld [vmem:[#allocation6 + $0x1d0] sm:$0xff]
    %v492 = vld [vmem:[#allocation6 + $0x1d8] sm:$0xff]
    %v493 = vld [vmem:[#allocation6 + $0x1e0] sm:$0xff]
    %v494 = vld [vmem:[#allocation6 + $0x1e8] sm:$0xff]
    %v495 = vld [vmem:[#allocation6 + $0x1f0] sm:$0xff]
    %v496 = vld [vmem:[#allocation6 + $0x1f8] sm:$0xff]
    %v497 = vld [vmem:[#allocation6 + $0x200] sm:$0xff]
    %v498 = vld [vmem:[#allocation6 + $0x208] sm:$0xff]
    %v499 = vld [vmem:[#allocation6 + $0x210] sm:$0xff]
    %v500 = vld [vmem:[#allocation6 + $0x218] sm:$0xff]
    %v501 = vld [vmem:[#allocation6 + $0x220] sm:$0xff]
    %v502 = vld [vmem:[#allocation6 + $0x228] sm:$0xff]
    %v503 = vld [vmem:[#allocation6 + $0x230] sm:$0xff]
    %v504 = vld [vmem:[#allocation6 + $0x238] sm:$0xff]
    %v505 = vld [vmem:[#allocation6 + $0x240] sm:$0xff]
    %v506 = vld [vmem:[#allocation6 + $0x248] sm:$0xff]
    %v507 = vld [vmem:[#allocation6 + $0x250] sm:$0xff]
    %v508 = vld [vmem:[#allocation6 + $0x258] sm:$0xff]
    %v509 = vld [vmem:[#allocation6 + $0x260] sm:$0xff]
    %v510 = vld [vmem:[#allocation6 + $0x268] sm:$0xff]
    %v511 = vld [vmem:[#allocation6 + $0x270] sm:$0xff]
    %v512 = vld [vmem:[#allocation6 + $0x278] sm:$0xff]
    %v513 = vld [vmem:[#allocation6 + $0x280] sm:$0xff]
    %v514 = vld [vmem:[#allocation6 + $0x288] sm:$0xff]
    %v515 = vld [vmem:[#allocation6 + $0x290] sm:$0xff]
    %v516 = vld [vmem:[#allocation6 + $0x298] sm:$0xff]
    %v517 = vld [vmem:[#allocation6 + $0x2a0] sm:$0xff]
    %v518 = vld [vmem:[#allocation6 + $0x2a8] sm:$0xff]
    %v519 = vld [vmem:[#allocation6 + $0x2b0] sm:$0xff]
    %v520 = vld [vmem:[#allocation6 + $0x2b8] sm:$0xff]
    %v521 = vld [vmem:[#allocation6 + $0x2c0] sm:$0xff]
    %v522 = vld [vmem:[#allocation6 + $0x2c8] sm:$0xff]
    %v523 = vld [vmem:[#allocation6 + $0x2d0] sm:$0xff]
    %v524 = vld [vmem:[#allocation6 + $0x2d8] sm:$0xff]
    %v525 = vld [vmem:[#allocation6 + $0x2e0] sm:$0xff]
    %v526 = vld [vmem:[#allocation6 + $0x2e8] sm:$0xff]
    %v527 = vld [vmem:[#allocation6 + $0x2f0] sm:$0xff]
    %v528 = vld [vmem:[#allocation6 + $0x2f8] sm:$0xff]
    %v529 = vld [vmem:[#allocation6 + $0x300] sm:$0xff]
    %v530 = vld [vmem:[#allocation6 + $0x308] sm:$0xff]
    %v531 = vld [vmem:[#allocation6 + $0x310] sm:$0xff]
    %v532 = vld [vmem:[#allocation6 + $0x318] sm:$0xff]
    %v533 = vld [vmem:[#allocation6 + $0x320] sm:$0xff]
    %v534 = vld [vmem:[#allocation6 + $0x328] sm:$0xff]
    %v535 = vld [vmem:[#allocation6 + $0x330] sm:$0xff]
    %v536 = vld [vmem:[#allocation6 + $0x338] sm:$0xff]
    %v537 = vld [vmem:[#allocation6 + $0x340] sm:$0xff]
    %v538 = vld [vmem:[#allocation6 + $0x348] sm:$0xff]
    %v539 = vld [vmem:[#allocation6 + $0x350] sm:$0xff]
    %v540 = vld [vmem:[#allocation6 + $0x358] sm:$0xff]
    %v541 = vld [vmem:[#allocation6 + $0x360] sm:$0xff]
    %v542 = vld [vmem:[#allocation6 + $0x368] sm:$0xff]
    %v543 = vld [vmem:[#allocation6 + $0x370] sm:$0xff]
    %v544 = vld [vmem:[#allocation6 + $0x378] sm:$0xff]
    %v545 = vld [vmem:[#allocation6 + $0x380] sm:$0xff]
    %v546 = vld [vmem:[#allocation6 + $0x388] sm:$0xff]
    %v547 = vld [vmem:[#allocation6 + $0x390] sm:$0xff]
    %v548 = vld [vmem:[#allocation6 + $0x398] sm:$0xff]
    %v549 = vld [vmem:[#allocation6 + $0x3a0] sm:$0xff]
    %v550 = vld [vmem:[#allocation6 + $0x3a8] sm:$0xff]
    %v551 = vld [vmem:[#allocation6 + $0x3b0] sm:$0xff]
    %v552 = vld [vmem:[#allocation6 + $0x3b8] sm:$0xff]
    %v553 = vld [vmem:[#allocation6 + $0x3c0] sm:$0xff]
    %v554 = vld [vmem:[#allocation6 + $0x3c8] sm:$0xff]
    %v555 = vld [vmem:[#allocation6 + $0x3d0] sm:$0xff]
    %v556 = vld [vmem:[#allocation6 + $0x3d8] sm:$0xff]
    %v557 = vld [vmem:[#allocation6 + $0x3e0] sm:$0xff]
    %v558 = vld [vmem:[#allocation6 + $0x3e8] sm:$0xff]
    %v559 = vld [vmem:[#allocation6 + $0x3f0] sm:$0xff]
    %v560 = vld [vmem:[#allocation6 + $0x3f8] sm:$0xff]
    %v561 = vld [vmem:[#allocation6 + $0x400] sm:$0xff]
    %v562 = vld [vmem:[#allocation6 + $0x408] sm:$0xff]
    %v563 = vld [vmem:[#allocation6 + $0x410] sm:$0xff]
    %v564 = vld [vmem:[#allocation6 + $0x418] sm:$0xff]
    %v565 = vld [vmem:[#allocation6 + $0x420] sm:$0xff]
    %v566 = vld [vmem:[#allocation6 + $0x428] sm:$0xff]
    %v567 = vld [vmem:[#allocation6 + $0x430] sm:$0xff]
    %v568 = vld [vmem:[#allocation6 + $0x438] sm:$0xff]
    %v569 = vld [vmem:[#allocation6 + $0x440] sm:$0xff]
    %v570 = vld [vmem:[#allocation6 + $0x448] sm:$0xff]
    %v571 = vld [vmem:[#allocation6 + $0x450] sm:$0xff]
    %v572 = vld [vmem:[#allocation6 + $0x458] sm:$0xff]
    %v573 = vld [vmem:[#allocation6 + $0x460] sm:$0xff]
    %v574 = vld [vmem:[#allocation6 + $0x468] sm:$0xff]
    %v575 = vld [vmem:[#allocation6 + $0x470] sm:$0xff]
    %v576 = vld [vmem:[#allocation6 + $0x478] sm:$0xff]
    %v577 = vld [vmem:[#allocation6 + $0x480] sm:$0xff]
    %v578 = vld [vmem:[#allocation6 + $0x488] sm:$0xff]
    %v579 = vld [vmem:[#allocation6 + $0x490] sm:$0xff]
    %v580 = vld [vmem:[#allocation6 + $0x498] sm:$0xff]
    %v581 = vld [vmem:[#allocation6 + $0x4a0] sm:$0xff]
    %v582 = vld [vmem:[#allocation6 + $0x4a8] sm:$0xff]
    %v583 = vld [vmem:[#allocation6 + $0x4b0] sm:$0xff]
    %v584 = vld [vmem:[#allocation6 + $0x4b8] sm:$0xff]
    %v585 = vld [vmem:[#allocation6 + $0x4c0] sm:$0xff]
    %v586 = vld [vmem:[#allocation6 + $0x4c8] sm:$0xff]
    %v587 = vld [vmem:[#allocation6 + $0x4d0] sm:$0xff]
    %v588 = vld [vmem:[#allocation6 + $0x4d8] sm:$0xff]
    %v589 = vld [vmem:[#allocation6 + $0x4e0] sm:$0xff]
    %v590 = vld [vmem:[#allocation6 + $0x4e8] sm:$0xff]
    %v591 = vld [vmem:[#allocation6 + $0x4f0] sm:$0xff]
    %v592 = vld [vmem:[#allocation6 + $0x4f8] sm:$0xff]
    %v593 = vld [vmem:[#allocation6 + $0x500] sm:$0xff]
    %v594 = vld [vmem:[#allocation6 + $0x508] sm:$0xff]
    %v595 = vld [vmem:[#allocation6 + $0x510] sm:$0xff]
    %v596 = vld [vmem:[#allocation6 + $0x518] sm:$0xff]
    %v597 = vld [vmem:[#allocation6 + $0x520] sm:$0xff]
    %v598 = vld [vmem:[#allocation6 + $0x528] sm:$0xff]
    %v599 = vld [vmem:[#allocation6 + $0x530] sm:$0xff]
    %v600 = vld [vmem:[#allocation6 + $0x538] sm:$0xff]
    %v601 = vld [vmem:[#allocation6 + $0x540] sm:$0xff]
    %v602 = vld [vmem:[#allocation6 + $0x548] sm:$0xff]
    %v603 = vld [vmem:[#allocation6 + $0x550] sm:$0xff]
    %v604 = vld [vmem:[#allocation6 + $0x558] sm:$0xff]
    %v605 = vld [vmem:[#allocation6 + $0x560] sm:$0xff]
    %v606 = vld [vmem:[#allocation6 + $0x568] sm:$0xff]
    %v607 = vld [vmem:[#allocation6 + $0x570] sm:$0xff]
    %v608 = vld [vmem:[#allocation6 + $0x578] sm:$0xff]
    %v609 = vld [vmem:[#allocation6 + $0x580] sm:$0xff]
    %v610 = vld [vmem:[#allocation6 + $0x588] sm:$0xff]
    %v611 = vld [vmem:[#allocation6 + $0x590] sm:$0xff]
    %v612 = vld [vmem:[#allocation6 + $0x598] sm:$0xff]
    %v613 = vld [vmem:[#allocation6 + $0x5a0] sm:$0xff]
    %v614 = vld [vmem:[#allocation6 + $0x5a8] sm:$0xff]
    %v615 = vld [vmem:[#allocation6 + $0x5b0] sm:$0xff]
    %v616 = vld [vmem:[#allocation6 + $0x5b8] sm:$0xff]
    %v617 = vld [vmem:[#allocation6 + $0x5c0] sm:$0xff]
    %v618 = vld [vmem:[#allocation6 + $0x5c8] sm:$0xff]
    %v619 = vld [vmem:[#allocation6 + $0x5d0] sm:$0xff]
    %v620 = vld [vmem:[#allocation6 + $0x5d8] sm:$0xff]
    %v621 = vld [vmem:[#allocation6 + $0x5e0] sm:$0xff]
    %v622 = vld [vmem:[#allocation6 + $0x5e8] sm:$0xff]
    %v623 = vld [vmem:[#allocation6 + $0x5f0] sm:$0xff]
    %v624 = vld [vmem:[#allocation6 + $0x5f8] sm:$0xff]
    %v625 = vld [vmem:[#allocation6 + $0x600] sm:$0xff]
    %v626 = vld [vmem:[#allocation6 + $0x608] sm:$0xff]
    %v627 = vld [vmem:[#allocation6 + $0x610] sm:$0xff]
    %v628 = vld [vmem:[#allocation6 + $0x618] sm:$0xff]
    %v629 = vld [vmem:[#allocation6 + $0x620] sm:$0xff]
    %v630 = vld [vmem:[#allocation6 + $0x628] sm:$0xff]
    %v631 = vld [vmem:[#allocation6 + $0x630] sm:$0xff]
    %v632 = vld [vmem:[#allocation6 + $0x638] sm:$0xff]
    %v633 = vld [vmem:[#allocation6 + $0x640] sm:$0xff]
    %v634 = vld [vmem:[#allocation6 + $0x648] sm:$0xff]
    %v635 = vld [vmem:[#allocation6 + $0x650] sm:$0xff]
    %v636 = vld [vmem:[#allocation6 + $0x658] sm:$0xff]
    %v637 = vld [vmem:[#allocation6 + $0x660] sm:$0xff]
    %v638 = vld [vmem:[#allocation6 + $0x668] sm:$0xff]
    %v639 = vld [vmem:[#allocation6 + $0x670] sm:$0xff]
    %v640 = vld [vmem:[#allocation6 + $0x678] sm:$0xff]
    %v641 = vld [vmem:[#allocation6 + $0x680] sm:$0xff]
    %v642 = vld [vmem:[#allocation6 + $0x688] sm:$0xff]
    %v643 = vld [vmem:[#allocation6 + $0x690] sm:$0xff]
    %v644 = vld [vmem:[#allocation6 + $0x698] sm:$0xff]
    %v645 = vld [vmem:[#allocation6 + $0x6a0] sm:$0xff]
    %v646 = vld [vmem:[#allocation6 + $0x6a8] sm:$0xff]
    %v647 = vld [vmem:[#allocation6 + $0x6b0] sm:$0xff]
    %v648 = vld [vmem:[#allocation6 + $0x6b8] sm:$0xff]
    %v649 = vld [vmem:[#allocation6 + $0x6c0] sm:$0xff]
    %v650 = vld [vmem:[#allocation6 + $0x6c8] sm:$0xff]
    %v651 = vld [vmem:[#allocation6 + $0x6d0] sm:$0xff]
    %v652 = vld [vmem:[#allocation6 + $0x6d8] sm:$0xff]
    %v653 = vld [vmem:[#allocation6 + $0x6e0] sm:$0xff]
    %v654 = vld [vmem:[#allocation6 + $0x6e8] sm:$0xff]
    %v655 = vld [vmem:[#allocation6 + $0x6f0] sm:$0xff]
    %v656 = vld [vmem:[#allocation6 + $0x6f8] sm:$0xff]
    %v657 = vld [vmem:[#allocation6 + $0x700] sm:$0xff]
    %v658 = vld [vmem:[#allocation6 + $0x708] sm:$0xff]
    %v659 = vld [vmem:[#allocation6 + $0x710] sm:$0xff]
    %v660 = vld [vmem:[#allocation6 + $0x718] sm:$0xff]
    %v661 = vld [vmem:[#allocation6 + $0x720] sm:$0xff]
    %v662 = vld [vmem:[#allocation6 + $0x728] sm:$0xff]
    %v663 = vld [vmem:[#allocation6 + $0x730] sm:$0xff]
    %v664 = vld [vmem:[#allocation6 + $0x738] sm:$0xff]
    %v665 = vld [vmem:[#allocation6 + $0x740] sm:$0xff]
    %v666 = vld [vmem:[#allocation6 + $0x748] sm:$0xff]
    %v667 = vld [vmem:[#allocation6 + $0x750] sm:$0xff]
    %v668 = vld [vmem:[#allocation6 + $0x758] sm:$0xff]
    %v669 = vld [vmem:[#allocation6 + $0x760] sm:$0xff]
    %v670 = vld [vmem:[#allocation6 + $0x768] sm:$0xff]
    %v671 = vld [vmem:[#allocation6 + $0x770] sm:$0xff]
    %v672 = vld [vmem:[#allocation6 + $0x778] sm:$0xff]
    %v673 = vld [vmem:[#allocation6 + $0x780] sm:$0xff]
    %v674 = vld [vmem:[#allocation6 + $0x788] sm:$0xff]
    %v675 = vld [vmem:[#allocation6 + $0x790] sm:$0xff]
    %v676 = vld [vmem:[#allocation6 + $0x798] sm:$0xff]
    %v677 = vld [vmem:[#allocation6 + $0x7a0] sm:$0xff]
    %v678 = vld [vmem:[#allocation6 + $0x7a8] sm:$0xff]
    %v679 = vld [vmem:[#allocation6 + $0x7b0] sm:$0xff]
    %v680 = vld [vmem:[#allocation6 + $0x7b8] sm:$0xff]
    %v681 = vld [vmem:[#allocation6 + $0x7c0] sm:$0xff]
    %v682 = vld [vmem:[#allocation6 + $0x7c8] sm:$0xff]
    %v683 = vld [vmem:[#allocation6 + $0x7d0] sm:$0xff]
    %v684 = vld [vmem:[#allocation6 + $0x7d8] sm:$0xff]
    %v685 = vld [vmem:[#allocation6 + $0x7e0] sm:$0xff]
    %v686 = vld [vmem:[#allocation6 + $0x7e8] sm:$0xff]
    %v687 = vld [vmem:[#allocation6 + $0x7f0] sm:$0xff]
    %v688 = vld [vmem:[#allocation6 + $0x7f8] sm:$0xff]
    %v689 = vpack.c.bf16 %v425, %v425
    %v690 = vpack.c.bf16 %v426, %v426
    %v691 = vpack.c.bf16 %v427, %v427
    %v692 = vpack.c.bf16 %v428, %v428
    %v693 = vpack.c.bf16 %v429, %v429
    %v694 = vpack.c.bf16 %v430, %v430
    %v695 = vpack.c.bf16 %v431, %v431
    %v696 = vpack.c.bf16 %v432, %v432
    %v698 = vlaneseq
    %v699 = vshrl.u32 %v698, 7
    %v700 = vsub.s32 0, %v699
    %v701 = vrot.slane %v113, %v700
    %v702 = vlaneseq
    %v703 = vshrl.u32 %v702, 7
    %v704 = vsub.s32 1, %v703
    %v705 = vrot.slane %v113, %v704
    %v706 = vlaneseq
    %v707 = vshrl.u32 %v706, 7
    %v708 = vsub.s32 2, %v707
    %v709 = vrot.slane %v113, %v708
    %v710 = vlaneseq
    %v711 = vshrl.u32 %v710, 7
    %v712 = vsub.s32 3, %v711
    %v713 = vrot.slane %v113, %v712
    %v974 = vunpack.c.l.b16 %v433
    %v975 = vunpack.c.h.b16 %v433
    %v976 = vunpack.c.l.b16 %v434
    %v977 = vunpack.c.h.b16 %v434
    %v978 = vunpack.c.l.b16 %v435
    %v979 = vunpack.c.h.b16 %v435
    %v980 = vunpack.c.l.b16 %v436
    %v981 = vunpack.c.h.b16 %v436
    %v982 = vunpack.c.l.b16 %v437
    %v983 = vunpack.c.h.b16 %v437
    %v984 = vunpack.c.l.b16 %v438
    %v985 = vunpack.c.h.b16 %v438
    %v986 = vunpack.c.l.b16 %v439
    %v987 = vunpack.c.h.b16 %v439
    %v988 = vunpack.c.l.b16 %v440
    %v989 = vunpack.c.h.b16 %v440
    %v990 = vunpack.c.l.b16 %v441
    %v991 = vunpack.c.h.b16 %v441
    %v992 = vunpack.c.l.b16 %v442
    %v993 = vunpack.c.h.b16 %v442
    %v994 = vunpack.c.l.b16 %v443
    %v995 = vunpack.c.h.b16 %v443
    %v996 = vunpack.c.l.b16 %v444
    %v997 = vunpack.c.h.b16 %v444
    %v998 = vunpack.c.l.b16 %v445
    %v999 = vunpack.c.h.b16 %v445
    %v1000 = vunpack.c.l.b16 %v446
    %v1001 = vunpack.c.h.b16 %v446
    %v1002 = vunpack.c.l.b16 %v447
    %v1003 = vunpack.c.h.b16 %v447
    %v1004 = vunpack.c.l.b16 %v448
    %v1005 = vunpack.c.h.b16 %v448
    %v1006 = vunpack.c.l.b16 %v449
    %v1007 = vunpack.c.h.b16 %v449
    %v1008 = vunpack.c.l.b16 %v450
    %v1009 = vunpack.c.h.b16 %v450
    %v1010 = vunpack.c.l.b16 %v451
    %v1011 = vunpack.c.h.b16 %v451
    %v1012 = vunpack.c.l.b16 %v452
    %v1013 = vunpack.c.h.b16 %v452
    %v1014 = vunpack.c.l.b16 %v453
    %v1015 = vunpack.c.h.b16 %v453
    %v1016 = vunpack.c.l.b16 %v454
    %v1017 = vunpack.c.h.b16 %v454
    %v1018 = vunpack.c.l.b16 %v455
    %v1019 = vunpack.c.h.b16 %v455
    %v1020 = vunpack.c.l.b16 %v456
    %v1021 = vunpack.c.h.b16 %v456
    %v1022 = vunpack.c.l.b16 %v457
    %v1023 = vunpack.c.h.b16 %v457
    %v1024 = vunpack.c.l.b16 %v458
    %v1025 = vunpack.c.h.b16 %v458
    %v1026 = vunpack.c.l.b16 %v459
    %v1027 = vunpack.c.h.b16 %v459
    %v1028 = vunpack.c.l.b16 %v460
    %v1029 = vunpack.c.h.b16 %v460
    %v1030 = vunpack.c.l.b16 %v461
    %v1031 = vunpack.c.h.b16 %v461
    %v1032 = vunpack.c.l.b16 %v462
    %v1033 = vunpack.c.h.b16 %v462
    %v1034 = vunpack.c.l.b16 %v463
    %v1035 = vunpack.c.h.b16 %v463
    %v1036 = vunpack.c.l.b16 %v464
    %v1037 = vunpack.c.h.b16 %v464
    %v1038 = vunpack.c.l.b16 %v465
    %v1039 = vunpack.c.h.b16 %v465
    %v1040 = vunpack.c.l.b16 %v466
    %v1041 = vunpack.c.h.b16 %v466
    %v1042 = vunpack.c.l.b16 %v467
    %v1043 = vunpack.c.h.b16 %v467
    %v1044 = vunpack.c.l.b16 %v468
    %v1045 = vunpack.c.h.b16 %v468
    %v1046 = vunpack.c.l.b16 %v469
    %v1047 = vunpack.c.h.b16 %v469
    %v1048 = vunpack.c.l.b16 %v470
    %v1049 = vunpack.c.h.b16 %v470
    %v1050 = vunpack.c.l.b16 %v471
    %v1051 = vunpack.c.h.b16 %v471
    %v1052 = vunpack.c.l.b16 %v472
    %v1053 = vunpack.c.h.b16 %v472
    %v1054 = vunpack.c.l.b16 %v473
    %v1055 = vunpack.c.h.b16 %v473
    %v1056 = vunpack.c.l.b16 %v474
    %v1057 = vunpack.c.h.b16 %v474
    %v1058 = vunpack.c.l.b16 %v475
    %v1059 = vunpack.c.h.b16 %v475
    %v1060 = vunpack.c.l.b16 %v476
    %v1061 = vunpack.c.h.b16 %v476
    %v1062 = vunpack.c.l.b16 %v477
    %v1063 = vunpack.c.h.b16 %v477
    %v1064 = vunpack.c.l.b16 %v478
    %v1065 = vunpack.c.h.b16 %v478
    %v1066 = vunpack.c.l.b16 %v479
    %v1067 = vunpack.c.h.b16 %v479
    %v1068 = vunpack.c.l.b16 %v480
    %v1069 = vunpack.c.h.b16 %v480
    %v1070 = vunpack.c.l.b16 %v481
    %v1071 = vunpack.c.h.b16 %v481
    %v1072 = vunpack.c.l.b16 %v482
    %v1073 = vunpack.c.h.b16 %v482
    %v1074 = vunpack.c.l.b16 %v483
    %v1075 = vunpack.c.h.b16 %v483
    %v1076 = vunpack.c.l.b16 %v484
    %v1077 = vunpack.c.h.b16 %v484
    %v1078 = vunpack.c.l.b16 %v485
    %v1079 = vunpack.c.h.b16 %v485
    %v1080 = vunpack.c.l.b16 %v486
    %v1081 = vunpack.c.h.b16 %v486
    %v1082 = vunpack.c.l.b16 %v487
    %v1083 = vunpack.c.h.b16 %v487
    %v1084 = vunpack.c.l.b16 %v488
    %v1085 = vunpack.c.h.b16 %v488
    %v1086 = vunpack.c.l.b16 %v489
    %v1087 = vunpack.c.h.b16 %v489
    %v1088 = vunpack.c.l.b16 %v490
    %v1089 = vunpack.c.h.b16 %v490
    %v1090 = vunpack.c.l.b16 %v491
    %v1091 = vunpack.c.h.b16 %v491
    %v1092 = vunpack.c.l.b16 %v492
    %v1093 = vunpack.c.h.b16 %v492
    %v1094 = vunpack.c.l.b16 %v493
    %v1095 = vunpack.c.h.b16 %v493
    %v1096 = vunpack.c.l.b16 %v494
    %v1097 = vunpack.c.h.b16 %v494
    %v1098 = vunpack.c.l.b16 %v495
    %v1099 = vunpack.c.h.b16 %v495
    %v1100 = vunpack.c.l.b16 %v496
    %v1101 = vunpack.c.h.b16 %v496
    %v1102 = vunpack.c.l.b16 %v497
    %v1103 = vunpack.c.h.b16 %v497
    %v1104 = vunpack.c.l.b16 %v498
    %v1105 = vunpack.c.h.b16 %v498
    %v1106 = vunpack.c.l.b16 %v499
    %v1107 = vunpack.c.h.b16 %v499
    %v1108 = vunpack.c.l.b16 %v500
    %v1109 = vunpack.c.h.b16 %v500
    %v1110 = vunpack.c.l.b16 %v501
    %v1111 = vunpack.c.h.b16 %v501
    %v1112 = vunpack.c.l.b16 %v502
    %v1113 = vunpack.c.h.b16 %v502
    %v1114 = vunpack.c.l.b16 %v503
    %v1115 = vunpack.c.h.b16 %v503
    %v1116 = vunpack.c.l.b16 %v504
    %v1117 = vunpack.c.h.b16 %v504
    %v1118 = vunpack.c.l.b16 %v505
    %v1119 = vunpack.c.h.b16 %v505
    %v1120 = vunpack.c.l.b16 %v506
    %v1121 = vunpack.c.h.b16 %v506
    %v1122 = vunpack.c.l.b16 %v507
    %v1123 = vunpack.c.h.b16 %v507
    %v1124 = vunpack.c.l.b16 %v508
    %v1125 = vunpack.c.h.b16 %v508
    %v1126 = vunpack.c.l.b16 %v509
    %v1127 = vunpack.c.h.b16 %v509
    %v1128 = vunpack.c.l.b16 %v510
    %v1129 = vunpack.c.h.b16 %v510
    %v1130 = vunpack.c.l.b16 %v511
    %v1131 = vunpack.c.h.b16 %v511
    %v1132 = vunpack.c.l.b16 %v512
    %v1133 = vunpack.c.h.b16 %v512
    %v1134 = vunpack.c.l.b16 %v513
    %v1135 = vunpack.c.h.b16 %v513
    %v1136 = vunpack.c.l.b16 %v514
    %v1137 = vunpack.c.h.b16 %v514
    %v1138 = vunpack.c.l.b16 %v515
    %v1139 = vunpack.c.h.b16 %v515
    %v1140 = vunpack.c.l.b16 %v516
    %v1141 = vunpack.c.h.b16 %v516
    %v1142 = vunpack.c.l.b16 %v517
    %v1143 = vunpack.c.h.b16 %v517
    %v1144 = vunpack.c.l.b16 %v518
    %v1145 = vunpack.c.h.b16 %v518
    %v1146 = vunpack.c.l.b16 %v519
    %v1147 = vunpack.c.h.b16 %v519
    %v1148 = vunpack.c.l.b16 %v520
    %v1149 = vunpack.c.h.b16 %v520
    %v1150 = vunpack.c.l.b16 %v521
    %v1151 = vunpack.c.h.b16 %v521
    %v1152 = vunpack.c.l.b16 %v522
    %v1153 = vunpack.c.h.b16 %v522
    %v1154 = vunpack.c.l.b16 %v523
    %v1155 = vunpack.c.h.b16 %v523
    %v1156 = vunpack.c.l.b16 %v524
    %v1157 = vunpack.c.h.b16 %v524
    %v1158 = vunpack.c.l.b16 %v525
    %v1159 = vunpack.c.h.b16 %v525
    %v1160 = vunpack.c.l.b16 %v526
    %v1161 = vunpack.c.h.b16 %v526
    %v1162 = vunpack.c.l.b16 %v527
    %v1163 = vunpack.c.h.b16 %v527
    %v1164 = vunpack.c.l.b16 %v528
    %v1165 = vunpack.c.h.b16 %v528
    %v1166 = vunpack.c.l.b16 %v529
    %v1167 = vunpack.c.h.b16 %v529
    %v1168 = vunpack.c.l.b16 %v530
    %v1169 = vunpack.c.h.b16 %v530
    %v1170 = vunpack.c.l.b16 %v531
    %v1171 = vunpack.c.h.b16 %v531
    %v1172 = vunpack.c.l.b16 %v532
    %v1173 = vunpack.c.h.b16 %v532
    %v1174 = vunpack.c.l.b16 %v533
    %v1175 = vunpack.c.h.b16 %v533
    %v1176 = vunpack.c.l.b16 %v534
    %v1177 = vunpack.c.h.b16 %v534
    %v1178 = vunpack.c.l.b16 %v535
    %v1179 = vunpack.c.h.b16 %v535
    %v1180 = vunpack.c.l.b16 %v536
    %v1181 = vunpack.c.h.b16 %v536
    %v1182 = vunpack.c.l.b16 %v537
    %v1183 = vunpack.c.h.b16 %v537
    %v1184 = vunpack.c.l.b16 %v538
    %v1185 = vunpack.c.h.b16 %v538
    %v1186 = vunpack.c.l.b16 %v539
    %v1187 = vunpack.c.h.b16 %v539
    %v1188 = vunpack.c.l.b16 %v540
    %v1189 = vunpack.c.h.b16 %v540
    %v1190 = vunpack.c.l.b16 %v541
    %v1191 = vunpack.c.h.b16 %v541
    %v1192 = vunpack.c.l.b16 %v542
    %v1193 = vunpack.c.h.b16 %v542
    %v1194 = vunpack.c.l.b16 %v543
    %v1195 = vunpack.c.h.b16 %v543
    %v1196 = vunpack.c.l.b16 %v544
    %v1197 = vunpack.c.h.b16 %v544
    %v1198 = vunpack.c.l.b16 %v545
    %v1199 = vunpack.c.h.b16 %v545
    %v1200 = vunpack.c.l.b16 %v546
    %v1201 = vunpack.c.h.b16 %v546
    %v1202 = vunpack.c.l.b16 %v547
    %v1203 = vunpack.c.h.b16 %v547
    %v1204 = vunpack.c.l.b16 %v548
    %v1205 = vunpack.c.h.b16 %v548
    %v1206 = vunpack.c.l.b16 %v549
    %v1207 = vunpack.c.h.b16 %v549
    %v1208 = vunpack.c.l.b16 %v550
    %v1209 = vunpack.c.h.b16 %v550
    %v1210 = vunpack.c.l.b16 %v551
    %v1211 = vunpack.c.h.b16 %v551
    %v1212 = vunpack.c.l.b16 %v552
    %v1213 = vunpack.c.h.b16 %v552
    %v1214 = vunpack.c.l.b16 %v553
    %v1215 = vunpack.c.h.b16 %v553
    %v1216 = vunpack.c.l.b16 %v554
    %v1217 = vunpack.c.h.b16 %v554
    %v1218 = vunpack.c.l.b16 %v555
    %v1219 = vunpack.c.h.b16 %v555
    %v1220 = vunpack.c.l.b16 %v556
    %v1221 = vunpack.c.h.b16 %v556
    %v1222 = vunpack.c.l.b16 %v557
    %v1223 = vunpack.c.h.b16 %v557
    %v1224 = vunpack.c.l.b16 %v558
    %v1225 = vunpack.c.h.b16 %v558
    %v1226 = vunpack.c.l.b16 %v559
    %v1227 = vunpack.c.h.b16 %v559
    %v1228 = vunpack.c.l.b16 %v560
    %v1229 = vunpack.c.h.b16 %v560
    %v1230 = vunpack.c.l.b16 %v561
    %v1231 = vunpack.c.h.b16 %v561
    %v1232 = vunpack.c.l.b16 %v562
    %v1233 = vunpack.c.h.b16 %v562
    %v1234 = vunpack.c.l.b16 %v563
    %v1235 = vunpack.c.h.b16 %v563
    %v1236 = vunpack.c.l.b16 %v564
    %v1237 = vunpack.c.h.b16 %v564
    %v1238 = vunpack.c.l.b16 %v565
    %v1239 = vunpack.c.h.b16 %v565
    %v1240 = vunpack.c.l.b16 %v566
    %v1241 = vunpack.c.h.b16 %v566
    %v1242 = vunpack.c.l.b16 %v567
    %v1243 = vunpack.c.h.b16 %v567
    %v1244 = vunpack.c.l.b16 %v568
    %v1245 = vunpack.c.h.b16 %v568
    %v1246 = vunpack.c.l.b16 %v569
    %v1247 = vunpack.c.h.b16 %v569
    %v1248 = vunpack.c.l.b16 %v570
    %v1249 = vunpack.c.h.b16 %v570
    %v1250 = vunpack.c.l.b16 %v571
    %v1251 = vunpack.c.h.b16 %v571
    %v1252 = vunpack.c.l.b16 %v572
    %v1253 = vunpack.c.h.b16 %v572
    %v1254 = vunpack.c.l.b16 %v573
    %v1255 = vunpack.c.h.b16 %v573
    %v1256 = vunpack.c.l.b16 %v574
    %v1257 = vunpack.c.h.b16 %v574
    %v1258 = vunpack.c.l.b16 %v575
    %v1259 = vunpack.c.h.b16 %v575
    %v1260 = vunpack.c.l.b16 %v576
    %v1261 = vunpack.c.h.b16 %v576
    %v1262 = vunpack.c.l.b16 %v577
    %v1263 = vunpack.c.h.b16 %v577
    %v1264 = vunpack.c.l.b16 %v578
    %v1265 = vunpack.c.h.b16 %v578
    %v1266 = vunpack.c.l.b16 %v579
    %v1267 = vunpack.c.h.b16 %v579
    %v1268 = vunpack.c.l.b16 %v580
    %v1269 = vunpack.c.h.b16 %v580
    %v1270 = vunpack.c.l.b16 %v581
    %v1271 = vunpack.c.h.b16 %v581
    %v1272 = vunpack.c.l.b16 %v582
    %v1273 = vunpack.c.h.b16 %v582
    %v1274 = vunpack.c.l.b16 %v583
    %v1275 = vunpack.c.h.b16 %v583
    %v1276 = vunpack.c.l.b16 %v584
    %v1277 = vunpack.c.h.b16 %v584
    %v1278 = vunpack.c.l.b16 %v585
    %v1279 = vunpack.c.h.b16 %v585
    %v1280 = vunpack.c.l.b16 %v586
    %v1281 = vunpack.c.h.b16 %v586
    %v1282 = vunpack.c.l.b16 %v587
    %v1283 = vunpack.c.h.b16 %v587
    %v1284 = vunpack.c.l.b16 %v588
    %v1285 = vunpack.c.h.b16 %v588
    %v1286 = vunpack.c.l.b16 %v589
    %v1287 = vunpack.c.h.b16 %v589
    %v1288 = vunpack.c.l.b16 %v590
    %v1289 = vunpack.c.h.b16 %v590
    %v1290 = vunpack.c.l.b16 %v591
    %v1291 = vunpack.c.h.b16 %v591
    %v1292 = vunpack.c.l.b16 %v592
    %v1293 = vunpack.c.h.b16 %v592
    %v1294 = vunpack.c.l.b16 %v593
    %v1295 = vunpack.c.h.b16 %v593
    %v1296 = vunpack.c.l.b16 %v594
    %v1297 = vunpack.c.h.b16 %v594
    %v1298 = vunpack.c.l.b16 %v595
    %v1299 = vunpack.c.h.b16 %v595
    %v1300 = vunpack.c.l.b16 %v596
    %v1301 = vunpack.c.h.b16 %v596
    %v1302 = vunpack.c.l.b16 %v597
    %v1303 = vunpack.c.h.b16 %v597
    %v1304 = vunpack.c.l.b16 %v598
    %v1305 = vunpack.c.h.b16 %v598
    %v1306 = vunpack.c.l.b16 %v599
    %v1307 = vunpack.c.h.b16 %v599
    %v1308 = vunpack.c.l.b16 %v600
    %v1309 = vunpack.c.h.b16 %v600
    %v1310 = vunpack.c.l.b16 %v601
    %v1311 = vunpack.c.h.b16 %v601
    %v1312 = vunpack.c.l.b16 %v602
    %v1313 = vunpack.c.h.b16 %v602
    %v1314 = vunpack.c.l.b16 %v603
    %v1315 = vunpack.c.h.b16 %v603
    %v1316 = vunpack.c.l.b16 %v604
    %v1317 = vunpack.c.h.b16 %v604
    %v1318 = vunpack.c.l.b16 %v605
    %v1319 = vunpack.c.h.b16 %v605
    %v1320 = vunpack.c.l.b16 %v606
    %v1321 = vunpack.c.h.b16 %v606
    %v1322 = vunpack.c.l.b16 %v607
    %v1323 = vunpack.c.h.b16 %v607
    %v1324 = vunpack.c.l.b16 %v608
    %v1325 = vunpack.c.h.b16 %v608
    %v1326 = vunpack.c.l.b16 %v609
    %v1327 = vunpack.c.h.b16 %v609
    %v1328 = vunpack.c.l.b16 %v610
    %v1329 = vunpack.c.h.b16 %v610
    %v1330 = vunpack.c.l.b16 %v611
    %v1331 = vunpack.c.h.b16 %v611
    %v1332 = vunpack.c.l.b16 %v612
    %v1333 = vunpack.c.h.b16 %v612
    %v1334 = vunpack.c.l.b16 %v613
    %v1335 = vunpack.c.h.b16 %v613
    %v1336 = vunpack.c.l.b16 %v614
    %v1337 = vunpack.c.h.b16 %v614
    %v1338 = vunpack.c.l.b16 %v615
    %v1339 = vunpack.c.h.b16 %v615
    %v1340 = vunpack.c.l.b16 %v616
    %v1341 = vunpack.c.h.b16 %v616
    %v1342 = vunpack.c.l.b16 %v617
    %v1343 = vunpack.c.h.b16 %v617
    %v1344 = vunpack.c.l.b16 %v618
    %v1345 = vunpack.c.h.b16 %v618
    %v1346 = vunpack.c.l.b16 %v619
    %v1347 = vunpack.c.h.b16 %v619
    %v1348 = vunpack.c.l.b16 %v620
    %v1349 = vunpack.c.h.b16 %v620
    %v1350 = vunpack.c.l.b16 %v621
    %v1351 = vunpack.c.h.b16 %v621
    %v1352 = vunpack.c.l.b16 %v622
    %v1353 = vunpack.c.h.b16 %v622
    %v1354 = vunpack.c.l.b16 %v623
    %v1355 = vunpack.c.h.b16 %v623
    %v1356 = vunpack.c.l.b16 %v624
    %v1357 = vunpack.c.h.b16 %v624
    %v1358 = vunpack.c.l.b16 %v625
    %v1359 = vunpack.c.h.b16 %v625
    %v1360 = vunpack.c.l.b16 %v626
    %v1361 = vunpack.c.h.b16 %v626
    %v1362 = vunpack.c.l.b16 %v627
    %v1363 = vunpack.c.h.b16 %v627
    %v1364 = vunpack.c.l.b16 %v628
    %v1365 = vunpack.c.h.b16 %v628
    %v1366 = vunpack.c.l.b16 %v629
    %v1367 = vunpack.c.h.b16 %v629
    %v1368 = vunpack.c.l.b16 %v630
    %v1369 = vunpack.c.h.b16 %v630
    %v1370 = vunpack.c.l.b16 %v631
    %v1371 = vunpack.c.h.b16 %v631
    %v1372 = vunpack.c.l.b16 %v632
    %v1373 = vunpack.c.h.b16 %v632
    %v1374 = vunpack.c.l.b16 %v633
    %v1375 = vunpack.c.h.b16 %v633
    %v1376 = vunpack.c.l.b16 %v634
    %v1377 = vunpack.c.h.b16 %v634
    %v1378 = vunpack.c.l.b16 %v635
    %v1379 = vunpack.c.h.b16 %v635
    %v1380 = vunpack.c.l.b16 %v636
    %v1381 = vunpack.c.h.b16 %v636
    %v1382 = vunpack.c.l.b16 %v637
    %v1383 = vunpack.c.h.b16 %v637
    %v1384 = vunpack.c.l.b16 %v638
    %v1385 = vunpack.c.h.b16 %v638
    %v1386 = vunpack.c.l.b16 %v639
    %v1387 = vunpack.c.h.b16 %v639
    %v1388 = vunpack.c.l.b16 %v640
    %v1389 = vunpack.c.h.b16 %v640
    %v1390 = vunpack.c.l.b16 %v641
    %v1391 = vunpack.c.h.b16 %v641
    %v1392 = vunpack.c.l.b16 %v642
    %v1393 = vunpack.c.h.b16 %v642
    %v1394 = vunpack.c.l.b16 %v643
    %v1395 = vunpack.c.h.b16 %v643
    %v1396 = vunpack.c.l.b16 %v644
    %v1397 = vunpack.c.h.b16 %v644
    %v1398 = vunpack.c.l.b16 %v645
    %v1399 = vunpack.c.h.b16 %v645
    %v1400 = vunpack.c.l.b16 %v646
    %v1401 = vunpack.c.h.b16 %v646
    %v1402 = vunpack.c.l.b16 %v647
    %v1403 = vunpack.c.h.b16 %v647
    %v1404 = vunpack.c.l.b16 %v648
    %v1405 = vunpack.c.h.b16 %v648
    %v1406 = vunpack.c.l.b16 %v649
    %v1407 = vunpack.c.h.b16 %v649
    %v1408 = vunpack.c.l.b16 %v650
    %v1409 = vunpack.c.h.b16 %v650
    %v1410 = vunpack.c.l.b16 %v651
    %v1411 = vunpack.c.h.b16 %v651
    %v1412 = vunpack.c.l.b16 %v652
    %v1413 = vunpack.c.h.b16 %v652
    %v1414 = vunpack.c.l.b16 %v653
    %v1415 = vunpack.c.h.b16 %v653
    %v1416 = vunpack.c.l.b16 %v654
    %v1417 = vunpack.c.h.b16 %v654
    %v1418 = vunpack.c.l.b16 %v655
    %v1419 = vunpack.c.h.b16 %v655
    %v1420 = vunpack.c.l.b16 %v656
    %v1421 = vunpack.c.h.b16 %v656
    %v1422 = vunpack.c.l.b16 %v657
    %v1423 = vunpack.c.h.b16 %v657
    %v1424 = vunpack.c.l.b16 %v658
    %v1425 = vunpack.c.h.b16 %v658
    %v1426 = vunpack.c.l.b16 %v659
    %v1427 = vunpack.c.h.b16 %v659
    %v1428 = vunpack.c.l.b16 %v660
    %v1429 = vunpack.c.h.b16 %v660
    %v1430 = vunpack.c.l.b16 %v661
    %v1431 = vunpack.c.h.b16 %v661
    %v1432 = vunpack.c.l.b16 %v662
    %v1433 = vunpack.c.h.b16 %v662
    %v1434 = vunpack.c.l.b16 %v663
    %v1435 = vunpack.c.h.b16 %v663
    %v1436 = vunpack.c.l.b16 %v664
    %v1437 = vunpack.c.h.b16 %v664
    %v1438 = vunpack.c.l.b16 %v665
    %v1439 = vunpack.c.h.b16 %v665
    %v1440 = vunpack.c.l.b16 %v666
    %v1441 = vunpack.c.h.b16 %v666
    %v1442 = vunpack.c.l.b16 %v667
    %v1443 = vunpack.c.h.b16 %v667
    %v1444 = vunpack.c.l.b16 %v668
    %v1445 = vunpack.c.h.b16 %v668
    %v1446 = vunpack.c.l.b16 %v669
    %v1447 = vunpack.c.h.b16 %v669
    %v1448 = vunpack.c.l.b16 %v670
    %v1449 = vunpack.c.h.b16 %v670
    %v1450 = vunpack.c.l.b16 %v671
    %v1451 = vunpack.c.h.b16 %v671
    %v1452 = vunpack.c.l.b16 %v672
    %v1453 = vunpack.c.h.b16 %v672
    %v1454 = vunpack.c.l.b16 %v673
    %v1455 = vunpack.c.h.b16 %v673
    %v1456 = vunpack.c.l.b16 %v674
    %v1457 = vunpack.c.h.b16 %v674
    %v1458 = vunpack.c.l.b16 %v675
    %v1459 = vunpack.c.h.b16 %v675
    %v1460 = vunpack.c.l.b16 %v676
    %v1461 = vunpack.c.h.b16 %v676
    %v1462 = vunpack.c.l.b16 %v677
    %v1463 = vunpack.c.h.b16 %v677
    %v1464 = vunpack.c.l.b16 %v678
    %v1465 = vunpack.c.h.b16 %v678
    %v1466 = vunpack.c.l.b16 %v679
    %v1467 = vunpack.c.h.b16 %v679
    %v1468 = vunpack.c.l.b16 %v680
    %v1469 = vunpack.c.h.b16 %v680
    %v1470 = vunpack.c.l.b16 %v681
    %v1471 = vunpack.c.h.b16 %v681
    %v1472 = vunpack.c.l.b16 %v682
    %v1473 = vunpack.c.h.b16 %v682
    %v1474 = vunpack.c.l.b16 %v683
    %v1475 = vunpack.c.h.b16 %v683
    %v1476 = vunpack.c.l.b16 %v684
    %v1477 = vunpack.c.h.b16 %v684
    %v1478 = vunpack.c.l.b16 %v685
    %v1479 = vunpack.c.h.b16 %v685
    %v1480 = vunpack.c.l.b16 %v686
    %v1481 = vunpack.c.h.b16 %v686
    %v1482 = vunpack.c.l.b16 %v687
    %v1483 = vunpack.c.h.b16 %v687
    %v1484 = vunpack.c.l.b16 %v688
    %v1485 = vunpack.c.h.b16 %v688
    %v1486 = vpack.c.b16 %v978, %v974
    %v1487 = vpack.c.b16 %v979, %v975
    %v1488 = vpack.c.b16 %v980, %v976
    %v1489 = vpack.c.b16 %v981, %v977
    %v1490 = vpack.c.b16 %v986, %v982
    %v1491 = vpack.c.b16 %v987, %v983
    %v1492 = vpack.c.b16 %v988, %v984
    %v1493 = vpack.c.b16 %v989, %v985
    %v1494 = vpack.c.b16 %v994, %v990
    %v1495 = vpack.c.b16 %v995, %v991
    %v1496 = vpack.c.b16 %v996, %v992
    %v1497 = vpack.c.b16 %v997, %v993
    %v1498 = vpack.c.b16 %v1002, %v998
    %v1499 = vpack.c.b16 %v1003, %v999
    %v1500 = vpack.c.b16 %v1004, %v1000
    %v1501 = vpack.c.b16 %v1005, %v1001
    %v1502 = vpack.c.b16 %v1010, %v1006
    %v1503 = vpack.c.b16 %v1011, %v1007
    %v1504 = vpack.c.b16 %v1012, %v1008
    %v1505 = vpack.c.b16 %v1013, %v1009
    %v1506 = vpack.c.b16 %v1018, %v1014
    %v1507 = vpack.c.b16 %v1019, %v1015
    %v1508 = vpack.c.b16 %v1020, %v1016
    %v1509 = vpack.c.b16 %v1021, %v1017
    %v1510 = vpack.c.b16 %v1026, %v1022
    %v1511 = vpack.c.b16 %v1027, %v1023
    %v1512 = vpack.c.b16 %v1028, %v1024
    %v1513 = vpack.c.b16 %v1029, %v1025
    %v1514 = vpack.c.b16 %v1034, %v1030
    %v1515 = vpack.c.b16 %v1035, %v1031
    %v1516 = vpack.c.b16 %v1036, %v1032
    %v1517 = vpack.c.b16 %v1037, %v1033
    %v1518 = vpack.c.b16 %v1042, %v1038
    %v1519 = vpack.c.b16 %v1043, %v1039
    %v1520 = vpack.c.b16 %v1044, %v1040
    %v1521 = vpack.c.b16 %v1045, %v1041
    %v1522 = vpack.c.b16 %v1050, %v1046
    %v1523 = vpack.c.b16 %v1051, %v1047
    %v1524 = vpack.c.b16 %v1052, %v1048
    %v1525 = vpack.c.b16 %v1053, %v1049
    %v1526 = vpack.c.b16 %v1058, %v1054
    %v1527 = vpack.c.b16 %v1059, %v1055
    %v1528 = vpack.c.b16 %v1060, %v1056
    %v1529 = vpack.c.b16 %v1061, %v1057
    %v1530 = vpack.c.b16 %v1066, %v1062
    %v1531 = vpack.c.b16 %v1067, %v1063
    %v1532 = vpack.c.b16 %v1068, %v1064
    %v1533 = vpack.c.b16 %v1069, %v1065
    %v1534 = vpack.c.b16 %v1074, %v1070
    %v1535 = vpack.c.b16 %v1075, %v1071
    %v1536 = vpack.c.b16 %v1076, %v1072
    %v1537 = vpack.c.b16 %v1077, %v1073
    %v1538 = vpack.c.b16 %v1082, %v1078
    %v1539 = vpack.c.b16 %v1083, %v1079
    %v1540 = vpack.c.b16 %v1084, %v1080
    %v1541 = vpack.c.b16 %v1085, %v1081
    %v1542 = vpack.c.b16 %v1090, %v1086
    %v1543 = vpack.c.b16 %v1091, %v1087
    %v1544 = vpack.c.b16 %v1092, %v1088
    %v1545 = vpack.c.b16 %v1093, %v1089
    %v1546 = vpack.c.b16 %v1098, %v1094
    %v1547 = vpack.c.b16 %v1099, %v1095
    %v1548 = vpack.c.b16 %v1100, %v1096
    %v1549 = vpack.c.b16 %v1101, %v1097
    %v1550 = vpack.c.b16 %v1106, %v1102
    %v1551 = vpack.c.b16 %v1107, %v1103
    %v1552 = vpack.c.b16 %v1108, %v1104
    %v1553 = vpack.c.b16 %v1109, %v1105
    %v1554 = vpack.c.b16 %v1114, %v1110
    %v1555 = vpack.c.b16 %v1115, %v1111
    %v1556 = vpack.c.b16 %v1116, %v1112
    %v1557 = vpack.c.b16 %v1117, %v1113
    %v1558 = vpack.c.b16 %v1122, %v1118
    %v1559 = vpack.c.b16 %v1123, %v1119
    %v1560 = vpack.c.b16 %v1124, %v1120
    %v1561 = vpack.c.b16 %v1125, %v1121
    %v1562 = vpack.c.b16 %v1130, %v1126
    %v1563 = vpack.c.b16 %v1131, %v1127
    %v1564 = vpack.c.b16 %v1132, %v1128
    %v1565 = vpack.c.b16 %v1133, %v1129
    %v1566 = vpack.c.b16 %v1138, %v1134
    %v1567 = vpack.c.b16 %v1139, %v1135
    %v1568 = vpack.c.b16 %v1140, %v1136
    %v1569 = vpack.c.b16 %v1141, %v1137
    %v1570 = vpack.c.b16 %v1146, %v1142
    %v1571 = vpack.c.b16 %v1147, %v1143
    %v1572 = vpack.c.b16 %v1148, %v1144
    %v1573 = vpack.c.b16 %v1149, %v1145
    %v1574 = vpack.c.b16 %v1154, %v1150
    %v1575 = vpack.c.b16 %v1155, %v1151
    %v1576 = vpack.c.b16 %v1156, %v1152
    %v1577 = vpack.c.b16 %v1157, %v1153
    %v1578 = vpack.c.b16 %v1162, %v1158
    %v1579 = vpack.c.b16 %v1163, %v1159
    %v1580 = vpack.c.b16 %v1164, %v1160
    %v1581 = vpack.c.b16 %v1165, %v1161
    %v1582 = vpack.c.b16 %v1170, %v1166
    %v1583 = vpack.c.b16 %v1171, %v1167
    %v1584 = vpack.c.b16 %v1172, %v1168
    %v1585 = vpack.c.b16 %v1173, %v1169
    %v1586 = vpack.c.b16 %v1178, %v1174
    %v1587 = vpack.c.b16 %v1179, %v1175
    %v1588 = vpack.c.b16 %v1180, %v1176
    %v1589 = vpack.c.b16 %v1181, %v1177
    %v1590 = vpack.c.b16 %v1186, %v1182
    %v1591 = vpack.c.b16 %v1187, %v1183
    %v1592 = vpack.c.b16 %v1188, %v1184
    %v1593 = vpack.c.b16 %v1189, %v1185
    %v1594 = vpack.c.b16 %v1194, %v1190
    %v1595 = vpack.c.b16 %v1195, %v1191
    %v1596 = vpack.c.b16 %v1196, %v1192
    %v1597 = vpack.c.b16 %v1197, %v1193
    %v1598 = vpack.c.b16 %v1202, %v1198
    %v1599 = vpack.c.b16 %v1203, %v1199
    %v1600 = vpack.c.b16 %v1204, %v1200
    %v1601 = vpack.c.b16 %v1205, %v1201
    %v1602 = vpack.c.b16 %v1210, %v1206
    %v1603 = vpack.c.b16 %v1211, %v1207
    %v1604 = vpack.c.b16 %v1212, %v1208
    %v1605 = vpack.c.b16 %v1213, %v1209
    %v1606 = vpack.c.b16 %v1218, %v1214
    %v1607 = vpack.c.b16 %v1219, %v1215
    %v1608 = vpack.c.b16 %v1220, %v1216
    %v1609 = vpack.c.b16 %v1221, %v1217
    %v1610 = vpack.c.b16 %v1226, %v1222
    %v1611 = vpack.c.b16 %v1227, %v1223
    %v1612 = vpack.c.b16 %v1228, %v1224
    %v1613 = vpack.c.b16 %v1229, %v1225
    %v1614 = vpack.c.b16 %v1234, %v1230
    %v1615 = vpack.c.b16 %v1235, %v1231
    %v1616 = vpack.c.b16 %v1236, %v1232
    %v1617 = vpack.c.b16 %v1237, %v1233
    %v1618 = vpack.c.b16 %v1242, %v1238
    %v1619 = vpack.c.b16 %v1243, %v1239
    %v1620 = vpack.c.b16 %v1244, %v1240
    %v1621 = vpack.c.b16 %v1245, %v1241
    %v1622 = vpack.c.b16 %v1250, %v1246
    %v1623 = vpack.c.b16 %v1251, %v1247
    %v1624 = vpack.c.b16 %v1252, %v1248
    %v1625 = vpack.c.b16 %v1253, %v1249
    %v1626 = vpack.c.b16 %v1258, %v1254
    %v1627 = vpack.c.b16 %v1259, %v1255
    %v1628 = vpack.c.b16 %v1260, %v1256
    %v1629 = vpack.c.b16 %v1261, %v1257
    %v1630 = vpack.c.b16 %v1266, %v1262
    %v1631 = vpack.c.b16 %v1267, %v1263
    %v1632 = vpack.c.b16 %v1268, %v1264
    %v1633 = vpack.c.b16 %v1269, %v1265
    %v1634 = vpack.c.b16 %v1274, %v1270
    %v1635 = vpack.c.b16 %v1275, %v1271
    %v1636 = vpack.c.b16 %v1276, %v1272
    %v1637 = vpack.c.b16 %v1277, %v1273
    %v1638 = vpack.c.b16 %v1282, %v1278
    %v1639 = vpack.c.b16 %v1283, %v1279
    %v1640 = vpack.c.b16 %v1284, %v1280
    %v1641 = vpack.c.b16 %v1285, %v1281
    %v1642 = vpack.c.b16 %v1290, %v1286
    %v1643 = vpack.c.b16 %v1291, %v1287
    %v1644 = vpack.c.b16 %v1292, %v1288
    %v1645 = vpack.c.b16 %v1293, %v1289
    %v1646 = vpack.c.b16 %v1298, %v1294
    %v1647 = vpack.c.b16 %v1299, %v1295
    %v1648 = vpack.c.b16 %v1300, %v1296
    %v1649 = vpack.c.b16 %v1301, %v1297
    %v1650 = vpack.c.b16 %v1306, %v1302
    %v1651 = vpack.c.b16 %v1307, %v1303
    %v1652 = vpack.c.b16 %v1308, %v1304
    %v1653 = vpack.c.b16 %v1309, %v1305
    %v1654 = vpack.c.b16 %v1314, %v1310
    %v1655 = vpack.c.b16 %v1315, %v1311
    %v1656 = vpack.c.b16 %v1316, %v1312
    %v1657 = vpack.c.b16 %v1317, %v1313
    %v1658 = vpack.c.b16 %v1322, %v1318
    %v1659 = vpack.c.b16 %v1323, %v1319
    %v1660 = vpack.c.b16 %v1324, %v1320
    %v1661 = vpack.c.b16 %v1325, %v1321
    %v1662 = vpack.c.b16 %v1330, %v1326
    %v1663 = vpack.c.b16 %v1331, %v1327
    %v1664 = vpack.c.b16 %v1332, %v1328
    %v1665 = vpack.c.b16 %v1333, %v1329
    %v1666 = vpack.c.b16 %v1338, %v1334
    %v1667 = vpack.c.b16 %v1339, %v1335
    %v1668 = vpack.c.b16 %v1340, %v1336
    %v1669 = vpack.c.b16 %v1341, %v1337
    %v1670 = vpack.c.b16 %v1346, %v1342
    %v1671 = vpack.c.b16 %v1347, %v1343
    %v1672 = vpack.c.b16 %v1348, %v1344
    %v1673 = vpack.c.b16 %v1349, %v1345
    %v1674 = vpack.c.b16 %v1354, %v1350
    %v1675 = vpack.c.b16 %v1355, %v1351
    %v1676 = vpack.c.b16 %v1356, %v1352
    %v1677 = vpack.c.b16 %v1357, %v1353
    %v1678 = vpack.c.b16 %v1362, %v1358
    %v1679 = vpack.c.b16 %v1363, %v1359
    %v1680 = vpack.c.b16 %v1364, %v1360
    %v1681 = vpack.c.b16 %v1365, %v1361
    %v1682 = vpack.c.b16 %v1370, %v1366
    %v1683 = vpack.c.b16 %v1371, %v1367
    %v1684 = vpack.c.b16 %v1372, %v1368
    %v1685 = vpack.c.b16 %v1373, %v1369
    %v1686 = vpack.c.b16 %v1378, %v1374
    %v1687 = vpack.c.b16 %v1379, %v1375
    %v1688 = vpack.c.b16 %v1380, %v1376
    %v1689 = vpack.c.b16 %v1381, %v1377
    %v1690 = vpack.c.b16 %v1386, %v1382
    %v1691 = vpack.c.b16 %v1387, %v1383
    %v1692 = vpack.c.b16 %v1388, %v1384
    %v1693 = vpack.c.b16 %v1389, %v1385
    %v1694 = vpack.c.b16 %v1394, %v1390
    %v1695 = vpack.c.b16 %v1395, %v1391
    %v1696 = vpack.c.b16 %v1396, %v1392
    %v1697 = vpack.c.b16 %v1397, %v1393
    %v1698 = vpack.c.b16 %v1402, %v1398
    %v1699 = vpack.c.b16 %v1403, %v1399
    %v1700 = vpack.c.b16 %v1404, %v1400
    %v1701 = vpack.c.b16 %v1405, %v1401
    %v1702 = vpack.c.b16 %v1410, %v1406
    %v1703 = vpack.c.b16 %v1411, %v1407
    %v1704 = vpack.c.b16 %v1412, %v1408
    %v1705 = vpack.c.b16 %v1413, %v1409
    %v1706 = vpack.c.b16 %v1418, %v1414
    %v1707 = vpack.c.b16 %v1419, %v1415
    %v1708 = vpack.c.b16 %v1420, %v1416
    %v1709 = vpack.c.b16 %v1421, %v1417
    %v1710 = vpack.c.b16 %v1426, %v1422
    %v1711 = vpack.c.b16 %v1427, %v1423
    %v1712 = vpack.c.b16 %v1428, %v1424
    %v1713 = vpack.c.b16 %v1429, %v1425
    %v1714 = vpack.c.b16 %v1434, %v1430
    %v1715 = vpack.c.b16 %v1435, %v1431
    %v1716 = vpack.c.b16 %v1436, %v1432
    %v1717 = vpack.c.b16 %v1437, %v1433
    %v1718 = vpack.c.b16 %v1442, %v1438
    %v1719 = vpack.c.b16 %v1443, %v1439
    %v1720 = vpack.c.b16 %v1444, %v1440
    %v1721 = vpack.c.b16 %v1445, %v1441
    %v1722 = vpack.c.b16 %v1450, %v1446
    %v1723 = vpack.c.b16 %v1451, %v1447
    %v1724 = vpack.c.b16 %v1452, %v1448
    %v1725 = vpack.c.b16 %v1453, %v1449
    %v1726 = vpack.c.b16 %v1458, %v1454
    %v1727 = vpack.c.b16 %v1459, %v1455
    %v1728 = vpack.c.b16 %v1460, %v1456
    %v1729 = vpack.c.b16 %v1461, %v1457
    %v1730 = vpack.c.b16 %v1466, %v1462
    %v1731 = vpack.c.b16 %v1467, %v1463
    %v1732 = vpack.c.b16 %v1468, %v1464
    %v1733 = vpack.c.b16 %v1469, %v1465
    %v1734 = vpack.c.b16 %v1474, %v1470
    %v1735 = vpack.c.b16 %v1475, %v1471
    %v1736 = vpack.c.b16 %v1476, %v1472
    %v1737 = vpack.c.b16 %v1477, %v1473
    %v1738 = vpack.c.b16 %v1482, %v1478
    %v1739 = vpack.c.b16 %v1483, %v1479
    %v1740 = vpack.c.b16 %v1484, %v1480
    %v1741 = vpack.c.b16 %v1485, %v1481
    %1998 = vmatprep.subr.bf16.mxu0 %v1487
    %1999 = vmatpush1.bf16.msra.mxu0 %v1486
    %2000 = vmatprep.subr.bf16.mxu0 %v1491
    %2001 = vmatpush1.bf16.msra.mxu0 %v1490
    %2002 = vmatprep.subr.bf16.mxu0 %v1495
    %2003 = vmatpush1.bf16.msra.mxu0 %v1494
    %2004 = vmatprep.subr.bf16.mxu0 %v1499
    %2005 = vmatpush1.bf16.msra.mxu0 %v1498
    %2006 = vmatprep.subr.bf16.mxu0 %v1503
    %2007 = vmatpush1.bf16.msra.mxu0 %v1502
    %2008 = vmatprep.subr.bf16.mxu0 %v1507
    %2009 = vmatpush1.bf16.msra.mxu0 %v1506
    %2010 = vmatprep.subr.bf16.mxu0 %v1511
    %2011 = vmatpush1.bf16.msra.mxu0 %v1510
    %2012 = vmatprep.subr.bf16.mxu0 %v1515
    %2013 = vmatpush1.bf16.msra.mxu0 %v1514
    %2014 = vmatprep.subr.bf16.mxu0 %v1519
    %2015 = vmatpush1.bf16.msra.mxu0 %v1518
    %2016 = vmatprep.subr.bf16.mxu0 %v1523
    %2017 = vmatpush1.bf16.msra.mxu0 %v1522
    %2018 = vmatprep.subr.bf16.mxu0 %v1527
    %2019 = vmatpush1.bf16.msra.mxu0 %v1526
    %2020 = vmatprep.subr.bf16.mxu0 %v1531
    %2021 = vmatpush1.bf16.msra.mxu0 %v1530
    %2022 = vmatprep.subr.bf16.mxu0 %v1535
    %2023 = vmatpush1.bf16.msra.mxu0 %v1534
    %2024 = vmatprep.subr.bf16.mxu0 %v1539
    %2025 = vmatpush1.bf16.msra.mxu0 %v1538
    %2026 = vmatprep.subr.bf16.mxu0 %v1543
    %2027 = vmatpush1.bf16.msra.mxu0 %v1542
    %2028 = vmatprep.subr.bf16.mxu0 %v1547
    %2029 = vmatpush1.bf16.msra.mxu0 %v1546
    %2030 = vmatprep.mubr.bf16.mxu0 %v690
    %2031 = vmatmul.mubr.bf16.gmra.mrb[0].mxu0 %v689
    %v2032 = vpop.f32.mrb[0].mxu0
    %v2033 = vadd.f32 %v701, %v2032
    %v2034 = vpop.f32.mrb[0].mxu0
    %v2035 = vadd.f32 %v705, %v2034
    %v2036 = vpop.f32.mrb[0].mxu0
    %v2037 = vpop.f32.mrb[0].mxu0
    %2038 = vdwg.mxu0
    %2039 = vmatprep.subr.bf16.mxu0 %v1551
    %2040 = vmatpush1.bf16.msra.mxu0 %v1550
    %2041 = vmatprep.subr.bf16.mxu0 %v1555
    %2042 = vmatpush1.bf16.msra.mxu0 %v1554
    %2043 = vmatprep.subr.bf16.mxu0 %v1559
    %2044 = vmatpush1.bf16.msra.mxu0 %v1558
    %2045 = vmatprep.subr.bf16.mxu0 %v1563
    %2046 = vmatpush1.bf16.msra.mxu0 %v1562
    %2047 = vmatprep.subr.bf16.mxu0 %v1567
    %2048 = vmatpush1.bf16.msra.mxu0 %v1566
    %2049 = vmatprep.subr.bf16.mxu0 %v1571
    %2050 = vmatpush1.bf16.msra.mxu0 %v1570
    %2051 = vmatprep.subr.bf16.mxu0 %v1575
    %2052 = vmatpush1.bf16.msra.mxu0 %v1574
    %2053 = vmatprep.subr.bf16.mxu0 %v1579
    %2054 = vmatpush1.bf16.msra.mxu0 %v1578
    %2055 = vmatprep.subr.bf16.mxu0 %v1583
    %2056 = vmatpush1.bf16.msra.mxu0 %v1582
    %2057 = vmatprep.subr.bf16.mxu0 %v1587
    %2058 = vmatpush1.bf16.msra.mxu0 %v1586
    %2059 = vmatprep.subr.bf16.mxu0 %v1591
    %2060 = vmatpush1.bf16.msra.mxu0 %v1590
    %2061 = vmatprep.subr.bf16.mxu0 %v1595
    %2062 = vmatpush1.bf16.msra.mxu0 %v1594
    %2063 = vmatprep.subr.bf16.mxu0 %v1599
    %2064 = vmatpush1.bf16.msra.mxu0 %v1598
    %2065 = vmatprep.subr.bf16.mxu0 %v1603
    %2066 = vmatpush1.bf16.msra.mxu0 %v1602
    %2067 = vmatprep.subr.bf16.mxu0 %v1607
    %2068 = vmatpush1.bf16.msra.mxu0 %v1606
    %2069 = vmatprep.subr.bf16.mxu0 %v1611
    %2070 = vmatpush1.bf16.msra.mxu0 %v1610
    %2071 = vmatprep.mubr.bf16.mxu0 %v692
    %2072 = vmatmul.mubr.bf16.gmra.mrb[0].mxu0 %v691
    %v2073 = vpop.f32.mrb[0].mxu0
    %v2074 = vadd.f32 %v2033, %v2073
    %v2075 = vpop.f32.mrb[0].mxu0
    %v2076 = vadd.f32 %v2035, %v2075
    %v2077 = vpop.f32.mrb[0].mxu0
    %v2078 = vpop.f32.mrb[0].mxu0
    %2079 = vdwg.mxu0
    %2080 = vmatprep.subr.bf16.mxu0 %v1615
    %2081 = vmatpush1.bf16.msra.mxu0 %v1614
    %2082 = vmatprep.subr.bf16.mxu0 %v1619
    %2083 = vmatpush1.bf16.msra.mxu0 %v1618
    %2084 = vmatprep.subr.bf16.mxu0 %v1623
    %2085 = vmatpush1.bf16.msra.mxu0 %v1622
    %2086 = vmatprep.subr.bf16.mxu0 %v1627
    %2087 = vmatpush1.bf16.msra.mxu0 %v1626
    %2088 = vmatprep.subr.bf16.mxu0 %v1631
    %2089 = vmatpush1.bf16.msra.mxu0 %v1630
    %2090 = vmatprep.subr.bf16.mxu0 %v1635
    %2091 = vmatpush1.bf16.msra.mxu0 %v1634
    %2092 = vmatprep.subr.bf16.mxu0 %v1639
    %2093 = vmatpush1.bf16.msra.mxu0 %v1638
    %2094 = vmatprep.subr.bf16.mxu0 %v1643
    %2095 = vmatpush1.bf16.msra.mxu0 %v1642
    %2096 = vmatprep.subr.bf16.mxu0 %v1647
    %2097 = vmatpush1.bf16.msra.mxu0 %v1646
    %2098 = vmatprep.subr.bf16.mxu0 %v1651
    %2099 = vmatpush1.bf16.msra.mxu0 %v1650
    %2100 = vmatprep.subr.bf16.mxu0 %v1655
    %2101 = vmatpush1.bf16.msra.mxu0 %v1654
    %2102 = vmatprep.subr.bf16.mxu0 %v1659
    %2103 = vmatpush1.bf16.msra.mxu0 %v1658
    %2104 = vmatprep.subr.bf16.mxu0 %v1663
    %2105 = vmatpush1.bf16.msra.mxu0 %v1662
    %2106 = vmatprep.subr.bf16.mxu0 %v1667
    %2107 = vmatpush1.bf16.msra.mxu0 %v1666
    %2108 = vmatprep.subr.bf16.mxu0 %v1671
    %2109 = vmatpush1.bf16.msra.mxu0 %v1670
    %2110 = vmatprep.subr.bf16.mxu0 %v1675
    %2111 = vmatpush1.bf16.msra.mxu0 %v1674
    %2112 = vmatprep.mubr.bf16.mxu0 %v694
    %2113 = vmatmul.mubr.bf16.gmra.mrb[0].mxu0 %v693
    %v2114 = vpop.f32.mrb[0].mxu0
    %v2115 = vadd.f32 %v2074, %v2114
    %v2116 = vpop.f32.mrb[0].mxu0
    %v2117 = vadd.f32 %v2076, %v2116
    %v2118 = vpop.f32.mrb[0].mxu0
    %v2119 = vpop.f32.mrb[0].mxu0
    %2120 = vdwg.mxu0
    %2121 = vmatprep.subr.bf16.mxu0 %v1679
    %2122 = vmatpush1.bf16.msra.mxu0 %v1678
    %2123 = vmatprep.subr.bf16.mxu0 %v1683
    %2124 = vmatpush1.bf16.msra.mxu0 %v1682
    %2125 = vmatprep.subr.bf16.mxu0 %v1687
    %2126 = vmatpush1.bf16.msra.mxu0 %v1686
    %2127 = vmatprep.subr.bf16.mxu0 %v1691
    %2128 = vmatpush1.bf16.msra.mxu0 %v1690
    %2129 = vmatprep.subr.bf16.mxu0 %v1695
    %2130 = vmatpush1.bf16.msra.mxu0 %v1694
    %2131 = vmatprep.subr.bf16.mxu0 %v1699
    %2132 = vmatpush1.bf16.msra.mxu0 %v1698
    %2133 = vmatprep.subr.bf16.mxu0 %v1703
    %2134 = vmatpush1.bf16.msra.mxu0 %v1702
    %2135 = vmatprep.subr.bf16.mxu0 %v1707
    %2136 = vmatpush1.bf16.msra.mxu0 %v1706
    %2137 = vmatprep.subr.bf16.mxu0 %v1711
    %2138 = vmatpush1.bf16.msra.mxu0 %v1710
    %2139 = vmatprep.subr.bf16.mxu0 %v1715
    %2140 = vmatpush1.bf16.msra.mxu0 %v1714
    %2141 = vmatprep.subr.bf16.mxu0 %v1719
    %2142 = vmatpush1.bf16.msra.mxu0 %v1718
    %2143 = vmatprep.subr.bf16.mxu0 %v1723
    %2144 = vmatpush1.bf16.msra.mxu0 %v1722
    %2145 = vmatprep.subr.bf16.mxu0 %v1727
    %2146 = vmatpush1.bf16.msra.mxu0 %v1726
    %2147 = vmatprep.subr.bf16.mxu0 %v1731
    %2148 = vmatpush1.bf16.msra.mxu0 %v1730
    %2149 = vmatprep.subr.bf16.mxu0 %v1735
    %2150 = vmatpush1.bf16.msra.mxu0 %v1734
    %2151 = vmatprep.subr.bf16.mxu0 %v1739
    %2152 = vmatpush1.bf16.msra.mxu0 %v1738
    %2153 = vmatprep.mubr.bf16.mxu0 %v696
    %2154 = vmatmul.mubr.bf16.gmra.mrb[0].mxu0 %v695
    %v2155 = vpop.f32.mrb[0].mxu0
    %v2156 = vadd.f32 %v2115, %v2155
    %v2157 = vpop.f32.mrb[0].mxu0
    %v2158 = vadd.f32 %v2117, %v2157
    %v2159 = vpop.f32.mrb[0].mxu0
    %v2160 = vpop.f32.mrb[0].mxu0
    %2161 = vdwg.mxu0
    %2162 = vmatprep.subr.bf16.mxu0 %v1489
    %2163 = vmatpush1.bf16.msra.mxu0 %v1488
    %2164 = vmatprep.subr.bf16.mxu0 %v1493
    %2165 = vmatpush1.bf16.msra.mxu0 %v1492
    %2166 = vmatprep.subr.bf16.mxu0 %v1497
    %2167 = vmatpush1.bf16.msra.mxu0 %v1496
    %2168 = vmatprep.subr.bf16.mxu0 %v1501
    %2169 = vmatpush1.bf16.msra.mxu0 %v1500
    %2170 = vmatprep.subr.bf16.mxu0 %v1505
    %2171 = vmatpush1.bf16.msra.mxu0 %v1504
    %2172 = vmatprep.subr.bf16.mxu0 %v1509
    %2173 = vmatpush1.bf16.msra.mxu0 %v1508
    %2174 = vmatprep.subr.bf16.mxu0 %v1513
    %2175 = vmatpush1.bf16.msra.mxu0 %v1512
    %2176 = vmatprep.subr.bf16.mxu0 %v1517
    %2177 = vmatpush1.bf16.msra.mxu0 %v1516
    %2178 = vmatprep.subr.bf16.mxu0 %v1521
    %2179 = vmatpush1.bf16.msra.mxu0 %v1520
    %2180 = vmatprep.subr.bf16.mxu0 %v1525
    %2181 = vmatpush1.bf16.msra.mxu0 %v1524
    %2182 = vmatprep.subr.bf16.mxu0 %v1529
    %2183 = vmatpush1.bf16.msra.mxu0 %v1528
    %2184 = vmatprep.subr.bf16.mxu0 %v1533
    %2185 = vmatpush1.bf16.msra.mxu0 %v1532
    %2186 = vmatprep.subr.bf16.mxu0 %v1537
    %2187 = vmatpush1.bf16.msra.mxu0 %v1536
    %2188 = vmatprep.subr.bf16.mxu0 %v1541
    %2189 = vmatpush1.bf16.msra.mxu0 %v1540
    %2190 = vmatprep.subr.bf16.mxu0 %v1545
    %2191 = vmatpush1.bf16.msra.mxu0 %v1544
    %2192 = vmatprep.subr.bf16.mxu0 %v1549
    %2193 = vmatpush1.bf16.msra.mxu0 %v1548
    %2194 = vmatprep.mubr.bf16.mxu0 %v690
    %2195 = vmatmul.mubr.bf16.gmra.mrb[0].mxu0 %v689
    %v2196 = vpop.f32.mrb[0].mxu0
    %v2197 = vadd.f32 %v709, %v2196
    %v2198 = vpop.f32.mrb[0].mxu0
    %v2199 = vadd.f32 %v713, %v2198
    %v2200 = vpop.f32.mrb[0].mxu0
    %v2201 = vpop.f32.mrb[0].mxu0
    %2202 = vdwg.mxu0
    %2203 = vmatprep.subr.bf16.mxu0 %v1553
    %2204 = vmatpush1.bf16.msra.mxu0 %v1552
    %2205 = vmatprep.subr.bf16.mxu0 %v1557
    %2206 = vmatpush1.bf16.msra.mxu0 %v1556
    %2207 = vmatprep.subr.bf16.mxu0 %v1561
    %2208 = vmatpush1.bf16.msra.mxu0 %v1560
    %2209 = vmatprep.subr.bf16.mxu0 %v1565
    %2210 = vmatpush1.bf16.msra.mxu0 %v1564
    %2211 = vmatprep.subr.bf16.mxu0 %v1569
    %2212 = vmatpush1.bf16.msra.mxu0 %v1568
    %2213 = vmatprep.subr.bf16.mxu0 %v1573
    %2214 = vmatpush1.bf16.msra.mxu0 %v1572
    %2215 = vmatprep.subr.bf16.mxu0 %v1577
    %2216 = vmatpush1.bf16.msra.mxu0 %v1576
    %2217 = vmatprep.subr.bf16.mxu0 %v1581
    %2218 = vmatpush1.bf16.msra.mxu0 %v1580
    %2219 = vmatprep.subr.bf16.mxu0 %v1585
    %2220 = vmatpush1.bf16.msra.mxu0 %v1584
    %2221 = vmatprep.subr.bf16.mxu0 %v1589
    %2222 = vmatpush1.bf16.msra.mxu0 %v1588
    %2223 = vmatprep.subr.bf16.mxu0 %v1593
    %2224 = vmatpush1.bf16.msra.mxu0 %v1592
    %2225 = vmatprep.subr.bf16.mxu0 %v1597
    %2226 = vmatpush1.bf16.msra.mxu0 %v1596
    %2227 = vmatprep.subr.bf16.mxu0 %v1601
    %2228 = vmatpush1.bf16.msra.mxu0 %v1600
    %2229 = vmatprep.subr.bf16.mxu0 %v1605
    %2230 = vmatpush1.bf16.msra.mxu0 %v1604
    %2231 = vmatprep.subr.bf16.mxu0 %v1609
    %2232 = vmatpush1.bf16.msra.mxu0 %v1608
    %2233 = vmatprep.subr.bf16.mxu0 %v1613
    %2234 = vmatpush1.bf16.msra.mxu0 %v1612
    %2235 = vmatprep.mubr.bf16.mxu0 %v692
    %2236 = vmatmul.mubr.bf16.gmra.mrb[0].mxu0 %v691
    %v2237 = vpop.f32.mrb[0].mxu0
    %v2238 = vadd.f32 %v2197, %v2237
    %v2239 = vpop.f32.mrb[0].mxu0
    %v2240 = vadd.f32 %v2199, %v2239
    %v2241 = vpop.f32.mrb[0].mxu0
    %v2242 = vpop.f32.mrb[0].mxu0
    %2243 = vdwg.mxu0
    %2244 = vmatprep.subr.bf16.mxu0 %v1617
    %2245 = vmatpush1.bf16.msra.mxu0 %v1616
    %2246 = vmatprep.subr.bf16.mxu0 %v1621
    %2247 = vmatpush1.bf16.msra.mxu0 %v1620
    %2248 = vmatprep.subr.bf16.mxu0 %v1625
    %2249 = vmatpush1.bf16.msra.mxu0 %v1624
    %2250 = vmatprep.subr.bf16.mxu0 %v1629
    %2251 = vmatpush1.bf16.msra.mxu0 %v1628
    %2252 = vmatprep.subr.bf16.mxu0 %v1633
    %2253 = vmatpush1.bf16.msra.mxu0 %v1632
    %2254 = vmatprep.subr.bf16.mxu0 %v1637
    %2255 = vmatpush1.bf16.msra.mxu0 %v1636
    %2256 = vmatprep.subr.bf16.mxu0 %v1641
    %2257 = vmatpush1.bf16.msra.mxu0 %v1640
    %2258 = vmatprep.subr.bf16.mxu0 %v1645
    %2259 = vmatpush1.bf16.msra.mxu0 %v1644
    %2260 = vmatprep.subr.bf16.mxu0 %v1649
    %2261 = vmatpush1.bf16.msra.mxu0 %v1648
    %2262 = vmatprep.subr.bf16.mxu0 %v1653
    %2263 = vmatpush1.bf16.msra.mxu0 %v1652
    %2264 = vmatprep.subr.bf16.mxu0 %v1657
    %2265 = vmatpush1.bf16.msra.mxu0 %v1656
    %2266 = vmatprep.subr.bf16.mxu0 %v1661
    %2267 = vmatpush1.bf16.msra.mxu0 %v1660
    %2268 = vmatprep.subr.bf16.mxu0 %v1665
    %2269 = vmatpush1.bf16.msra.mxu0 %v1664
    %2270 = vmatprep.subr.bf16.mxu0 %v1669
    %2271 = vmatpush1.bf16.msra.mxu0 %v1668
    %2272 = vmatprep.subr.bf16.mxu0 %v1673
    %2273 = vmatpush1.bf16.msra.mxu0 %v1672
    %2274 = vmatprep.subr.bf16.mxu0 %v1677
    %2275 = vmatpush1.bf16.msra.mxu0 %v1676
    %2276 = vmatprep.mubr.bf16.mxu0 %v694
    %2277 = vmatmul.mubr.bf16.gmra.mrb[0].mxu0 %v693
    %v2278 = vpop.f32.mrb[0].mxu0
    %v2279 = vadd.f32 %v2238, %v2278
    %v2280 = vpop.f32.mrb[0].mxu0
    %v2281 = vadd.f32 %v2240, %v2280
    %v2282 = vpop.f32.mrb[0].mxu0
    %v2283 = vpop.f32.mrb[0].mxu0
    %2284 = vdwg.mxu0
    %2285 = vmatprep.subr.bf16.mxu0 %v1681
    %2286 = vmatpush1.bf16.msra.mxu0 %v1680
    %2287 = vmatprep.subr.bf16.mxu0 %v1685
    %2288 = vmatpush1.bf16.msra.mxu0 %v1684
    %2289 = vmatprep.subr.bf16.mxu0 %v1689
    %2290 = vmatpush1.bf16.msra.mxu0 %v1688
    %2291 = vmatprep.subr.bf16.mxu0 %v1693
    %2292 = vmatpush1.bf16.msra.mxu0 %v1692
    %2293 = vmatprep.subr.bf16.mxu0 %v1697
    %2294 = vmatpush1.bf16.msra.mxu0 %v1696
    %2295 = vmatprep.subr.bf16.mxu0 %v1701
    %2296 = vmatpush1.bf16.msra.mxu0 %v1700
    %2297 = vmatprep.subr.bf16.mxu0 %v1705
    %2298 = vmatpush1.bf16.msra.mxu0 %v1704
    %2299 = vmatprep.subr.bf16.mxu0 %v1709
    %2300 = vmatpush1.bf16.msra.mxu0 %v1708
    %2301 = vmatprep.subr.bf16.mxu0 %v1713
    %2302 = vmatpush1.bf16.msra.mxu0 %v1712
    %2303 = vmatprep.subr.bf16.mxu0 %v1717
    %2304 = vmatpush1.bf16.msra.mxu0 %v1716
    %2305 = vmatprep.subr.bf16.mxu0 %v1721
    %2306 = vmatpush1.bf16.msra.mxu0 %v1720
    %2307 = vmatprep.subr.bf16.mxu0 %v1725
    %2308 = vmatpush1.bf16.msra.mxu0 %v1724
    %2309 = vmatprep.subr.bf16.mxu0 %v1729
    %2310 = vmatpush1.bf16.msra.mxu0 %v1728
    %2311 = vmatprep.subr.bf16.mxu0 %v1733
    %2312 = vmatpush1.bf16.msra.mxu0 %v1732
    %2313 = vmatprep.subr.bf16.mxu0 %v1737
    %2314 = vmatpush1.bf16.msra.mxu0 %v1736
    %2315 = vmatprep.subr.bf16.mxu0 %v1741
    %2316 = vmatpush1.bf16.msra.mxu0 %v1740
    %2317 = vmatprep.mubr.bf16.mxu0 %v696
    %2318 = vmatmul.mubr.bf16.gmra.mrb[0].mxu0 %v695
    %v2319 = vpop.f32.mrb[0].mxu0
    %v2320 = vadd.f32 %v2279, %v2319
    %v2321 = vpop.f32.mrb[0].mxu0
    %v2322 = vadd.f32 %v2281, %v2321
    %v2323 = vpop.f32.mrb[0].mxu0
    %v2324 = vpop.f32.mrb[0].mxu0
    %2325 = vdwg.mxu0
    %v2326 = vmax.f32 %v2156, 0.0
    %v2327 = vmax.f32 %v2158, 0.0
    %v2328 = vmax.f32 %v2320, 0.0
    %v2329 = vmax.f32 %v2322, 0.0
    %v2330 = vld [vmem:[%s3] sm:$0xff]
    %v2331 = vld [vmem:[%s3 + $0x8] sm:$0xff]
    %v2332 = vld [vmem:[%s3 + $0x10] sm:$0xff]
    %v2333 = vld [vmem:[%s3 + $0x18] sm:$0xff]
    %v2334 = vld [vmem:[%s3 + $0x20] sm:$0xff]
    %v2335 = vld [vmem:[%s3 + $0x28] sm:$0xff]
    %v2336 = vld [vmem:[%s3 + $0x30] sm:$0xff]
    %v2337 = vld [vmem:[%s3 + $0x38] sm:$0xff]
    %v2338 = vld [vmem:[%s3 + $0x40] sm:$0xff]
    %v2339 = vld [vmem:[%s3 + $0x48] sm:$0xff]
    %v2340 = vld [vmem:[%s3 + $0x50] sm:$0xff]
    %v2341 = vld [vmem:[%s3 + $0x58] sm:$0xff]
    %v2342 = vld [vmem:[%s3 + $0x60] sm:$0xff]
    %v2343 = vld [vmem:[%s3 + $0x68] sm:$0xff]
    %v2344 = vld [vmem:[%s3 + $0x70] sm:$0xff]
    %v2345 = vld [vmem:[%s3 + $0x78] sm:$0xff]
    %v2346 = vld [vmem:[%s3 + $0x80] sm:$0xff]
    %v2347 = vld [vmem:[%s3 + $0x88] sm:$0xff]
    %v2348 = vld [vmem:[%s3 + $0x90] sm:$0xff]
    %v2349 = vld [vmem:[%s3 + $0x98] sm:$0xff]
    %v2350 = vld [vmem:[%s3 + $0xa0] sm:$0xff]
    %v2351 = vld [vmem:[%s3 + $0xa8] sm:$0xff]
    %v2352 = vld [vmem:[%s3 + $0xb0] sm:$0xff]
    %v2353 = vld [vmem:[%s3 + $0xb8] sm:$0xff]
    %v2354 = vld [vmem:[%s3 + $0xc0] sm:$0xff]
    %v2355 = vld [vmem:[%s3 + $0xc8] sm:$0xff]
    %v2356 = vld [vmem:[%s3 + $0xd0] sm:$0xff]
    %v2357 = vld [vmem:[%s3 + $0xd8] sm:$0xff]
    %v2358 = vld [vmem:[%s3 + $0xe0] sm:$0xff]
    %v2359 = vld [vmem:[%s3 + $0xe8] sm:$0xff]
    %v2360 = vld [vmem:[%s3 + $0xf0] sm:$0xff]
    %v2361 = vld [vmem:[%s3 + $0xf8] sm:$0xff]
    %v2362 = vld [vmem:[%s3 + $0x100] sm:$0xff]
    %v2363 = vld [vmem:[%s3 + $0x108] sm:$0xff]
    %v2364 = vld [vmem:[%s3 + $0x110] sm:$0xff]
    %v2365 = vld [vmem:[%s3 + $0x118] sm:$0xff]
    %v2366 = vld [vmem:[%s3 + $0x120] sm:$0xff]
    %v2367 = vld [vmem:[%s3 + $0x128] sm:$0xff]
    %v2368 = vld [vmem:[%s3 + $0x130] sm:$0xff]
    %v2369 = vld [vmem:[%s3 + $0x138] sm:$0xff]
    %v2370 = vld [vmem:[%s3 + $0x140] sm:$0xff]
    %v2371 = vld [vmem:[%s3 + $0x148] sm:$0xff]
    %v2372 = vld [vmem:[%s3 + $0x150] sm:$0xff]
    %v2373 = vld [vmem:[%s3 + $0x158] sm:$0xff]
    %v2374 = vld [vmem:[%s3 + $0x160] sm:$0xff]
    %v2375 = vld [vmem:[%s3 + $0x168] sm:$0xff]
    %v2376 = vld [vmem:[%s3 + $0x170] sm:$0xff]
    %v2377 = vld [vmem:[%s3 + $0x178] sm:$0xff]
    %v2378 = vld [vmem:[%s3 + $0x180] sm:$0xff]
    %v2379 = vld [vmem:[%s3 + $0x188] sm:$0xff]
    %v2380 = vld [vmem:[%s3 + $0x190] sm:$0xff]
    %v2381 = vld [vmem:[%s3 + $0x198] sm:$0xff]
    %v2382 = vld [vmem:[%s3 + $0x1a0] sm:$0xff]
    %v2383 = vld [vmem:[%s3 + $0x1a8] sm:$0xff]
    %v2384 = vld [vmem:[%s3 + $0x1b0] sm:$0xff]
    %v2385 = vld [vmem:[%s3 + $0x1b8] sm:$0xff]
    %v2386 = vld [vmem:[%s3 + $0x1c0] sm:$0xff]
    %v2387 = vld [vmem:[%s3 + $0x1c8] sm:$0xff]
    %v2388 = vld [vmem:[%s3 + $0x1d0] sm:$0xff]
    %v2389 = vld [vmem:[%s3 + $0x1d8] sm:$0xff]
    %v2390 = vld [vmem:[%s3 + $0x1e0] sm:$0xff]
    %v2391 = vld [vmem:[%s3 + $0x1e8] sm:$0xff]
    %v2392 = vld [vmem:[%s3 + $0x1f0] sm:$0xff]
    %v2393 = vld [vmem:[%s3 + $0x1f8] sm:$0xff]
    %v2395 = vlaneseq
    %v2396 = vshrl.u32 %v2395, 7
    %v2397 = vsub.s32 0, %v2396
    %v2398 = vrot.slane %v116, %v2397
    %2400 = vmatprep.subr.mxu0 0.0
    %2401 = vmatpush1.msra.mxu0 %v2330
    %2402 = vmatprep.subr.mxu0 0.0
    %2403 = vmatpush1.msra.mxu0 %v2331
    %2404 = vmatprep.subr.mxu0 0.0
    %2405 = vmatpush1.msra.mxu0 %v2332
    %2406 = vmatprep.subr.mxu0 0.0
    %2407 = vmatpush1.msra.mxu0 %v2333
    %2408 = vmatprep.subr.mxu0 0.0
    %2409 = vmatpush1.msra.mxu0 %v2334
    %2410 = vmatprep.subr.mxu0 0.0
    %2411 = vmatpush1.msra.mxu0 %v2335
    %2412 = vmatprep.subr.mxu0 0.0
    %2413 = vmatpush1.msra.mxu0 %v2336
    %2414 = vmatprep.subr.mxu0 0.0
    %2415 = vmatpush1.msra.mxu0 %v2337
    %2416 = vmatprep.subr.mxu0 0.0
    %2417 = vmatpush1.msra.mxu0 %v2338
    %2418 = vmatprep.subr.mxu0 0.0
    %2419 = vmatpush1.msra.mxu0 %v2339
    %2420 = vmatprep.subr.mxu0 0.0
    %2421 = vmatpush1.msra.mxu0 %v2340
    %2422 = vmatprep.subr.mxu0 0.0
    %2423 = vmatpush1.msra.mxu0 %v2341
    %2424 = vmatprep.subr.mxu0 0.0
    %2425 = vmatpush1.msra.mxu0 %v2342
    %2426 = vmatprep.subr.mxu0 0.0
    %2427 = vmatpush1.msra.mxu0 %v2343
    %2428 = vmatprep.subr.mxu0 0.0
    %2429 = vmatpush1.msra.mxu0 %v2344
    %2430 = vmatprep.subr.mxu0 0.0
    %2431 = vmatpush1.msra.mxu0 %v2345
    %2432 = vmatprep.subr.mxu0 0.0
    %2433 = vmatpush1.msra.mxu0 %v2346
    %2434 = vmatprep.subr.mxu0 0.0
    %2435 = vmatpush1.msra.mxu0 %v2347
    %2436 = vmatprep.subr.mxu0 0.0
    %2437 = vmatpush1.msra.mxu0 %v2348
    %2438 = vmatprep.subr.mxu0 0.0
    %2439 = vmatpush1.msra.mxu0 %v2349
    %2440 = vmatprep.subr.mxu0 0.0
    %2441 = vmatpush1.msra.mxu0 %v2350
    %2442 = vmatprep.subr.mxu0 0.0
    %2443 = vmatpush1.msra.mxu0 %v2351
    %2444 = vmatprep.subr.mxu0 0.0
    %2445 = vmatpush1.msra.mxu0 %v2352
    %2446 = vmatprep.subr.mxu0 0.0
    %2447 = vmatpush1.msra.mxu0 %v2353
    %2448 = vmatprep.subr.mxu0 0.0
    %2449 = vmatpush1.msra.mxu0 %v2354
    %2450 = vmatprep.subr.mxu0 0.0
    %2451 = vmatpush1.msra.mxu0 %v2355
    %2452 = vmatprep.subr.mxu0 0.0
    %2453 = vmatpush1.msra.mxu0 %v2356
    %2454 = vmatprep.subr.mxu0 0.0
    %2455 = vmatpush1.msra.mxu0 %v2357
    %2456 = vmatprep.subr.mxu0 0.0
    %2457 = vmatpush1.msra.mxu0 %v2358
    %2458 = vmatprep.subr.mxu0 0.0
    %2459 = vmatpush1.msra.mxu0 %v2359
    %2460 = vmatprep.subr.mxu0 0.0
    %2461 = vmatpush1.msra.mxu0 %v2360
    %2462 = vmatprep.subr.mxu0 0.0
    %2463 = vmatpush1.msra.mxu0 %v2361
    %2464 = vmatprep.mubr.f32.mxu0 %v2327
    %2465 = vmatmul.mubr.f32.gmra.mrb[0].mxu0 %v2326
    %v2466 = vpop.f32.mrb[0].mxu0
    %v2467 = vadd.f32 %v2398, %v2466
    %v2468 = vpop.f32.mrb[0].mxu0
    %2469 = vdwg.mxu0
    %2470 = vmatprep.subr.mxu0 0.0
    %2471 = vmatpush1.msra.mxu0 %v2362
    %2472 = vmatprep.subr.mxu0 0.0
    %2473 = vmatpush1.msra.mxu0 %v2363
    %2474 = vmatprep.subr.mxu0 0.0
    %2475 = vmatpush1.msra.mxu0 %v2364
    %2476 = vmatprep.subr.mxu0 0.0
    %2477 = vmatpush1.msra.mxu0 %v2365
    %2478 = vmatprep.subr.mxu0 0.0
    %2479 = vmatpush1.msra.mxu0 %v2366
    %2480 = vmatprep.subr.mxu0 0.0
    %2481 = vmatpush1.msra.mxu0 %v2367
    %2482 = vmatprep.subr.mxu0 0.0
    %2483 = vmatpush1.msra.mxu0 %v2368
    %2484 = vmatprep.subr.mxu0 0.0
    %2485 = vmatpush1.msra.mxu0 %v2369
    %2486 = vmatprep.subr.mxu0 0.0
    %2487 = vmatpush1.msra.mxu0 %v2370
    %2488 = vmatprep.subr.mxu0 0.0
    %2489 = vmatpush1.msra.mxu0 %v2371
    %2490 = vmatprep.subr.mxu0 0.0
    %2491 = vmatpush1.msra.mxu0 %v2372
    %2492 = vmatprep.subr.mxu0 0.0
    %2493 = vmatpush1.msra.mxu0 %v2373
    %2494 = vmatprep.subr.mxu0 0.0
    %2495 = vmatpush1.msra.mxu0 %v2374
    %2496 = vmatprep.subr.mxu0 0.0
    %2497 = vmatpush1.msra.mxu0 %v2375
    %2498 = vmatprep.subr.mxu0 0.0
    %2499 = vmatpush1.msra.mxu0 %v2376
    %2500 = vmatprep.subr.mxu0 0.0
    %2501 = vmatpush1.msra.mxu0 %v2377
    %2502 = vmatprep.subr.mxu0 0.0
    %2503 = vmatpush1.msra.mxu0 %v2378
    %2504 = vmatprep.subr.mxu0 0.0
    %2505 = vmatpush1.msra.mxu0 %v2379
    %2506 = vmatprep.subr.mxu0 0.0
    %2507 = vmatpush1.msra.mxu0 %v2380
    %2508 = vmatprep.subr.mxu0 0.0
    %2509 = vmatpush1.msra.mxu0 %v2381
    %2510 = vmatprep.subr.mxu0 0.0
    %2511 = vmatpush1.msra.mxu0 %v2382
    %2512 = vmatprep.subr.mxu0 0.0
    %2513 = vmatpush1.msra.mxu0 %v2383
    %2514 = vmatprep.subr.mxu0 0.0
    %2515 = vmatpush1.msra.mxu0 %v2384
    %2516 = vmatprep.subr.mxu0 0.0
    %2517 = vmatpush1.msra.mxu0 %v2385
    %2518 = vmatprep.subr.mxu0 0.0
    %2519 = vmatpush1.msra.mxu0 %v2386
    %2520 = vmatprep.subr.mxu0 0.0
    %2521 = vmatpush1.msra.mxu0 %v2387
    %2522 = vmatprep.subr.mxu0 0.0
    %2523 = vmatpush1.msra.mxu0 %v2388
    %2524 = vmatprep.subr.mxu0 0.0
    %2525 = vmatpush1.msra.mxu0 %v2389
    %2526 = vmatprep.subr.mxu0 0.0
    %2527 = vmatpush1.msra.mxu0 %v2390
    %2528 = vmatprep.subr.mxu0 0.0
    %2529 = vmatpush1.msra.mxu0 %v2391
    %2530 = vmatprep.subr.mxu0 0.0
    %2531 = vmatpush1.msra.mxu0 %v2392
    %2532 = vmatprep.subr.mxu0 0.0
    %2533 = vmatpush1.msra.mxu0 %v2393
    %2534 = vmatprep.mubr.f32.mxu0 %v2329
    %2535 = vmatmul.mubr.f32.gmra.mrb[0].mxu0 %v2328
    %v2536 = vpop.f32.mrb[0].mxu0
    %v2537 = vadd.f32 %v2467, %v2536
    %v2538 = vpop.f32.mrb[0].mxu0
    %2539 = vdwg.mxu0
    %v2540 = vmax.f32 %v2537, 0.0
    %v2541 = vld [vmem:[#allocation7] sm:$0xff]
    %v2542 = vpack.c.bf16 %v2540, %v2540
    %v2544 = vlaneseq
    %v2545 = vshrl.u32 %v2544, 7
    %v2546 = vsub.s32 0, %v2545
    %v2547 = vrot.slane %v112, %v2546
    %v2548 = vlaneseq
    %v2549 = vshrl.u32 %v2548, 7
    %v2550 = vsub.s32 1, %v2549
    %v2551 = vrot.slane %v112, %v2550
    %v2552 = vlaneseq
    %v2553 = vshrl.u32 %v2552, 7
    %v2554 = vsub.s32 2, %v2553
    %v2555 = vrot.slane %v112, %v2554
    %v2556 = vlaneseq
    %v2557 = vshrl.u32 %v2556, 7
    %v2558 = vsub.s32 3, %v2557
    %v2559 = vrot.slane %v112, %v2558
    %v2560 = vlaneseq
    %v2561 = vshrl.u32 %v2560, 7
    %v2562 = vsub.s32 4, %v2561
    %v2563 = vrot.slane %v112, %v2562
    %v2564 = vlaneseq
    %v2565 = vshrl.u32 %v2564, 7
    %v2566 = vsub.s32 5, %v2565
    %v2567 = vrot.slane %v112, %v2566
    %v2568 = vlaneseq
    %v2569 = vshrl.u32 %v2568, 7
    %v2570 = vsub.s32 6, %v2569
    %v2571 = vrot.slane %v112, %v2570
    %v2572 = vlaneseq
    %v2573 = vshrl.u32 %v2572, 7
    %v2574 = vsub.s32 7, %v2573
    %v2575 = vrot.slane %v112, %v2574
    %v2585 = vcombine.high %v2541, %v2541
    %v2587 = vunpack.c.l.s4 1966171168
    %v2588 = vunpack.c.0.s8 %v2587
    %v2589 = vlaneseq
    %v2590 = vshrl.u32 %v2589, 7
    %v2591 = vsub.s32 %v2588, %v2590
    %v2592 = vrot.slane %v2541, %v2591
    %v2594 = vunpack.c.l.s4 1966171168
    %v2595 = vunpack.c.0.s8 %v2594
    %v2596 = vlaneseq
    %v2597 = vshrl.u32 %v2596, 7
    %v2598 = vsub.s32 %v2595, %v2597
    %v2599 = vrot.slane %v2585, %v2598
    %v2600 = vcombine.high %v2592, %v2592
    %v2601 = vcombine.high %v2599, %v2599
    %v2603 = vunpack.c.l.s4 1966171168
    %v2604 = vunpack.c.0.s8 %v2603
    %v2605 = vlaneseq
    %v2606 = vshrl.u32 %v2605, 7
    %v2607 = vsub.s32 %v2604, %v2606
    %v2608 = vrot.slane %v2592, %v2607
    %v2610 = vunpack.c.l.s4 1966171168
    %v2611 = vunpack.c.0.s8 %v2610
    %v2612 = vlaneseq
    %v2613 = vshrl.u32 %v2612, 7
    %v2614 = vsub.s32 %v2611, %v2613
    %v2615 = vrot.slane %v2599, %v2614
    %v2617 = vunpack.c.l.s4 1966171168
    %v2618 = vunpack.c.0.s8 %v2617
    %v2619 = vlaneseq
    %v2620 = vshrl.u32 %v2619, 7
    %v2621 = vsub.s32 %v2618, %v2620
    %v2622 = vrot.slane %v2600, %v2621
    %v2624 = vunpack.c.l.s4 1966171168
    %v2625 = vunpack.c.0.s8 %v2624
    %v2626 = vlaneseq
    %v2627 = vshrl.u32 %v2626, 7
    %v2628 = vsub.s32 %v2625, %v2627
    %v2629 = vrot.slane %v2601, %v2628
    %v2630 = vcombine.high %v2608, %v2608
    %v2631 = vcombine.high %v2615, %v2615
    %v2632 = vcombine.high %v2622, %v2622
    %v2633 = vcombine.high %v2629, %v2629
    %vm2634 = vcmask 15360
    %v2636 = vsel %vm2634, %v2542, 0
    %vm2638 = vcmask 1040384
    %v2640 = vsel %vm2638, %v2608, 0
    %v2643 = vsel %vm2638, %v2622, 0
    %v2646 = vsel %vm2638, %v2630, 0
    %v2649 = vsel %vm2638, %v2632, 0
    %v2652 = vsel %vm2638, %v2615, 0
    %v2655 = vsel %vm2638, %v2629, 0
    %v2658 = vsel %vm2638, %v2631, 0
    %v2661 = vsel %vm2638, %v2633, 0
    %2663 = vmatprep.subr.bf16.mxu0 %v2643
    %2664 = vmatpush1.bf16.msra.mxu0 %v2640
    %2665 = vmatprep.subr.bf16.mxu0 0
    %2666 = vmatpush1.bf16.msra.mxu0 0
    %2667 = vmatprep.subr.bf16.mxu0 0
    %2668 = vmatpush1.bf16.msra.mxu0 0
    %2669 = vmatprep.subr.bf16.mxu0 0
    %2670 = vmatpush1.bf16.msra.mxu0 0
    %2671 = vmatprep.subr.bf16.mxu0 0
    %2672 = vmatpush1.bf16.msra.mxu0 0
    %2673 = vmatprep.subr.bf16.mxu0 0
    %2674 = vmatpush1.bf16.msra.mxu0 0
    %2675 = vmatprep.subr.bf16.mxu0 0
    %2676 = vmatpush1.bf16.msra.mxu0 0
    %2677 = vmatprep.subr.bf16.mxu0 0
    %2678 = vmatpush1.bf16.msra.mxu0 0
    %2679 = vmatprep.subr.bf16.mxu0 0
    %2680 = vmatpush1.bf16.msra.mxu0 0
    %2681 = vmatprep.subr.bf16.mxu0 0
    %2682 = vmatpush1.bf16.msra.mxu0 0
    %2683 = vmatprep.subr.bf16.mxu0 0
    %2684 = vmatpush1.bf16.msra.mxu0 0
    %2685 = vmatprep.subr.bf16.mxu0 0
    %2686 = vmatpush1.bf16.msra.mxu0 0
    %2687 = vmatprep.subr.bf16.mxu0 0
    %2688 = vmatpush1.bf16.msra.mxu0 0
    %2689 = vmatprep.subr.bf16.mxu0 0
    %2690 = vmatpush1.bf16.msra.mxu0 0
    %2691 = vmatprep.subr.bf16.mxu0 0
    %2692 = vmatpush1.bf16.msra.mxu0 0
    %2693 = vmatprep.subr.bf16.mxu0 0
    %2694 = vmatpush1.bf16.msra.mxu0 0
    %2695 = vmatprep.mubr.bf16.mxu0 0
    %2696 = vmatmul.mubr.bf16.gmra.mrb[0].mxu0 %v2636
    %v2697 = vpop.f32.mrb[0].mxu0
    %v2698 = vadd.f32 %v2547, %v2697
    %v2699 = vpop.f32.mrb[0].mxu0
    %v2700 = vadd.f32 %v2551, %v2699
    %v2701 = vpop.f32.mrb[0].mxu0
    %v2702 = vpop.f32.mrb[0].mxu0
    %2703 = vdwg.mxu0
    %2704 = vmatprep.subr.bf16.mxu0 %v2649
    %2705 = vmatpush1.bf16.msra.mxu0 %v2646
    %2706 = vmatprep.subr.bf16.mxu0 0
    %2707 = vmatpush1.bf16.msra.mxu0 0
    %2708 = vmatprep.subr.bf16.mxu0 0
    %2709 = vmatpush1.bf16.msra.mxu0 0
    %2710 = vmatprep.subr.bf16.mxu0 0
    %2711 = vmatpush1.bf16.msra.mxu0 0
    %2712 = vmatprep.subr.bf16.mxu0 0
    %2713 = vmatpush1.bf16.msra.mxu0 0
    %2714 = vmatprep.subr.bf16.mxu0 0
    %2715 = vmatpush1.bf16.msra.mxu0 0
    %2716 = vmatprep.subr.bf16.mxu0 0
    %2717 = vmatpush1.bf16.msra.mxu0 0
    %2718 = vmatprep.subr.bf16.mxu0 0
    %2719 = vmatpush1.bf16.msra.mxu0 0
    %2720 = vmatprep.subr.bf16.mxu0 0
    %2721 = vmatpush1.bf16.msra.mxu0 0
    %2722 = vmatprep.subr.bf16.mxu0 0
    %2723 = vmatpush1.bf16.msra.mxu0 0
    %2724 = vmatprep.subr.bf16.mxu0 0
    %2725 = vmatpush1.bf16.msra.mxu0 0
    %2726 = vmatprep.subr.bf16.mxu0 0
    %2727 = vmatpush1.bf16.msra.mxu0 0
    %2728 = vmatprep.subr.bf16.mxu0 0
    %2729 = vmatpush1.bf16.msra.mxu0 0
    %2730 = vmatprep.subr.bf16.mxu0 0
    %2731 = vmatpush1.bf16.msra.mxu0 0
    %2732 = vmatprep.subr.bf16.mxu0 0
    %2733 = vmatpush1.bf16.msra.mxu0 0
    %2734 = vmatprep.subr.bf16.mxu0 0
    %2735 = vmatpush1.bf16.msra.mxu0 0
    %2736 = vmatprep.mubr.bf16.mxu0 0
    %2737 = vmatmul.mubr.bf16.gmra.mrb[0].mxu0 %v2636
    %v2738 = vpop.f32.mrb[0].mxu0
    %v2739 = vadd.f32 %v2555, %v2738
    %v2740 = vpop.f32.mrb[0].mxu0
    %v2741 = vadd.f32 %v2559, %v2740
    %v2742 = vpop.f32.mrb[0].mxu0
    %v2743 = vpop.f32.mrb[0].mxu0
    %2744 = vdwg.mxu0
    %2745 = vmatprep.subr.bf16.mxu0 %v2655
    %2746 = vmatpush1.bf16.msra.mxu0 %v2652
    %2747 = vmatprep.subr.bf16.mxu0 0
    %2748 = vmatpush1.bf16.msra.mxu0 0
    %2749 = vmatprep.subr.bf16.mxu0 0
    %2750 = vmatpush1.bf16.msra.mxu0 0
    %2751 = vmatprep.subr.bf16.mxu0 0
    %2752 = vmatpush1.bf16.msra.mxu0 0
    %2753 = vmatprep.subr.bf16.mxu0 0
    %2754 = vmatpush1.bf16.msra.mxu0 0
    %2755 = vmatprep.subr.bf16.mxu0 0
    %2756 = vmatpush1.bf16.msra.mxu0 0
    %2757 = vmatprep.subr.bf16.mxu0 0
    %2758 = vmatpush1.bf16.msra.mxu0 0
    %2759 = vmatprep.subr.bf16.mxu0 0
    %2760 = vmatpush1.bf16.msra.mxu0 0
    %2761 = vmatprep.subr.bf16.mxu0 0
    %2762 = vmatpush1.bf16.msra.mxu0 0
    %2763 = vmatprep.subr.bf16.mxu0 0
    %2764 = vmatpush1.bf16.msra.mxu0 0
    %2765 = vmatprep.subr.bf16.mxu0 0
    %2766 = vmatpush1.bf16.msra.mxu0 0
    %2767 = vmatprep.subr.bf16.mxu0 0
    %2768 = vmatpush1.bf16.msra.mxu0 0
    %2769 = vmatprep.subr.bf16.mxu0 0
    %2770 = vmatpush1.bf16.msra.mxu0 0
    %2771 = vmatprep.subr.bf16.mxu0 0
    %2772 = vmatpush1.bf16.msra.mxu0 0
    %2773 = vmatprep.subr.bf16.mxu0 0
    %2774 = vmatpush1.bf16.msra.mxu0 0
    %2775 = vmatprep.subr.bf16.mxu0 0
    %2776 = vmatpush1.bf16.msra.mxu0 0
    %2777 = vmatprep.mubr.bf16.mxu0 0
    %2778 = vmatmul.mubr.bf16.gmra.mrb[0].mxu0 %v2636
    %v2779 = vpop.f32.mrb[0].mxu0
    %v2780 = vadd.f32 %v2563, %v2779
    %v2781 = vpop.f32.mrb[0].mxu0
    %v2782 = vadd.f32 %v2567, %v2781
    %v2783 = vpop.f32.mrb[0].mxu0
    %v2784 = vpop.f32.mrb[0].mxu0
    %2785 = vdwg.mxu0
    %2786 = vmatprep.subr.bf16.mxu0 %v2661
    %2787 = vmatpush1.bf16.msra.mxu0 %v2658
    %2788 = vmatprep.subr.bf16.mxu0 0
    %2789 = vmatpush1.bf16.msra.mxu0 0
    %2790 = vmatprep.subr.bf16.mxu0 0
    %2791 = vmatpush1.bf16.msra.mxu0 0
    %2792 = vmatprep.subr.bf16.mxu0 0
    %2793 = vmatpush1.bf16.msra.mxu0 0
    %2794 = vmatprep.subr.bf16.mxu0 0
    %2795 = vmatpush1.bf16.msra.mxu0 0
    %2796 = vmatprep.subr.bf16.mxu0 0
    %2797 = vmatpush1.bf16.msra.mxu0 0
    %2798 = vmatprep.subr.bf16.mxu0 0
    %2799 = vmatpush1.bf16.msra.mxu0 0
    %2800 = vmatprep.subr.bf16.mxu0 0
    %2801 = vmatpush1.bf16.msra.mxu0 0
    %2802 = vmatprep.subr.bf16.mxu0 0
    %2803 = vmatpush1.bf16.msra.mxu0 0
    %2804 = vmatprep.subr.bf16.mxu0 0
    %2805 = vmatpush1.bf16.msra.mxu0 0
    %2806 = vmatprep.subr.bf16.mxu0 0
    %2807 = vmatpush1.bf16.msra.mxu0 0
    %2808 = vmatprep.subr.bf16.mxu0 0
    %2809 = vmatpush1.bf16.msra.mxu0 0
    %2810 = vmatprep.subr.bf16.mxu0 0
    %2811 = vmatpush1.bf16.msra.mxu0 0
    %2812 = vmatprep.subr.bf16.mxu0 0
    %2813 = vmatpush1.bf16.msra.mxu0 0
    %2814 = vmatprep.subr.bf16.mxu0 0
    %2815 = vmatpush1.bf16.msra.mxu0 0
    %2816 = vmatprep.subr.bf16.mxu0 0
    %2817 = vmatpush1.bf16.msra.mxu0 0
    %2818 = vmatprep.mubr.bf16.mxu0 0
    %2819 = vmatmul.mubr.bf16.gmra.mrb[0].mxu0 %v2636
    %v2820 = vpop.f32.mrb[0].mxu0
    %v2821 = vadd.f32 %v2571, %v2820
    %v2822 = vpop.f32.mrb[0].mxu0
    %v2823 = vadd.f32 %v2575, %v2822
    %v2824 = vpop.f32.mrb[0].mxu0
    %v2825 = vpop.f32.mrb[0].mxu0
    %2826 = vdwg.mxu0
    %v2827 = vmax.f32 %v2698, 0.0
    %v2828 = vmax.f32 %v2700, 0.0
    %v2829 = vmax.f32 %v2739, 0.0
    %v2830 = vmax.f32 %v2741, 0.0
    %v2831 = vmax.f32 %v2780, 0.0
    %v2832 = vmax.f32 %v2782, 0.0
    %v2833 = vmax.f32 %v2821, 0.0
    %v2834 = vmax.f32 %v2823, 0.0
    %v2837 = vrot.slane %v2829, 6
    %v2838 = vrot.slane %v2830, 6
    %v2843 = vrot.slane %v2831, 4
    %v2844 = vrot.slane %v2832, 4
    %v2849 = vrot.slane %v2833, 2
    %v2850 = vrot.slane %v2834, 2
    %vm2853 = vcmask 1041408
    %v2854 = vsel %vm2853, %v2827, %v2837
    %v2855 = vsel %vm2853, %v2828, %v2838
    %vm2856 = vcmask 1043456
    %v2857 = vsel %vm2856, %v2854, %v2843
    %v2858 = vsel %vm2856, %v2855, %v2844
    %vm2859 = vcmask 1045504
    %v2860 = vsel %vm2859, %v2857, %v2849
    %v2861 = vsel %vm2859, %v2858, %v2850
    %v2862 = vld [vmem:[%s5] sm:$0xff]
    %v2863 = vld [vmem:[%s5 + $0x8] sm:$0xff]
    %v2864 = vld [vmem:[%s5 + $0x10] sm:$0xff]
    %v2865 = vld [vmem:[%s5 + $0x18] sm:$0xff]
    %v2866 = vld [vmem:[%s5 + $0x20] sm:$0xff]
    %v2867 = vld [vmem:[%s5 + $0x28] sm:$0xff]
    %v2868 = vld [vmem:[%s5 + $0x30] sm:$0xff]
    %v2869 = vld [vmem:[%s5 + $0x38] sm:$0xff]
    %v2870 = vld [vmem:[%s5 + $0x40] sm:$0xff]
    %v2871 = vld [vmem:[%s5 + $0x48] sm:$0xff]
    %v2872 = vld [vmem:[%s5 + $0x50] sm:$0xff]
    %v2873 = vld [vmem:[%s5 + $0x58] sm:$0xff]
    %v2874 = vld [vmem:[%s5 + $0x60] sm:$0xff]
    %v2875 = vld [vmem:[%s5 + $0x68] sm:$0xff]
    %v2876 = vld [vmem:[%s5 + $0x70] sm:$0xff]
    %v2877 = vld [vmem:[%s5 + $0x78] sm:$0xff]
    %v2878 = vld [vmem:[%s5 + $0x80] sm:$0xff]
    %v2879 = vld [vmem:[%s5 + $0x88] sm:$0xff]
    %v2880 = vld [vmem:[%s5 + $0x90] sm:$0xff]
    %v2881 = vld [vmem:[%s5 + $0x98] sm:$0xff]
    %v2882 = vld [vmem:[%s5 + $0xa0] sm:$0xff]
    %v2883 = vld [vmem:[%s5 + $0xa8] sm:$0xff]
    %v2884 = vld [vmem:[%s5 + $0xb0] sm:$0xff]
    %v2885 = vld [vmem:[%s5 + $0xb8] sm:$0xff]
    %v2886 = vld [vmem:[%s5 + $0xc0] sm:$0xff]
    %v2887 = vld [vmem:[%s5 + $0xc8] sm:$0xff]
    %v2888 = vld [vmem:[%s5 + $0xd0] sm:$0xff]
    %v2889 = vld [vmem:[%s5 + $0xd8] sm:$0xff]
    %v2890 = vld [vmem:[%s5 + $0xe0] sm:$0xff]
    %v2891 = vld [vmem:[%s5 + $0xe8] sm:$0xff]
    %v2892 = vld [vmem:[%s5 + $0xf0] sm:$0xff]
    %v2893 = vld [vmem:[%s5 + $0xf8] sm:$0xff]
    %v2894 = vld [vmem:[%s5 + $0x100] sm:$0xff]
    %v2895 = vld [vmem:[%s5 + $0x108] sm:$0xff]
    %v2896 = vld [vmem:[%s5 + $0x110] sm:$0xff]
    %v2897 = vld [vmem:[%s5 + $0x118] sm:$0xff]
    %v2898 = vld [vmem:[%s5 + $0x120] sm:$0xff]
    %v2899 = vld [vmem:[%s5 + $0x128] sm:$0xff]
    %v2900 = vld [vmem:[%s5 + $0x130] sm:$0xff]
    %v2901 = vld [vmem:[%s5 + $0x138] sm:$0xff]
    %v2902 = vld [vmem:[%s5 + $0x140] sm:$0xff]
    %v2903 = vld [vmem:[%s5 + $0x148] sm:$0xff]
    %v2904 = vld [vmem:[%s5 + $0x150] sm:$0xff]
    %v2905 = vld [vmem:[%s5 + $0x158] sm:$0xff]
    %v2906 = vld [vmem:[%s5 + $0x160] sm:$0xff]
    %v2907 = vld [vmem:[%s5 + $0x168] sm:$0xff]
    %v2908 = vld [vmem:[%s5 + $0x170] sm:$0xff]
    %v2909 = vld [vmem:[%s5 + $0x178] sm:$0xff]
    %v2910 = vld [vmem:[%s5 + $0x180] sm:$0xff]
    %v2911 = vld [vmem:[%s5 + $0x188] sm:$0xff]
    %v2912 = vld [vmem:[%s5 + $0x190] sm:$0xff]
    %v2913 = vld [vmem:[%s5 + $0x198] sm:$0xff]
    %v2914 = vld [vmem:[%s5 + $0x1a0] sm:$0xff]
    %v2915 = vld [vmem:[%s5 + $0x1a8] sm:$0xff]
    %v2916 = vld [vmem:[%s5 + $0x1b0] sm:$0xff]
    %v2917 = vld [vmem:[%s5 + $0x1b8] sm:$0xff]
    %v2918 = vld [vmem:[%s5 + $0x1c0] sm:$0xff]
    %v2919 = vld [vmem:[%s5 + $0x1c8] sm:$0xff]
    %v2920 = vld [vmem:[%s5 + $0x1d0] sm:$0xff]
    %v2921 = vld [vmem:[%s5 + $0x1d8] sm:$0xff]
    %v2922 = vld [vmem:[%s5 + $0x1e0] sm:$0xff]
    %v2923 = vld [vmem:[%s5 + $0x1e8] sm:$0xff]
    %v2924 = vld [vmem:[%s5 + $0x1f0] sm:$0xff]
    %v2925 = vld [vmem:[%s5 + $0x1f8] sm:$0xff]
    %v2926 = vpack.c.bf16 %v2860, %v2860
    %v2927 = vpack.c.bf16 %v2861, %v2861
    %v2929 = vlaneseq
    %v2930 = vshrl.u32 %v2929, 7
    %v2931 = vsub.s32 0, %v2930
    %v2932 = vrot.slane %v114, %v2931
    %v2933 = vlaneseq
    %v2934 = vshrl.u32 %v2933, 7
    %v2935 = vsub.s32 1, %v2934
    %v2936 = vrot.slane %v114, %v2935
    %v2937 = vlaneseq
    %v2938 = vshrl.u32 %v2937, 7
    %v2939 = vsub.s32 2, %v2938
    %v2940 = vrot.slane %v114, %v2939
    %v2941 = vlaneseq
    %v2942 = vshrl.u32 %v2941, 7
    %v2943 = vsub.s32 3, %v2942
    %v2944 = vrot.slane %v114, %v2943
    %v3013 = vunpack.c.l.b16 %v2862
    %v3014 = vunpack.c.h.b16 %v2862
    %v3015 = vunpack.c.l.b16 %v2863
    %v3016 = vunpack.c.h.b16 %v2863
    %v3017 = vunpack.c.l.b16 %v2864
    %v3018 = vunpack.c.h.b16 %v2864
    %v3019 = vunpack.c.l.b16 %v2865
    %v3020 = vunpack.c.h.b16 %v2865
    %v3021 = vunpack.c.l.b16 %v2866
    %v3022 = vunpack.c.h.b16 %v2866
    %v3023 = vunpack.c.l.b16 %v2867
    %v3024 = vunpack.c.h.b16 %v2867
    %v3025 = vunpack.c.l.b16 %v2868
    %v3026 = vunpack.c.h.b16 %v2868
    %v3027 = vunpack.c.l.b16 %v2869
    %v3028 = vunpack.c.h.b16 %v2869
    %v3029 = vunpack.c.l.b16 %v2870
    %v3030 = vunpack.c.h.b16 %v2870
    %v3031 = vunpack.c.l.b16 %v2871
    %v3032 = vunpack.c.h.b16 %v2871
    %v3033 = vunpack.c.l.b16 %v2872
    %v3034 = vunpack.c.h.b16 %v2872
    %v3035 = vunpack.c.l.b16 %v2873
    %v3036 = vunpack.c.h.b16 %v2873
    %v3037 = vunpack.c.l.b16 %v2874
    %v3038 = vunpack.c.h.b16 %v2874
    %v3039 = vunpack.c.l.b16 %v2875
    %v3040 = vunpack.c.h.b16 %v2875
    %v3041 = vunpack.c.l.b16 %v2876
    %v3042 = vunpack.c.h.b16 %v2876
    %v3043 = vunpack.c.l.b16 %v2877
    %v3044 = vunpack.c.h.b16 %v2877
    %v3045 = vunpack.c.l.b16 %v2878
    %v3046 = vunpack.c.h.b16 %v2878
    %v3047 = vunpack.c.l.b16 %v2879
    %v3048 = vunpack.c.h.b16 %v2879
    %v3049 = vunpack.c.l.b16 %v2880
    %v3050 = vunpack.c.h.b16 %v2880
    %v3051 = vunpack.c.l.b16 %v2881
    %v3052 = vunpack.c.h.b16 %v2881
    %v3053 = vunpack.c.l.b16 %v2882
    %v3054 = vunpack.c.h.b16 %v2882
    %v3055 = vunpack.c.l.b16 %v2883
    %v3056 = vunpack.c.h.b16 %v2883
    %v3057 = vunpack.c.l.b16 %v2884
    %v3058 = vunpack.c.h.b16 %v2884
    %v3059 = vunpack.c.l.b16 %v2885
    %v3060 = vunpack.c.h.b16 %v2885
    %v3061 = vunpack.c.l.b16 %v2886
    %v3062 = vunpack.c.h.b16 %v2886
    %v3063 = vunpack.c.l.b16 %v2887
    %v3064 = vunpack.c.h.b16 %v2887
    %v3065 = vunpack.c.l.b16 %v2888
    %v3066 = vunpack.c.h.b16 %v2888
    %v3067 = vunpack.c.l.b16 %v2889
    %v3068 = vunpack.c.h.b16 %v2889
    %v3069 = vunpack.c.l.b16 %v2890
    %v3070 = vunpack.c.h.b16 %v2890
    %v3071 = vunpack.c.l.b16 %v2891
    %v3072 = vunpack.c.h.b16 %v2891
    %v3073 = vunpack.c.l.b16 %v2892
    %v3074 = vunpack.c.h.b16 %v2892
    %v3075 = vunpack.c.l.b16 %v2893
    %v3076 = vunpack.c.h.b16 %v2893
    %v3077 = vunpack.c.l.b16 %v2894
    %v3078 = vunpack.c.h.b16 %v2894
    %v3079 = vunpack.c.l.b16 %v2895
    %v3080 = vunpack.c.h.b16 %v2895
    %v3081 = vunpack.c.l.b16 %v2896
    %v3082 = vunpack.c.h.b16 %v2896
    %v3083 = vunpack.c.l.b16 %v2897
    %v3084 = vunpack.c.h.b16 %v2897
    %v3085 = vunpack.c.l.b16 %v2898
    %v3086 = vunpack.c.h.b16 %v2898
    %v3087 = vunpack.c.l.b16 %v2899
    %v3088 = vunpack.c.h.b16 %v2899
    %v3089 = vunpack.c.l.b16 %v2900
    %v3090 = vunpack.c.h.b16 %v2900
    %v3091 = vunpack.c.l.b16 %v2901
    %v3092 = vunpack.c.h.b16 %v2901
    %v3093 = vunpack.c.l.b16 %v2902
    %v3094 = vunpack.c.h.b16 %v2902
    %v3095 = vunpack.c.l.b16 %v2903
    %v3096 = vunpack.c.h.b16 %v2903
    %v3097 = vunpack.c.l.b16 %v2904
    %v3098 = vunpack.c.h.b16 %v2904
    %v3099 = vunpack.c.l.b16 %v2905
    %v3100 = vunpack.c.h.b16 %v2905
    %v3101 = vunpack.c.l.b16 %v2906
    %v3102 = vunpack.c.h.b16 %v2906
    %v3103 = vunpack.c.l.b16 %v2907
    %v3104 = vunpack.c.h.b16 %v2907
    %v3105 = vunpack.c.l.b16 %v2908
    %v3106 = vunpack.c.h.b16 %v2908
    %v3107 = vunpack.c.l.b16 %v2909
    %v3108 = vunpack.c.h.b16 %v2909
    %v3109 = vunpack.c.l.b16 %v2910
    %v3110 = vunpack.c.h.b16 %v2910
    %v3111 = vunpack.c.l.b16 %v2911
    %v3112 = vunpack.c.h.b16 %v2911
    %v3113 = vunpack.c.l.b16 %v2912
    %v3114 = vunpack.c.h.b16 %v2912
    %v3115 = vunpack.c.l.b16 %v2913
    %v3116 = vunpack.c.h.b16 %v2913
    %v3117 = vunpack.c.l.b16 %v2914
    %v3118 = vunpack.c.h.b16 %v2914
    %v3119 = vunpack.c.l.b16 %v2915
    %v3120 = vunpack.c.h.b16 %v2915
    %v3121 = vunpack.c.l.b16 %v2916
    %v3122 = vunpack.c.h.b16 %v2916
    %v3123 = vunpack.c.l.b16 %v2917
    %v3124 = vunpack.c.h.b16 %v2917
    %v3125 = vunpack.c.l.b16 %v2918
    %v3126 = vunpack.c.h.b16 %v2918
    %v3127 = vunpack.c.l.b16 %v2919
    %v3128 = vunpack.c.h.b16 %v2919
    %v3129 = vunpack.c.l.b16 %v2920
    %v3130 = vunpack.c.h.b16 %v2920
    %v3131 = vunpack.c.l.b16 %v2921
    %v3132 = vunpack.c.h.b16 %v2921
    %v3133 = vunpack.c.l.b16 %v2922
    %v3134 = vunpack.c.h.b16 %v2922
    %v3135 = vunpack.c.l.b16 %v2923
    %v3136 = vunpack.c.h.b16 %v2923
    %v3137 = vunpack.c.l.b16 %v2924
    %v3138 = vunpack.c.h.b16 %v2924
    %v3139 = vunpack.c.l.b16 %v2925
    %v3140 = vunpack.c.h.b16 %v2925
    %v3141 = vpack.c.b16 %v3017, %v3013
    %v3142 = vpack.c.b16 %v3018, %v3014
    %v3143 = vpack.c.b16 %v3019, %v3015
    %v3144 = vpack.c.b16 %v3020, %v3016
    %v3145 = vpack.c.b16 %v3025, %v3021
    %v3146 = vpack.c.b16 %v3026, %v3022
    %v3147 = vpack.c.b16 %v3027, %v3023
    %v3148 = vpack.c.b16 %v3028, %v3024
    %v3149 = vpack.c.b16 %v3033, %v3029
    %v3150 = vpack.c.b16 %v3034, %v3030
    %v3151 = vpack.c.b16 %v3035, %v3031
    %v3152 = vpack.c.b16 %v3036, %v3032
    %v3153 = vpack.c.b16 %v3041, %v3037
    %v3154 = vpack.c.b16 %v3042, %v3038
    %v3155 = vpack.c.b16 %v3043, %v3039
    %v3156 = vpack.c.b16 %v3044, %v3040
    %v3157 = vpack.c.b16 %v3049, %v3045
    %v3158 = vpack.c.b16 %v3050, %v3046
    %v3159 = vpack.c.b16 %v3051, %v3047
    %v3160 = vpack.c.b16 %v3052, %v3048
    %v3161 = vpack.c.b16 %v3057, %v3053
    %v3162 = vpack.c.b16 %v3058, %v3054
    %v3163 = vpack.c.b16 %v3059, %v3055
    %v3164 = vpack.c.b16 %v3060, %v3056
    %v3165 = vpack.c.b16 %v3065, %v3061
    %v3166 = vpack.c.b16 %v3066, %v3062
    %v3167 = vpack.c.b16 %v3067, %v3063
    %v3168 = vpack.c.b16 %v3068, %v3064
    %v3169 = vpack.c.b16 %v3073, %v3069
    %v3170 = vpack.c.b16 %v3074, %v3070
    %v3171 = vpack.c.b16 %v3075, %v3071
    %v3172 = vpack.c.b16 %v3076, %v3072
    %v3173 = vpack.c.b16 %v3081, %v3077
    %v3174 = vpack.c.b16 %v3082, %v3078
    %v3175 = vpack.c.b16 %v3083, %v3079
    %v3176 = vpack.c.b16 %v3084, %v3080
    %v3177 = vpack.c.b16 %v3089, %v3085
    %v3178 = vpack.c.b16 %v3090, %v3086
    %v3179 = vpack.c.b16 %v3091, %v3087
    %v3180 = vpack.c.b16 %v3092, %v3088
    %v3181 = vpack.c.b16 %v3097, %v3093
    %v3182 = vpack.c.b16 %v3098, %v3094
    %v3183 = vpack.c.b16 %v3099, %v3095
    %v3184 = vpack.c.b16 %v3100, %v3096
    %v3185 = vpack.c.b16 %v3105, %v3101
    %v3186 = vpack.c.b16 %v3106, %v3102
    %v3187 = vpack.c.b16 %v3107, %v3103
    %v3188 = vpack.c.b16 %v3108, %v3104
    %v3189 = vpack.c.b16 %v3113, %v3109
    %v3190 = vpack.c.b16 %v3114, %v3110
    %v3191 = vpack.c.b16 %v3115, %v3111
    %v3192 = vpack.c.b16 %v3116, %v3112
    %v3193 = vpack.c.b16 %v3121, %v3117
    %v3194 = vpack.c.b16 %v3122, %v3118
    %v3195 = vpack.c.b16 %v3123, %v3119
    %v3196 = vpack.c.b16 %v3124, %v3120
    %v3197 = vpack.c.b16 %v3129, %v3125
    %v3198 = vpack.c.b16 %v3130, %v3126
    %v3199 = vpack.c.b16 %v3131, %v3127
    %v3200 = vpack.c.b16 %v3132, %v3128
    %v3201 = vpack.c.b16 %v3137, %v3133
    %v3202 = vpack.c.b16 %v3138, %v3134
    %v3203 = vpack.c.b16 %v3139, %v3135
    %v3204 = vpack.c.b16 %v3140, %v3136
    %3269 = vmatprep.subr.bf16.mxu0 %v3142
    %3270 = vmatpush1.bf16.msra.mxu0 %v3141
    %3271 = vmatprep.subr.bf16.mxu0 %v3146
    %3272 = vmatpush1.bf16.msra.mxu0 %v3145
    %3273 = vmatprep.subr.bf16.mxu0 %v3150
    %3274 = vmatpush1.bf16.msra.mxu0 %v3149
    %3275 = vmatprep.subr.bf16.mxu0 %v3154
    %3276 = vmatpush1.bf16.msra.mxu0 %v3153
    %3277 = vmatprep.subr.bf16.mxu0 %v3158
    %3278 = vmatpush1.bf16.msra.mxu0 %v3157
    %3279 = vmatprep.subr.bf16.mxu0 %v3162
    %3280 = vmatpush1.bf16.msra.mxu0 %v3161
    %3281 = vmatprep.subr.bf16.mxu0 %v3166
    %3282 = vmatpush1.bf16.msra.mxu0 %v3165
    %3283 = vmatprep.subr.bf16.mxu0 %v3170
    %3284 = vmatpush1.bf16.msra.mxu0 %v3169
    %3285 = vmatprep.subr.bf16.mxu0 %v3174
    %3286 = vmatpush1.bf16.msra.mxu0 %v3173
    %3287 = vmatprep.subr.bf16.mxu0 %v3178
    %3288 = vmatpush1.bf16.msra.mxu0 %v3177
    %3289 = vmatprep.subr.bf16.mxu0 %v3182
    %3290 = vmatpush1.bf16.msra.mxu0 %v3181
    %3291 = vmatprep.subr.bf16.mxu0 %v3186
    %3292 = vmatpush1.bf16.msra.mxu0 %v3185
    %3293 = vmatprep.subr.bf16.mxu0 %v3190
    %3294 = vmatpush1.bf16.msra.mxu0 %v3189
    %3295 = vmatprep.subr.bf16.mxu0 %v3194
    %3296 = vmatpush1.bf16.msra.mxu0 %v3193
    %3297 = vmatprep.subr.bf16.mxu0 %v3198
    %3298 = vmatpush1.bf16.msra.mxu0 %v3197
    %3299 = vmatprep.subr.bf16.mxu0 %v3202
    %3300 = vmatpush1.bf16.msra.mxu0 %v3201
    %3301 = vmatprep.mubr.bf16.mxu0 %v2927
    %3302 = vmatmul.mubr.bf16.gmra.mrb[0].mxu0 %v2926
    %v3303 = vpop.f32.mrb[0].mxu0
    %v3304 = vadd.f32 %v2932, %v3303
    %v3305 = vpop.f32.mrb[0].mxu0
    %v3306 = vadd.f32 %v2936, %v3305
    %v3307 = vpop.f32.mrb[0].mxu0
    %v3308 = vpop.f32.mrb[0].mxu0
    %3309 = vdwg.mxu0
    %3310 = vmatprep.subr.bf16.mxu0 %v3144
    %3311 = vmatpush1.bf16.msra.mxu0 %v3143
    %3312 = vmatprep.subr.bf16.mxu0 %v3148
    %3313 = vmatpush1.bf16.msra.mxu0 %v3147
    %3314 = vmatprep.subr.bf16.mxu0 %v3152
    %3315 = vmatpush1.bf16.msra.mxu0 %v3151
    %3316 = vmatprep.subr.bf16.mxu0 %v3156
    %3317 = vmatpush1.bf16.msra.mxu0 %v3155
    %3318 = vmatprep.subr.bf16.mxu0 %v3160
    %3319 = vmatpush1.bf16.msra.mxu0 %v3159
    %3320 = vmatprep.subr.bf16.mxu0 %v3164
    %3321 = vmatpush1.bf16.msra.mxu0 %v3163
    %3322 = vmatprep.subr.bf16.mxu0 %v3168
    %3323 = vmatpush1.bf16.msra.mxu0 %v3167
    %3324 = vmatprep.subr.bf16.mxu0 %v3172
    %3325 = vmatpush1.bf16.msra.mxu0 %v3171
    %3326 = vmatprep.subr.bf16.mxu0 %v3176
    %3327 = vmatpush1.bf16.msra.mxu0 %v3175
    %3328 = vmatprep.subr.bf16.mxu0 %v3180
    %3329 = vmatpush1.bf16.msra.mxu0 %v3179
    %3330 = vmatprep.subr.bf16.mxu0 %v3184
    %3331 = vmatpush1.bf16.msra.mxu0 %v3183
    %3332 = vmatprep.subr.bf16.mxu0 %v3188
    %3333 = vmatpush1.bf16.msra.mxu0 %v3187
    %3334 = vmatprep.subr.bf16.mxu0 %v3192
    %3335 = vmatpush1.bf16.msra.mxu0 %v3191
    %3336 = vmatprep.subr.bf16.mxu0 %v3196
    %3337 = vmatpush1.bf16.msra.mxu0 %v3195
    %3338 = vmatprep.subr.bf16.mxu0 %v3200
    %3339 = vmatpush1.bf16.msra.mxu0 %v3199
    %3340 = vmatprep.subr.bf16.mxu0 %v3204
    %3341 = vmatpush1.bf16.msra.mxu0 %v3203
    %3342 = vmatprep.mubr.bf16.mxu0 %v2927
    %3343 = vmatmul.mubr.bf16.gmra.mrb[0].mxu0 %v2926
    %v3344 = vpop.f32.mrb[0].mxu0
    %v3345 = vadd.f32 %v2940, %v3344
    %v3346 = vpop.f32.mrb[0].mxu0
    %v3347 = vadd.f32 %v2944, %v3346
    %v3348 = vpop.f32.mrb[0].mxu0
    %v3349 = vpop.f32.mrb[0].mxu0
    %3350 = vdwg.mxu0
    %v3351 = vmax.f32 %v3304, 0.0
    %v3352 = vmax.f32 %v3306, 0.0
    %v3353 = vmax.f32 %v3345, 0.0
    %v3354 = vmax.f32 %v3347, 0.0
    %v3355 = vld [vmem:[#allocation9] sm:$0xff]
    %v3356 = vld [vmem:[#allocation9 + $0x8] sm:$0xff]
    %v3357 = vld [vmem:[#allocation9 + $0x10] sm:$0xff]
    %v3358 = vld [vmem:[#allocation9 + $0x18] sm:$0xff]
    %v3359 = vld [vmem:[#allocation9 + $0x20] sm:$0xff]
    %v3360 = vld [vmem:[#allocation9 + $0x28] sm:$0xff]
    %v3361 = vld [vmem:[#allocation9 + $0x30] sm:$0xff]
    %v3362 = vld [vmem:[#allocation9 + $0x38] sm:$0xff]
    %v3363 = vld [vmem:[#allocation9 + $0x40] sm:$0xff]
    %v3364 = vld [vmem:[#allocation9 + $0x48] sm:$0xff]
    %v3365 = vld [vmem:[#allocation9 + $0x50] sm:$0xff]
    %v3366 = vld [vmem:[#allocation9 + $0x58] sm:$0xff]
    %v3367 = vld [vmem:[#allocation9 + $0x60] sm:$0xff]
    %v3368 = vld [vmem:[#allocation9 + $0x68] sm:$0xff]
    %v3369 = vld [vmem:[#allocation9 + $0x70] sm:$0xff]
    %v3370 = vld [vmem:[#allocation9 + $0x78] sm:$0xff]
    %v3371 = vld [vmem:[#allocation9 + $0x80] sm:$0xff]
    %v3372 = vld [vmem:[#allocation9 + $0x88] sm:$0xff]
    %v3373 = vld [vmem:[#allocation9 + $0x90] sm:$0xff]
    %v3374 = vld [vmem:[#allocation9 + $0x98] sm:$0xff]
    %v3375 = vld [vmem:[#allocation9 + $0xa0] sm:$0xff]
    %v3376 = vld [vmem:[#allocation9 + $0xa8] sm:$0xff]
    %v3377 = vld [vmem:[#allocation9 + $0xb0] sm:$0xff]
    %v3378 = vld [vmem:[#allocation9 + $0xb8] sm:$0xff]
    %v3379 = vld [vmem:[#allocation9 + $0xc0] sm:$0xff]
    %v3380 = vld [vmem:[#allocation9 + $0xc8] sm:$0xff]
    %v3381 = vld [vmem:[#allocation9 + $0xd0] sm:$0xff]
    %v3382 = vld [vmem:[#allocation9 + $0xd8] sm:$0xff]
    %v3383 = vld [vmem:[#allocation9 + $0xe0] sm:$0xff]
    %v3384 = vld [vmem:[#allocation9 + $0xe8] sm:$0xff]
    %v3385 = vld [vmem:[#allocation9 + $0xf0] sm:$0xff]
    %v3386 = vld [vmem:[#allocation9 + $0xf8] sm:$0xff]
    %v3387 = vld [vmem:[#allocation9 + $0x100] sm:$0xff]
    %v3388 = vld [vmem:[#allocation9 + $0x108] sm:$0xff]
    %v3389 = vld [vmem:[#allocation9 + $0x110] sm:$0xff]
    %v3390 = vld [vmem:[#allocation9 + $0x118] sm:$0xff]
    %v3391 = vld [vmem:[#allocation9 + $0x120] sm:$0xff]
    %v3392 = vld [vmem:[#allocation9 + $0x128] sm:$0xff]
    %v3393 = vld [vmem:[#allocation9 + $0x130] sm:$0xff]
    %v3394 = vld [vmem:[#allocation9 + $0x138] sm:$0xff]
    %v3395 = vld [vmem:[#allocation9 + $0x140] sm:$0xff]
    %v3396 = vld [vmem:[#allocation9 + $0x148] sm:$0xff]
    %v3397 = vld [vmem:[#allocation9 + $0x150] sm:$0xff]
    %v3398 = vld [vmem:[#allocation9 + $0x158] sm:$0xff]
    %v3399 = vld [vmem:[#allocation9 + $0x160] sm:$0xff]
    %v3400 = vld [vmem:[#allocation9 + $0x168] sm:$0xff]
    %v3401 = vld [vmem:[#allocation9 + $0x170] sm:$0xff]
    %v3402 = vld [vmem:[#allocation9 + $0x178] sm:$0xff]
    %v3403 = vld [vmem:[#allocation9 + $0x180] sm:$0xff]
    %v3404 = vld [vmem:[#allocation9 + $0x188] sm:$0xff]
    %v3405 = vld [vmem:[#allocation9 + $0x190] sm:$0xff]
    %v3406 = vld [vmem:[#allocation9 + $0x198] sm:$0xff]
    %v3407 = vld [vmem:[#allocation9 + $0x1a0] sm:$0xff]
    %v3408 = vld [vmem:[#allocation9 + $0x1a8] sm:$0xff]
    %v3409 = vld [vmem:[#allocation9 + $0x1b0] sm:$0xff]
    %v3410 = vld [vmem:[#allocation9 + $0x1b8] sm:$0xff]
    %v3411 = vld [vmem:[#allocation9 + $0x1c0] sm:$0xff]
    %v3412 = vld [vmem:[#allocation9 + $0x1c8] sm:$0xff]
    %v3413 = vld [vmem:[#allocation9 + $0x1d0] sm:$0xff]
    %v3414 = vld [vmem:[#allocation9 + $0x1d8] sm:$0xff]
    %v3415 = vld [vmem:[#allocation9 + $0x1e0] sm:$0xff]
    %v3416 = vld [vmem:[#allocation9 + $0x1e8] sm:$0xff]
    %v3417 = vld [vmem:[#allocation9 + $0x1f0] sm:$0xff]
    %v3418 = vld [vmem:[#allocation9 + $0x1f8] sm:$0xff]
    %v3419 = vpack.c.bf16 %v3353, %v3351
    %v3420 = vpack.c.bf16 %v3354, %v3352
    %v3422 = vlaneseq
    %v3423 = vshrl.u32 %v3422, 7
    %v3424 = vsub.s32 0, %v3423
    %v3425 = vrot.slane %v115, %v3424
    %v3426 = vlaneseq
    %v3427 = vshrl.u32 %v3426, 7
    %v3428 = vsub.s32 1, %v3427
    %v3429 = vrot.slane %v115, %v3428
    %v3430 = vlaneseq
    %v3431 = vshrl.u32 %v3430, 7
    %v3432 = vsub.s32 2, %v3431
    %v3433 = vrot.slane %v115, %v3432
    %v3434 = vlaneseq
    %v3435 = vshrl.u32 %v3434, 7
    %v3436 = vsub.s32 3, %v3435
    %v3437 = vrot.slane %v115, %v3436
    %v3506 = vunpack.c.l.b16 %v3355
    %v3507 = vunpack.c.h.b16 %v3355
    %v3508 = vunpack.c.l.b16 %v3356
    %v3509 = vunpack.c.h.b16 %v3356
    %v3510 = vunpack.c.l.b16 %v3357
    %v3511 = vunpack.c.h.b16 %v3357
    %v3512 = vunpack.c.l.b16 %v3358
    %v3513 = vunpack.c.h.b16 %v3358
    %v3514 = vunpack.c.l.b16 %v3359
    %v3515 = vunpack.c.h.b16 %v3359
    %v3516 = vunpack.c.l.b16 %v3360
    %v3517 = vunpack.c.h.b16 %v3360
    %v3518 = vunpack.c.l.b16 %v3361
    %v3519 = vunpack.c.h.b16 %v3361
    %v3520 = vunpack.c.l.b16 %v3362
    %v3521 = vunpack.c.h.b16 %v3362
    %v3522 = vunpack.c.l.b16 %v3363
    %v3523 = vunpack.c.h.b16 %v3363
    %v3524 = vunpack.c.l.b16 %v3364
    %v3525 = vunpack.c.h.b16 %v3364
    %v3526 = vunpack.c.l.b16 %v3365
    %v3527 = vunpack.c.h.b16 %v3365
    %v3528 = vunpack.c.l.b16 %v3366
    %v3529 = vunpack.c.h.b16 %v3366
    %v3530 = vunpack.c.l.b16 %v3367
    %v3531 = vunpack.c.h.b16 %v3367
    %v3532 = vunpack.c.l.b16 %v3368
    %v3533 = vunpack.c.h.b16 %v3368
    %v3534 = vunpack.c.l.b16 %v3369
    %v3535 = vunpack.c.h.b16 %v3369
    %v3536 = vunpack.c.l.b16 %v3370
    %v3537 = vunpack.c.h.b16 %v3370
    %v3538 = vunpack.c.l.b16 %v3371
    %v3539 = vunpack.c.h.b16 %v3371
    %v3540 = vunpack.c.l.b16 %v3372
    %v3541 = vunpack.c.h.b16 %v3372
    %v3542 = vunpack.c.l.b16 %v3373
    %v3543 = vunpack.c.h.b16 %v3373
    %v3544 = vunpack.c.l.b16 %v3374
    %v3545 = vunpack.c.h.b16 %v3374
    %v3546 = vunpack.c.l.b16 %v3375
    %v3547 = vunpack.c.h.b16 %v3375
    %v3548 = vunpack.c.l.b16 %v3376
    %v3549 = vunpack.c.h.b16 %v3376
    %v3550 = vunpack.c.l.b16 %v3377
    %v3551 = vunpack.c.h.b16 %v3377
    %v3552 = vunpack.c.l.b16 %v3378
    %v3553 = vunpack.c.h.b16 %v3378
    %v3554 = vunpack.c.l.b16 %v3379
    %v3555 = vunpack.c.h.b16 %v3379
    %v3556 = vunpack.c.l.b16 %v3380
    %v3557 = vunpack.c.h.b16 %v3380
    %v3558 = vunpack.c.l.b16 %v3381
    %v3559 = vunpack.c.h.b16 %v3381
    %v3560 = vunpack.c.l.b16 %v3382
    %v3561 = vunpack.c.h.b16 %v3382
    %v3562 = vunpack.c.l.b16 %v3383
    %v3563 = vunpack.c.h.b16 %v3383
    %v3564 = vunpack.c.l.b16 %v3384
    %v3565 = vunpack.c.h.b16 %v3384
    %v3566 = vunpack.c.l.b16 %v3385
    %v3567 = vunpack.c.h.b16 %v3385
    %v3568 = vunpack.c.l.b16 %v3386
    %v3569 = vunpack.c.h.b16 %v3386
    %v3570 = vunpack.c.l.b16 %v3387
    %v3571 = vunpack.c.h.b16 %v3387
    %v3572 = vunpack.c.l.b16 %v3388
    %v3573 = vunpack.c.h.b16 %v3388
    %v3574 = vunpack.c.l.b16 %v3389
    %v3575 = vunpack.c.h.b16 %v3389
    %v3576 = vunpack.c.l.b16 %v3390
    %v3577 = vunpack.c.h.b16 %v3390
    %v3578 = vunpack.c.l.b16 %v3391
    %v3579 = vunpack.c.h.b16 %v3391
    %v3580 = vunpack.c.l.b16 %v3392
    %v3581 = vunpack.c.h.b16 %v3392
    %v3582 = vunpack.c.l.b16 %v3393
    %v3583 = vunpack.c.h.b16 %v3393
    %v3584 = vunpack.c.l.b16 %v3394
    %v3585 = vunpack.c.h.b16 %v3394
    %v3586 = vunpack.c.l.b16 %v3395
    %v3587 = vunpack.c.h.b16 %v3395
    %v3588 = vunpack.c.l.b16 %v3396
    %v3589 = vunpack.c.h.b16 %v3396
    %v3590 = vunpack.c.l.b16 %v3397
    %v3591 = vunpack.c.h.b16 %v3397
    %v3592 = vunpack.c.l.b16 %v3398
    %v3593 = vunpack.c.h.b16 %v3398
    %v3594 = vunpack.c.l.b16 %v3399
    %v3595 = vunpack.c.h.b16 %v3399
    %v3596 = vunpack.c.l.b16 %v3400
    %v3597 = vunpack.c.h.b16 %v3400
    %v3598 = vunpack.c.l.b16 %v3401
    %v3599 = vunpack.c.h.b16 %v3401
    %v3600 = vunpack.c.l.b16 %v3402
    %v3601 = vunpack.c.h.b16 %v3402
    %v3602 = vunpack.c.l.b16 %v3403
    %v3603 = vunpack.c.h.b16 %v3403
    %v3604 = vunpack.c.l.b16 %v3404
    %v3605 = vunpack.c.h.b16 %v3404
    %v3606 = vunpack.c.l.b16 %v3405
    %v3607 = vunpack.c.h.b16 %v3405
    %v3608 = vunpack.c.l.b16 %v3406
    %v3609 = vunpack.c.h.b16 %v3406
    %v3610 = vunpack.c.l.b16 %v3407
    %v3611 = vunpack.c.h.b16 %v3407
    %v3612 = vunpack.c.l.b16 %v3408
    %v3613 = vunpack.c.h.b16 %v3408
    %v3614 = vunpack.c.l.b16 %v3409
    %v3615 = vunpack.c.h.b16 %v3409
    %v3616 = vunpack.c.l.b16 %v3410
    %v3617 = vunpack.c.h.b16 %v3410
    %v3618 = vunpack.c.l.b16 %v3411
    %v3619 = vunpack.c.h.b16 %v3411
    %v3620 = vunpack.c.l.b16 %v3412
    %v3621 = vunpack.c.h.b16 %v3412
    %v3622 = vunpack.c.l.b16 %v3413
    %v3623 = vunpack.c.h.b16 %v3413
    %v3624 = vunpack.c.l.b16 %v3414
    %v3625 = vunpack.c.h.b16 %v3414
    %v3626 = vunpack.c.l.b16 %v3415
    %v3627 = vunpack.c.h.b16 %v3415
    %v3628 = vunpack.c.l.b16 %v3416
    %v3629 = vunpack.c.h.b16 %v3416
    %v3630 = vunpack.c.l.b16 %v3417
    %v3631 = vunpack.c.h.b16 %v3417
    %v3632 = vunpack.c.l.b16 %v3418
    %v3633 = vunpack.c.h.b16 %v3418
    %v3634 = vpack.c.b16 %v3510, %v3506
    %v3635 = vpack.c.b16 %v3511, %v3507
    %v3636 = vpack.c.b16 %v3512, %v3508
    %v3637 = vpack.c.b16 %v3513, %v3509
    %v3638 = vpack.c.b16 %v3518, %v3514
    %v3639 = vpack.c.b16 %v3519, %v3515
    %v3640 = vpack.c.b16 %v3520, %v3516
    %v3641 = vpack.c.b16 %v3521, %v3517
    %v3642 = vpack.c.b16 %v3526, %v3522
    %v3643 = vpack.c.b16 %v3527, %v3523
    %v3644 = vpack.c.b16 %v3528, %v3524
    %v3645 = vpack.c.b16 %v3529, %v3525
    %v3646 = vpack.c.b16 %v3534, %v3530
    %v3647 = vpack.c.b16 %v3535, %v3531
    %v3648 = vpack.c.b16 %v3536, %v3532
    %v3649 = vpack.c.b16 %v3537, %v3533
    %v3650 = vpack.c.b16 %v3542, %v3538
    %v3651 = vpack.c.b16 %v3543, %v3539
    %v3652 = vpack.c.b16 %v3544, %v3540
    %v3653 = vpack.c.b16 %v3545, %v3541
    %v3654 = vpack.c.b16 %v3550, %v3546
    %v3655 = vpack.c.b16 %v3551, %v3547
    %v3656 = vpack.c.b16 %v3552, %v3548
    %v3657 = vpack.c.b16 %v3553, %v3549
    %v3658 = vpack.c.b16 %v3558, %v3554
    %v3659 = vpack.c.b16 %v3559, %v3555
    %v3660 = vpack.c.b16 %v3560, %v3556
    %v3661 = vpack.c.b16 %v3561, %v3557
    %v3662 = vpack.c.b16 %v3566, %v3562
    %v3663 = vpack.c.b16 %v3567, %v3563
    %v3664 = vpack.c.b16 %v3568, %v3564
    %v3665 = vpack.c.b16 %v3569, %v3565
    %v3666 = vpack.c.b16 %v3574, %v3570
    %v3667 = vpack.c.b16 %v3575, %v3571
    %v3668 = vpack.c.b16 %v3576, %v3572
    %v3669 = vpack.c.b16 %v3577, %v3573
    %v3670 = vpack.c.b16 %v3582, %v3578
    %v3671 = vpack.c.b16 %v3583, %v3579
    %v3672 = vpack.c.b16 %v3584, %v3580
    %v3673 = vpack.c.b16 %v3585, %v3581
    %v3674 = vpack.c.b16 %v3590, %v3586
    %v3675 = vpack.c.b16 %v3591, %v3587
    %v3676 = vpack.c.b16 %v3592, %v3588
    %v3677 = vpack.c.b16 %v3593, %v3589
    %v3678 = vpack.c.b16 %v3598, %v3594
    %v3679 = vpack.c.b16 %v3599, %v3595
    %v3680 = vpack.c.b16 %v3600, %v3596
    %v3681 = vpack.c.b16 %v3601, %v3597
    %v3682 = vpack.c.b16 %v3606, %v3602
    %v3683 = vpack.c.b16 %v3607, %v3603
    %v3684 = vpack.c.b16 %v3608, %v3604
    %v3685 = vpack.c.b16 %v3609, %v3605
    %v3686 = vpack.c.b16 %v3614, %v3610
    %v3687 = vpack.c.b16 %v3615, %v3611
    %v3688 = vpack.c.b16 %v3616, %v3612
    %v3689 = vpack.c.b16 %v3617, %v3613
    %v3690 = vpack.c.b16 %v3622, %v3618
    %v3691 = vpack.c.b16 %v3623, %v3619
    %v3692 = vpack.c.b16 %v3624, %v3620
    %v3693 = vpack.c.b16 %v3625, %v3621
    %v3694 = vpack.c.b16 %v3630, %v3626
    %v3695 = vpack.c.b16 %v3631, %v3627
    %v3696 = vpack.c.b16 %v3632, %v3628
    %v3697 = vpack.c.b16 %v3633, %v3629
    %3762 = vmatprep.subr.bf16.mxu0 %v3635
    %3763 = vmatpush1.bf16.msra.mxu0 %v3634
    %3764 = vmatprep.subr.bf16.mxu0 %v3639
    %3765 = vmatpush1.bf16.msra.mxu0 %v3638
    %3766 = vmatprep.subr.bf16.mxu0 %v3643
    %3767 = vmatpush1.bf16.msra.mxu0 %v3642
    %3768 = vmatprep.subr.bf16.mxu0 %v3647
    %3769 = vmatpush1.bf16.msra.mxu0 %v3646
    %3770 = vmatprep.subr.bf16.mxu0 %v3651
    %3771 = vmatpush1.bf16.msra.mxu0 %v3650
    %3772 = vmatprep.subr.bf16.mxu0 %v3655
    %3773 = vmatpush1.bf16.msra.mxu0 %v3654
    %3774 = vmatprep.subr.bf16.mxu0 %v3659
    %3775 = vmatpush1.bf16.msra.mxu0 %v3658
    %3776 = vmatprep.subr.bf16.mxu0 %v3663
    %3777 = vmatpush1.bf16.msra.mxu0 %v3662
    %3778 = vmatprep.subr.bf16.mxu0 %v3667
    %3779 = vmatpush1.bf16.msra.mxu0 %v3666
    %3780 = vmatprep.subr.bf16.mxu0 %v3671
    %3781 = vmatpush1.bf16.msra.mxu0 %v3670
    %3782 = vmatprep.subr.bf16.mxu0 %v3675
    %3783 = vmatpush1.bf16.msra.mxu0 %v3674
    %3784 = vmatprep.subr.bf16.mxu0 %v3679
    %3785 = vmatpush1.bf16.msra.mxu0 %v3678
    %3786 = vmatprep.subr.bf16.mxu0 %v3683
    %3787 = vmatpush1.bf16.msra.mxu0 %v3682
    %3788 = vmatprep.subr.bf16.mxu0 %v3687
    %3789 = vmatpush1.bf16.msra.mxu0 %v3686
    %3790 = vmatprep.subr.bf16.mxu0 %v3691
    %3791 = vmatpush1.bf16.msra.mxu0 %v3690
    %3792 = vmatprep.subr.bf16.mxu0 %v3695
    %3793 = vmatpush1.bf16.msra.mxu0 %v3694
    %3794 = vmatprep.mubr.bf16.mxu0 %v3420
    %3795 = vmatmul.mubr.bf16.gmra.mrb[0].mxu0 %v3419
    %v3796 = vpop.f32.mrb[0].mxu0
    %v3797 = vadd.f32 %v3425, %v3796
    %v3798 = vpop.f32.mrb[0].mxu0
    %v3799 = vadd.f32 %v3429, %v3798
    %v3800 = vpop.f32.mrb[0].mxu0
    %v3801 = vadd.f32 %v3425, %v3800
    %v3802 = vpop.f32.mrb[0].mxu0
    %v3803 = vadd.f32 %v3429, %v3802
    %3804 = vdwg.mxu0
    %3805 = vmatprep.subr.bf16.mxu0 %v3637
    %3806 = vmatpush1.bf16.msra.mxu0 %v3636
    %3807 = vmatprep.subr.bf16.mxu0 %v3641
    %3808 = vmatpush1.bf16.msra.mxu0 %v3640
    %3809 = vmatprep.subr.bf16.mxu0 %v3645
    %3810 = vmatpush1.bf16.msra.mxu0 %v3644
    %3811 = vmatprep.subr.bf16.mxu0 %v3649
    %3812 = vmatpush1.bf16.msra.mxu0 %v3648
    %3813 = vmatprep.subr.bf16.mxu0 %v3653
    %3814 = vmatpush1.bf16.msra.mxu0 %v3652
    %3815 = vmatprep.subr.bf16.mxu0 %v3657
    %3816 = vmatpush1.bf16.msra.mxu0 %v3656
    %3817 = vmatprep.subr.bf16.mxu0 %v3661
    %3818 = vmatpush1.bf16.msra.mxu0 %v3660
    %3819 = vmatprep.subr.bf16.mxu0 %v3665
    %3820 = vmatpush1.bf16.msra.mxu0 %v3664
    %3821 = vmatprep.subr.bf16.mxu0 %v3669
    %3822 = vmatpush1.bf16.msra.mxu0 %v3668
    %3823 = vmatprep.subr.bf16.mxu0 %v3673
    %3824 = vmatpush1.bf16.msra.mxu0 %v3672
    %3825 = vmatprep.subr.bf16.mxu0 %v3677
    %3826 = vmatpush1.bf16.msra.mxu0 %v3676
    %3827 = vmatprep.subr.bf16.mxu0 %v3681
    %3828 = vmatpush1.bf16.msra.mxu0 %v3680
    %3829 = vmatprep.subr.bf16.mxu0 %v3685
    %3830 = vmatpush1.bf16.msra.mxu0 %v3684
    %3831 = vmatprep.subr.bf16.mxu0 %v3689
    %3832 = vmatpush1.bf16.msra.mxu0 %v3688
    %3833 = vmatprep.subr.bf16.mxu0 %v3693
    %3834 = vmatpush1.bf16.msra.mxu0 %v3692
    %3835 = vmatprep.subr.bf16.mxu0 %v3697
    %3836 = vmatpush1.bf16.msra.mxu0 %v3696
    %3837 = vmatprep.mubr.bf16.mxu0 %v3420
    %3838 = vmatmul.mubr.bf16.gmra.mrb[0].mxu0 %v3419
    %v3839 = vpop.f32.mrb[0].mxu0
    %v3840 = vadd.f32 %v3433, %v3839
    %v3841 = vpop.f32.mrb[0].mxu0
    %v3842 = vadd.f32 %v3437, %v3841
    %v3843 = vpop.f32.mrb[0].mxu0
    %v3844 = vadd.f32 %v3433, %v3843
    %v3845 = vpop.f32.mrb[0].mxu0
    %v3846 = vadd.f32 %v3437, %v3845
    %3847 = vdwg.mxu0
    %v3848 = vmax.f32 %v3797, 0.0
    %v3849 = vmax.f32 %v3799, 0.0
    %v3850 = vmax.f32 %v3840, 0.0
    %v3851 = vmax.f32 %v3842, 0.0
    %v3852 = vmax.f32 %v3801, 0.0
    %v3853 = vmax.f32 %v3803, 0.0
    %v3854 = vmax.f32 %v3844, 0.0
    %v3855 = vmax.f32 %v3846, 0.0
    %v3856 = vld [vmem:[#allocation10] sm:$0xf]
    %v3857 = vld [vmem:[#allocation10 + $0x4] sm:$0xf]
    %v3858 = vld [vmem:[#allocation10 + $0x8] sm:$0xf]
    %v3859 = vld [vmem:[#allocation10 + $0xc] sm:$0xf]
    %v3860 = vld [vmem:[#allocation10 + $0x10] sm:$0xf]
    %v3861 = vld [vmem:[#allocation10 + $0x14] sm:$0xf]
    %v3862 = vld [vmem:[#allocation10 + $0x18] sm:$0xf]
    %v3863 = vld [vmem:[#allocation10 + $0x1c] sm:$0xf]
    %v3864 = vld [vmem:[#allocation10 + $0x20] sm:$0xf]
    %v3865 = vld [vmem:[#allocation10 + $0x24] sm:$0xf]
    %v3866 = vld [vmem:[#allocation10 + $0x28] sm:$0xf]
    %v3867 = vld [vmem:[#allocation10 + $0x2c] sm:$0xf]
    %v3868 = vld [vmem:[#allocation10 + $0x30] sm:$0xf]
    %v3869 = vld [vmem:[#allocation10 + $0x34] sm:$0xf]
    %v3870 = vld [vmem:[#allocation10 + $0x38] sm:$0xf]
    %v3871 = vld [vmem:[#allocation10 + $0x3c] sm:$0xf]
    %v3872 = vld [vmem:[#allocation10 + $0x40] sm:$0xf]
    %v3873 = vld [vmem:[#allocation10 + $0x44] sm:$0xf]
    %v3874 = vld [vmem:[#allocation10 + $0x48] sm:$0xf]
    %v3875 = vld [vmem:[#allocation10 + $0x4c] sm:$0xf]
    %v3876 = vld [vmem:[#allocation10 + $0x50] sm:$0xf]
    %v3877 = vld [vmem:[#allocation10 + $0x54] sm:$0xf]
    %v3878 = vld [vmem:[#allocation10 + $0x58] sm:$0xf]
    %v3879 = vld [vmem:[#allocation10 + $0x5c] sm:$0xf]
    %v3880 = vld [vmem:[#allocation10 + $0x60] sm:$0xf]
    %v3881 = vld [vmem:[#allocation10 + $0x64] sm:$0xf]
    %v3882 = vld [vmem:[#allocation10 + $0x68] sm:$0xf]
    %v3883 = vld [vmem:[#allocation10 + $0x6c] sm:$0xf]
    %v3884 = vld [vmem:[#allocation10 + $0x70] sm:$0xf]
    %v3885 = vld [vmem:[#allocation10 + $0x74] sm:$0xf]
    %v3886 = vld [vmem:[#allocation10 + $0x78] sm:$0xf]
    %v3887 = vld [vmem:[#allocation10 + $0x7c] sm:$0xf]
    %v3888 = vpack.c.bf16 %v3852, %v3848
    %v3889 = vpack.c.bf16 %v3853, %v3849
    %v3890 = vpack.c.bf16 %v3854, %v3850
    %v3891 = vpack.c.bf16 %v3855, %v3851
    %v3893 = vlaneseq
    %v3894 = vshrl.u32 %v3893, 7
    %v3895 = vsub.s32 0, %v3894
    %v3896 = vrot.slane %v117, %v3895
    %v3930 = vunpack.c.l.b16 %v3856
    %v3931 = vunpack.c.l.b16 %v3857
    %v3932 = vunpack.c.l.b16 %v3858
    %v3933 = vunpack.c.l.b16 %v3859
    %v3934 = vunpack.c.l.b16 %v3860
    %v3935 = vunpack.c.l.b16 %v3861
    %v3936 = vunpack.c.l.b16 %v3862
    %v3937 = vunpack.c.l.b16 %v3863
    %v3938 = vunpack.c.l.b16 %v3864
    %v3939 = vunpack.c.l.b16 %v3865
    %v3940 = vunpack.c.l.b16 %v3866
    %v3941 = vunpack.c.l.b16 %v3867
    %v3942 = vunpack.c.l.b16 %v3868
    %v3943 = vunpack.c.l.b16 %v3869
    %v3944 = vunpack.c.l.b16 %v3870
    %v3945 = vunpack.c.l.b16 %v3871
    %v3946 = vunpack.c.l.b16 %v3872
    %v3947 = vunpack.c.l.b16 %v3873
    %v3948 = vunpack.c.l.b16 %v3874
    %v3949 = vunpack.c.l.b16 %v3875
    %v3950 = vunpack.c.l.b16 %v3876
    %v3951 = vunpack.c.l.b16 %v3877
    %v3952 = vunpack.c.l.b16 %v3878
    %v3953 = vunpack.c.l.b16 %v3879
    %v3954 = vunpack.c.l.b16 %v3880
    %v3955 = vunpack.c.l.b16 %v3881
    %v3956 = vunpack.c.l.b16 %v3882
    %v3957 = vunpack.c.l.b16 %v3883
    %v3958 = vunpack.c.l.b16 %v3884
    %v3959 = vunpack.c.l.b16 %v3885
    %v3960 = vunpack.c.l.b16 %v3886
    %v3961 = vunpack.c.l.b16 %v3887
    %v3962 = vpack.c.b16 %v3931, %v3930
    %v3963 = vpack.c.b16 %v3933, %v3932
    %v3964 = vpack.c.b16 %v3935, %v3934
    %v3965 = vpack.c.b16 %v3937, %v3936
    %v3966 = vpack.c.b16 %v3939, %v3938
    %v3967 = vpack.c.b16 %v3941, %v3940
    %v3968 = vpack.c.b16 %v3943, %v3942
    %v3969 = vpack.c.b16 %v3945, %v3944
    %v3970 = vpack.c.b16 %v3947, %v3946
    %v3971 = vpack.c.b16 %v3949, %v3948
    %v3972 = vpack.c.b16 %v3951, %v3950
    %v3973 = vpack.c.b16 %v3953, %v3952
    %v3974 = vpack.c.b16 %v3955, %v3954
    %v3975 = vpack.c.b16 %v3957, %v3956
    %v3976 = vpack.c.b16 %v3959, %v3958
    %v3977 = vpack.c.b16 %v3961, %v3960
    %3994 = vmatprep.subr.bf16.mxu0 0
    %3995 = vmatpush1.bf16.msra.mxu0 %v3962
    %3996 = vmatprep.subr.bf16.mxu0 0
    %3997 = vmatpush1.bf16.msra.mxu0 %v3963
    %3998 = vmatprep.subr.bf16.mxu0 0
    %3999 = vmatpush1.bf16.msra.mxu0 %v3964
    %4000 = vmatprep.subr.bf16.mxu0 0
    %4001 = vmatpush1.bf16.msra.mxu0 %v3965
    %4002 = vmatprep.subr.bf16.mxu0 0
    %4003 = vmatpush1.bf16.msra.mxu0 %v3966
    %4004 = vmatprep.subr.bf16.mxu0 0
    %4005 = vmatpush1.bf16.msra.mxu0 %v3967
    %4006 = vmatprep.subr.bf16.mxu0 0
    %4007 = vmatpush1.bf16.msra.mxu0 %v3968
    %4008 = vmatprep.subr.bf16.mxu0 0
    %4009 = vmatpush1.bf16.msra.mxu0 %v3969
    %4010 = vmatprep.subr.bf16.mxu0 0
    %4011 = vmatpush1.bf16.msra.mxu0 %v3970
    %4012 = vmatprep.subr.bf16.mxu0 0
    %4013 = vmatpush1.bf16.msra.mxu0 %v3971
    %4014 = vmatprep.subr.bf16.mxu0 0
    %4015 = vmatpush1.bf16.msra.mxu0 %v3972
    %4016 = vmatprep.subr.bf16.mxu0 0
    %4017 = vmatpush1.bf16.msra.mxu0 %v3973
    %4018 = vmatprep.subr.bf16.mxu0 0
    %4019 = vmatpush1.bf16.msra.mxu0 %v3974
    %4020 = vmatprep.subr.bf16.mxu0 0
    %4021 = vmatpush1.bf16.msra.mxu0 %v3975
    %4022 = vmatprep.subr.bf16.mxu0 0
    %4023 = vmatpush1.bf16.msra.mxu0 %v3976
    %4024 = vmatprep.subr.bf16.mxu0 0
    %4025 = vmatpush1.bf16.msra.mxu0 %v3977
    %4026 = vmatprep.mubr.bf16.mxu0 %v3889
    %4027 = vmatmul.mubr.bf16.gmra.mrb[0].mxu0 %v3888
    %v4028 = vpop.f32.mrb[0].mxu0
    %v4029 = vadd.f32 %v3896, %v4028
    %v4030 = vpop.f32.mrb[0].mxu0
    %v4031 = vpop.f32.mrb[0].mxu0
    %v4032 = vadd.f32 %v3896, %v4031
    %v4033 = vpop.f32.mrb[0].mxu0
    %4034 = vmatprep.mubr.bf16.mxu0 %v3891
    %4035 = vmatmul.mubr.bf16.gmra.mrb[0].mxu0 %v3890
    %v4036 = vpop.f32.mrb[0].mxu0
    %v4037 = vadd.f32 %v3896, %v4036
    %v4038 = vpop.f32.mrb[0].mxu0
    %v4039 = vpop.f32.mrb[0].mxu0
    %v4040 = vadd.f32 %v3896, %v4039
    %v4041 = vpop.f32.mrb[0].mxu0
    %4042 = vdwg.mxu0
    %v4043 = vmax.f32 %v4029, 0.0
    %v4044 = vmax.f32 %v4032, 0.0
    %v4045 = vmax.f32 %v4037, 0.0
    %v4046 = vmax.f32 %v4040, 0.0
    %4047 = vmax.xlane.f32.xlu0 %v4043
    %v4048 = vpop.xlane.xlu0 %4047
    %4049 = vmax.xlane.f32.xlu0 %v4044
    %v4050 = vpop.xlane.xlu0 %4049
    %4051 = vmax.xlane.f32.xlu0 %v4045
    %v4052 = vpop.xlane.xlu0 %4051
    %4053 = vmax.xlane.f32.xlu0 %v4046
    %v4054 = vpop.xlane.xlu0 %4053
    %v4055 = vlaneseq
    %v4056 = vand.u32 %v4055, 127
    %vm4057 = vcmp.eq.f32.partialorder %v4043, %v4048
    %vm4058 = vcmp.eq.f32.partialorder %v4044, %v4050
    %vm4059 = vcmp.eq.f32.partialorder %v4045, %v4052
    %vm4060 = vcmp.eq.f32.partialorder %v4046, %v4054
    %v4061 = vsel %vm4057, %v4056, 128
    %v4062 = vsel %vm4058, %v4056, 128
    %v4063 = vsel %vm4059, %v4056, 128
    %v4064 = vsel %vm4060, %v4056, 128
    %v4065 = vand.u32 %v4061, 65535
    %v4066 = vshra.s32 %v4061, 16
    %v4067 = vcvt.s32.f32 %v4065
    %v4068 = vcvt.s32.f32 %v4066
    %4069 = vmin.xlane.f32.xlu0 %v4068
    %v4070 = vpop.xlane.xlu0 %4069
    %vm4071 = vcmp.eq.f32.partialorder %v4068, %v4070
    %v4072 = vsel %vm4071, %v4067, inf
    %4073 = vmin.xlane.f32.xlu0 %v4072
    %v4074 = vpop.xlane.xlu0 %4073
    %v4075 = vcvt.f32.s32 %v4074
    %v4076 = vcvt.f32.s32 %v4070
    %v4077 = vshll.u32 %v4076, 16
    %v4078 = vadd.s32 %v4077, %v4075
    %v4079 = vand.u32 %v4062, 65535
    %v4080 = vshra.s32 %v4062, 16
    %v4081 = vcvt.s32.f32 %v4079
    %v4082 = vcvt.s32.f32 %v4080
    %4083 = vmin.xlane.f32.xlu0 %v4082
    %v4084 = vpop.xlane.xlu0 %4083
    %vm4085 = vcmp.eq.f32.partialorder %v4082, %v4084
    %v4086 = vsel %vm4085, %v4081, inf
    %4087 = vmin.xlane.f32.xlu0 %v4086
    %v4088 = vpop.xlane.xlu0 %4087
    %v4089 = vcvt.f32.s32 %v4088
    %v4090 = vcvt.f32.s32 %v4084
    %v4091 = vshll.u32 %v4090, 16
    %v4092 = vadd.s32 %v4091, %v4089
    %v4093 = vand.u32 %v4063, 65535
    %v4094 = vshra.s32 %v4063, 16
    %v4095 = vcvt.s32.f32 %v4093
    %v4096 = vcvt.s32.f32 %v4094
    %4097 = vmin.xlane.f32.xlu0 %v4096
    %v4098 = vpop.xlane.xlu0 %4097
    %vm4099 = vcmp.eq.f32.partialorder %v4096, %v4098
    %v4100 = vsel %vm4099, %v4095, inf
    %4101 = vmin.xlane.f32.xlu0 %v4100
    %v4102 = vpop.xlane.xlu0 %4101
    %v4103 = vcvt.f32.s32 %v4102
    %v4104 = vcvt.f32.s32 %v4098
    %v4105 = vshll.u32 %v4104, 16
    %v4106 = vadd.s32 %v4105, %v4103
    %v4107 = vand.u32 %v4064, 65535
    %v4108 = vshra.s32 %v4064, 16
    %v4109 = vcvt.s32.f32 %v4107
    %v4110 = vcvt.s32.f32 %v4108
    %4111 = vmin.xlane.f32.xlu0 %v4110
    %v4112 = vpop.xlane.xlu0 %4111
    %vm4113 = vcmp.eq.f32.partialorder %v4110, %v4112
    %v4114 = vsel %vm4113, %v4109, inf
    %4115 = vmin.xlane.f32.xlu0 %v4114
    %v4116 = vpop.xlane.xlu0 %4115
    %v4117 = vcvt.f32.s32 %v4116
    %v4118 = vcvt.f32.s32 %v4112
    %v4119 = vshll.u32 %v4118, 16
    %v4120 = vadd.s32 %v4119, %v4117
    %vm4121 = vcmp.eq.s32.totalorder %v4056, %v4078
    %vm4122 = vcmp.eq.s32.totalorder %v4056, %v4092
    %vm4123 = vcmp.eq.s32.totalorder %v4056, %v4106
    %vm4124 = vcmp.eq.s32.totalorder %v4056, %v4120
    %v4125 = vsel %vm4121, 1, 0
    %v4126 = vsel %vm4122, 1, 0
    %v4127 = vsel %vm4123, 1, 0
    %v4128 = vsel %vm4124, 1, 0
    %v4129 = vcvt.s32.f32 %v4125
    %v4130 = vcvt.s32.f32 %v4126
    %v4131 = vcvt.s32.f32 %v4127
    %v4132 = vcvt.s32.f32 %v4128
    %4133 = vst [vmem:[%s9] sm:$0xff] %v4129
    %4134 = vst [vmem:[%s9 + $0x8] sm:$0xff] %v4130
    %4135 = vst [vmem:[%s9 + $0x10] sm:$0xff] %v4131
    %4136 = vst [vmem:[%s9 + $0x18] sm:$0xff] %v4132
    // Predicated region
    $region62: #{generator_forward.1} parent=1 // pred_check
      _
    $region63: #{generator_forward.1} parent=1 // pred_check_branch
      %4138 = sbr.rel (0) target = $region65
    $region64: #{generator_forward.1} parent=1 // pred_region
      _
    $region65: #{generator_forward.1} parent=1 // pred_fallthru
      _
    // Predicated region
    $region66: #{generator_forward.1} parent=1 // pred_check
      _
    $region67: #{generator_forward.1} parent=1 // pred_check_branch
      %4140 = sbr.rel (0) target = $region69
    $region68: #{generator_forward.1} parent=1 // pred_region
      _
    $region69: #{generator_forward.1} parent=1 // pred_fallthru
      _
    %4141 = vsyncpa [#allocation3], 1
    %4142 = vsyncpa [#allocation5], 1
    %4143 = vsyncpa [#allocation8], 1
    %4144 = vsyncpa [#allocation11], 1

</llo_original>
